<compile_context>
chip_gen: v7x
topology: tpu7x:2x2x1
jax: 0.10.0
libtpu: 0.0.40
codegen_flags: <defaults>
</compile_context>

<pallas_src>
import functools

import jax
import jax.numpy as jnp
from jax import lax
from jax.experimental import pallas as pl
from jax.experimental.pallas import tpu as pltpu

LANE = 128


def _round_up(v, m):
    return ((v + m - 1) // m) * m


def _pad2(a, rows, cols):
    return jnp.pad(a, ((0, rows - a.shape[0]), (0, cols - a.shape[1])))


# -----------------------------------------------------------------------------
# Kernel 1: per-node feature transforms (tiny matmuls, gridded over node rows)
#   Xl = X @ W_l                     (bf16, feeds the big A @ Xl contraction)
#   Z  = X @ W_r + b_l               (f32 self/root term + bias)
# -----------------------------------------------------------------------------
def sage_feature_kernel(x_ref, wl_ref, wr_ref, bl_ref, xl_ref, z_ref):
    x = x_ref[...]                                               # (tm, Fin_p) bf16
    xl = jnp.dot(x, wl_ref[...], preferred_element_type=jnp.float32)
    xl_ref[...] = xl.astype(jnp.bfloat16)
    z = jnp.dot(x, wr_ref[...], preferred_element_type=jnp.float32)
    z_ref[...] = z + bl_ref[...]


def sage_feature_transform(x_bf16, w_l, w_r, b_l, *, tm):
    n_pad, fin_p = x_bf16.shape
    hp = w_l.shape[1]
    return pl.pallas_call(
        sage_feature_kernel,
        out_shape=(jax.ShapeDtypeStruct((n_pad, hp), jnp.bfloat16),
                   jax.ShapeDtypeStruct((n_pad, hp), jnp.float32)),
        grid=(n_pad // tm,),
        in_specs=[
            pl.BlockSpec((tm, fin_p), lambda i: (i, 0)),
            pl.BlockSpec((fin_p, hp), lambda i: (0, 0)),
            pl.BlockSpec((fin_p, hp), lambda i: (0, 0)),
            pl.BlockSpec((1, hp), lambda i: (0, 0)),
        ],
        out_specs=(pl.BlockSpec((tm, hp), lambda i: (i, 0)),
                   pl.BlockSpec((tm, hp), lambda i: (i, 0))),
        compiler_params=pltpu.CompilerParams(
            dimension_semantics=("parallel",)),
    )(x_bf16, w_l, w_r, b_l)


# -----------------------------------------------------------------------------
# Kernel 2: tiled mean-aggregation + self term + SiLU
#   out[i] = SiLU( sum_k A[i,k] @ Xl[k]  +  Z[i] )
# Grid: (row tiles, K tiles); f32 VMEM accumulator; finalize at the last K step.
# -----------------------------------------------------------------------------
def sage_agg_silu_kernel(a_ref, xl_ref, z_ref, out_ref, acc_ref):
    k = pl.program_id(1)

    @pl.when(k == 0)
    def _():
        acc_ref[...] = jnp.zeros_like(acc_ref)

    acc_ref[...] += jnp.dot(a_ref[...], xl_ref[...],
                            preferred_element_type=jnp.float32)

    @pl.when(k == pl.num_programs(1) - 1)
    def _():
        h = acc_ref[...] + z_ref[...]
        # SiLU = h * sigmoid(h); exp + approx reciprocal both run on the EUP slot.
        out_ref[...] = h * pl.reciprocal(1.0 + jnp.exp(-h), approx=True)


def sage_aggregate_silu(a_pad, xl, z, *, tm, tk):
    n_pad = a_pad.shape[0]
    hp = xl.shape[1]
    return pl.pallas_call(
        sage_agg_silu_kernel,
        out_shape=jax.ShapeDtypeStruct((n_pad, hp), jnp.float32),
        grid=(n_pad // tm, n_pad // tk),
        in_specs=[
            pl.BlockSpec((tm, tk), lambda i, k: (i, k)),   # adjacency tile (bf16)
            pl.BlockSpec((tk, hp), lambda i, k: (k, 0)),   # Xl rows for K tile
            pl.BlockSpec((tm, hp), lambda i, k: (i, 0)),   # self term for row tile
        ],
        out_specs=pl.BlockSpec((tm, hp), lambda i, k: (i, 0)),
        scratch_shapes=[pltpu.VMEM((tm, hp), jnp.float32)],
        compiler_params=pltpu.CompilerParams(
            dimension_semantics=("parallel", "arbitrary")),
    )(a_pad, xl, z)


# -----------------------------------------------------------------------------
# Kernel 3: post_mp (Linear -> [Dropout: identity] -> Linear) + masked
# log_softmax over the first `out_dim` lanes (rest is 128-lane padding).
# -----------------------------------------------------------------------------
def post_mp_kernel(x_ref, w1_ref, b1_ref, w2_ref, b2_ref, out_ref,
                   *, out_dim, apply_log_softmax):
    h = jnp.dot(x_ref[...], w1_ref[...],
                preferred_element_type=jnp.float32) + b1_ref[...]
    z = jnp.dot(h.astype(jnp.bfloat16), w2_ref[...],
                preferred_element_type=jnp.float32) + b2_ref[...]
    if apply_log_softmax:
        col = lax.broadcasted_iota(jnp.int32, z.shape, 1)
        valid = col < out_dim
        zm = jnp.where(valid, z, -jnp.inf)
        m = jnp.max(zm, axis=1, keepdims=True)                 # XLU lane reduce
        e = jnp.where(valid, jnp.exp(zm - m), 0.0)
        lse = m + jnp.log(jnp.sum(e, axis=1, keepdims=True))
        out_ref[...] = zm - lse
    else:
        out_ref[...] = z                                       # emb=True path


def post_mp(x_bf16, w1, b1, w2, b2, *, tm, out_dim, apply_log_softmax):
    n_pad, hp = x_bf16.shape
    op = w2.shape[1]
    kernel = functools.partial(post_mp_kernel, out_dim=out_dim,
                               apply_log_softmax=apply_log_softmax)
    return pl.pallas_call(
        kernel,
        out_shape=jax.ShapeDtypeStruct((n_pad, op), jnp.float32),
        grid=(n_pad // tm,),
        in_specs=[
            pl.BlockSpec((tm, hp), lambda i: (i, 0)),
            pl.BlockSpec((hp, hp), lambda i: (0, 0)),
            pl.BlockSpec((1, hp), lambda i: (0, 0)),
            pl.BlockSpec((hp, op), lambda i: (0, 0)),
            pl.BlockSpec((1, op), lambda i: (0, 0)),
        ],
        out_specs=pl.BlockSpec((tm, op), lambda i: (i, 0)),
        compiler_params=pltpu.CompilerParams(
            dimension_semantics=("parallel",)),
    )(x_bf16, w1, b1, w2, b2)


# -----------------------------------------------------------------------------
# Glue: mean-aggregation matrix from edge_index (PyG convention: row 0 = src,
# row 1 = dst, messages x_j flow src -> dst; isolated nodes aggregate to zero).
# -----------------------------------------------------------------------------
def build_mean_adjacency(edge_index, num_nodes, n_pad):
    # TODO(synk): for realistic sparsity (E << N^2) replace this dense A with a
    # CSR gather kernel driven by PrefetchScalarGridSpec instead of A @ Xl.
    src, dst = edge_index[0], edge_index[1]
    a = jnp.zeros((num_nodes, num_nodes), jnp.float32).at[dst, src].add(1.0)
    deg = jnp.sum(a, axis=1, keepdims=True)
    a = a / jnp.maximum(deg, 1.0)
    a = jnp.pad(a, ((0, n_pad - num_nodes), (0, n_pad - num_nodes)))
    return a.astype(jnp.bfloat16)


# -----------------------------------------------------------------------------
# Parameters (deterministic init, PyTorch-Linear-style uniform fan-in scaling)
# -----------------------------------------------------------------------------
def init_params(key, input_dim, hidden_dim, output_dim, num_layers):
    params = {"convs": [], "post_mp": None}
    dims_in = [input_dim] + [hidden_dim] * (num_layers - 1)
    for l in range(num_layers):
        key, k1, k2, k3 = jax.random.split(key, 4)
        fan_in = dims_in[l]
        scale = 1.0 / jnp.sqrt(jnp.float32(fan_in))
        params["convs"].append({
            "w_l": jax.random.uniform(k1, (fan_in, hidden_dim), jnp.float32, -scale, scale),
            "w_r": jax.random.uniform(k2, (fan_in, hidden_dim), jnp.float32, -scale, scale),
            "b_l": jax.random.uniform(k3, (1, hidden_dim), jnp.float32, -scale, scale),
        })
    key, k1, k2, k3, k4 = jax.random.split(key, 5)
    s1 = 1.0 / jnp.sqrt(jnp.float32(hidden_dim))
    params["post_mp"] = {
        "w1": jax.random.uniform(k1, (hidden_dim, hidden_dim), jnp.float32, -s1, s1),
        "b1": jax.random.uniform(k2, (1, hidden_dim), jnp.float32, -s1, s1),
        "w2": jax.random.uniform(k3, (hidden_dim, output_dim), jnp.float32, -s1, s1),
        "b2": jax.random.uniform(k4, (1, output_dim), jnp.float32, -s1, s1),
    }
    return params


# -----------------------------------------------------------------------------
# GNNStack forward (inference semantics: dropout = identity)
# -----------------------------------------------------------------------------
@functools.partial(jax.jit, static_argnames=("num_nodes", "emb"))
def gnn_stack_forward(params, x, edge_index, *, num_nodes, emb=False):
    n = num_nodes
    hidden_dim = params["convs"][0]["w_l"].shape[1]
    output_dim = params["post_mp"]["w2"].shape[1]

    # Row / K tile of the N x N aggregation: 512 once the graph is big enough
    # (better HBM roofline), 256 otherwise.  Fits all generations' VMEM limits.
    tile = 512 if n >= 512 else 256
    n_pad = _round_up(n, tile)
    hp = _round_up(hidden_dim, LANE)
    op = _round_up(output_dim, LANE)

    a_pad = build_mean_adjacency(edge_index, n, n_pad)          # (n_pad, n_pad) bf16

    fin_p = _round_up(x.shape[1], LANE)
    xb = _pad2(x, n_pad, fin_p).astype(jnp.bfloat16)

    for conv in params["convs"]:
        fin_cur_p = _round_up(conv["w_l"].shape[0], LANE)
        wl = _pad2(conv["w_l"], fin_cur_p, hp).astype(jnp.bfloat16)
        wr = _pad2(conv["w_r"], fin_cur_p, hp).astype(jnp.bfloat16)
        bl = _pad2(conv["b_l"], 1, hp)
        xl, z = sage_feature_transform(xb, wl, wr, bl, tm=tile)
        h = sage_aggregate_silu(a_pad, xl, z, tm=tile, tk=tile)  # SAGEConv + SiLU
        xb = h.astype(jnp.bfloat16)                              # dropout = identity
        # TODO(synk): fuse consecutive conv layers so A is read from HBM once.

    pm = params["post_mp"]
    w1 = _pad2(pm["w1"], hp, hp).astype(jnp.bfloat16)
    b1 = _pad2(pm["b1"], 1, hp)
    w2 = _pad2(pm["w2"], hp, op).astype(jnp.bfloat16)
    b2 = _pad2(pm["b2"], 1, op)
    out_pad = post_mp(xb, w1, b1, w2, b2, tm=tile,
                      out_dim=output_dim, apply_log_softmax=not emb)
    return out_pad[:n, :output_dim]


# -----------------------------------------------------------------------------
# Pure-JAX f32 reference (PyTorch GNNStack semantics) for correctness checking
# -----------------------------------------------------------------------------
def reference_forward(params, x, edge_index, num_nodes, emb=False):
    src, dst = edge_index[0], edge_index[1]
    a = jnp.zeros((num_nodes, num_nodes), jnp.float32).at[dst, src].add(1.0)
    deg = jnp.sum(a, axis=1, keepdims=True)
    a = a / jnp.maximum(deg, 1.0)
    h = x
    for conv in params["convs"]:
        h_new = (a @ h) @ conv["w_l"] + conv["b_l"] + h @ conv["w_r"]
        h = h_new * jax.nn.sigmoid(h_new)
    pm = params["post_mp"]
    z = (h @ pm["w1"] + pm["b1"]) @ pm["w2"] + pm["b2"]
    return z if emb else jax.nn.log_softmax(z, axis=1)


if __name__ == "__main__":
    # Small deterministic example; N chosen so the tiled grid is exercised
    # (tile=256, n_pad=512 -> aggregation grid (2, 2)).
    N = 300          # num nodes
    E = 1200         # num edges
    INPUT_DIM = 8
    HIDDEN_DIM = 32
    OUTPUT_DIM = 8
    NUM_LAYERS = 2
    DROPOUT = 0.5    # identity at inference

    key = jax.random.PRNGKey(0)
    key, kx, ke, kp = jax.random.split(key, 4)
    x = jax.random.normal(kx, (N, INPUT_DIM), jnp.float32)
    edge_index = jax.random.randint(ke, (2, E), 0, N, dtype=jnp.int32)

    params = init_params(kp, INPUT_DIM, HIDDEN_DIM, OUTPUT_DIM, NUM_LAYERS)

    out = gnn_stack_forward(params, x, edge_index, num_nodes=N, emb=False)
    out = jax.block_until_ready(out)

    assert out.shape == (N, OUTPUT_DIM)
    # log_softmax rows should sum (in prob space) to ~1
    row_sums = jnp.sum(jnp.exp(out), axis=1)
    assert jnp.allclose(row_sums, 1.0, atol=1e-3), row_sums

    # Compare against the pure-JAX f32 reference (bf16 matmuls + approx
    # reciprocal in SiLU introduce small, bounded differences).
    ref = reference_forward(params, x, edge_index, N)
    max_err = float(jnp.max(jnp.abs(out - ref)))
    assert max_err < 0.15, max_err

    print("KERNEL_OK")
</pallas_src>

<mosaic_0001>
module attributes {stable_mosaic.version = 11 : i64} {
  func.func private @main(%arg0: i32) attributes {dimension_semantics = [#tpu.dimension_semantics<core_parallel>], iteration_bounds = array<i64: 2>, tpu.core_type = #tpu.core_type<sc_scalar_subcore>, window_params = []} {
    return
  }
}

module attributes {stable_mosaic.version = 11 : i64} {
  func.func private @main(%arg0: i32) attributes {dimension_semantics = [#tpu.dimension_semantics<core_parallel>], iteration_bounds = array<i64: 2>, tpu.core_type = #tpu.core_type<sc_scalar_subcore>, window_params = []} {
    return
  }
}

module attributes {stable_mosaic.version = 11 : i64} {
  func.func @sage_feature_kernel(%arg0: i32, %arg1: memref<256x128xbf16, #tpu.memory_space<vmem>>, %arg2: memref<128x128xbf16, #tpu.memory_space<vmem>>, %arg3: memref<128x128xbf16, #tpu.memory_space<vmem>>, %arg4: memref<1x128xf32, #tpu.memory_space<vmem>>, %arg5: memref<256x128xbf16, #tpu.memory_space<vmem>>, %arg6: memref<256x128xf32, #tpu.memory_space<vmem>>) attributes {dimension_semantics = [#tpu.dimension_semantics<parallel>], iteration_bounds = array<i64: 2>, scalar_prefetch = 0 : i64, scratch_operands = 0 : i64, tpu.core_type = #tpu.core_type<tc>, window_params = [{transform_indices = @transform_0, window_bounds = array<i64: 256, 128>}, {pipeline_mode = #tpu.pipeline_mode<synchronous>, transform_indices = @transform_1, window_bounds = array<i64: 128, 128>}, {pipeline_mode = #tpu.pipeline_mode<synchronous>, transform_indices = @transform_2, window_bounds = array<i64: 128, 128>}, {pipeline_mode = #tpu.pipeline_mode<synchronous>, transform_indices = @transform_3, window_bounds = array<i64: 1, 128>}, {transform_indices = @transform_4, window_bounds = array<i64: 256, 128>}, {transform_indices = @transform_5, window_bounds = array<i64: 256, 128>}]} {
    %c0 = arith.constant 0 : index
    %c0_0 = arith.constant 0 : index
    %0 = vector.load %arg1[%c0, %c0_0] : memref<256x128xbf16, #tpu.memory_space<vmem>>, vector<256x128xbf16>
    %c0_1 = arith.constant 0 : index
    %c0_2 = arith.constant 0 : index
    %1 = vector.load %arg2[%c0_1, %c0_2] : memref<128x128xbf16, #tpu.memory_space<vmem>>, vector<128x128xbf16>
    %cst = arith.constant dense<0.000000e+00> : vector<256x128xf32>
    %2 = tpu.matmul %0, %1, %cst {dimension_numbers = #tpu.dot_dimension_numbers<[1], [0], [0], [1], [0, 0, 1, 1], [], []>} : vector<256x128xbf16>, vector<128x128xbf16>, vector<256x128xf32> -> vector<256x128xf32>
    %3 = arith.truncf %2 : vector<256x128xf32> to vector<256x128xbf16>
    %c0_3 = arith.constant 0 : index
    %c0_4 = arith.constant 0 : index
    %4 = vector.load %arg5[%c0_3, %c0_4] : memref<256x128xbf16, #tpu.memory_space<vmem>>, vector<256x128xbf16>
    tpu.vector_store %arg5[%c0_3, %c0_4], %3 {strides = array<i32>} : memref<256x128xbf16, #tpu.memory_space<vmem>>, vector<256x128xbf16>,
    %c0_5 = arith.constant 0 : index
    %c0_6 = arith.constant 0 : index
    %5 = vector.load %arg3[%c0_5, %c0_6] : memref<128x128xbf16, #tpu.memory_space<vmem>>, vector<128x128xbf16>
    %cst_7 = arith.constant dense<0.000000e+00> : vector<256x128xf32>
    %6 = tpu.matmul %0, %5, %cst_7 {dimension_numbers = #tpu.dot_dimension_numbers<[1], [0], [0], [1], [0, 0, 1, 1], [], []>} : vector<256x128xbf16>, vector<128x128xbf16>, vector<256x128xf32> -> vector<256x128xf32>
    %c0_8 = arith.constant 0 : index
    %c0_9 = arith.constant 0 : index
    %7 = vector.load %arg4[%c0_8, %c0_9] : memref<1x128xf32, #tpu.memory_space<vmem>>, vector<1x128xf32>
    %8 = vector.broadcast %7 : vector<1x128xf32> to vector<256x128xf32>
    %9 = arith.addf %6, %8 : vector<256x128xf32>
    %c0_10 = arith.constant 0 : index
    %c0_11 = arith.constant 0 : index
    %10 = vector.load %arg6[%c0_10, %c0_11] : memref<256x128xf32, #tpu.memory_space<vmem>>, vector<256x128xf32>
    tpu.vector_store %arg6[%c0_10, %c0_11], %9 {strides = array<i32>} : memref<256x128xf32, #tpu.memory_space<vmem>>, vector<256x128xf32>,
    return
  }
  func.func @transform_0(%arg0: i32) -> (i32, i32) {
    %c0_i32 = arith.constant 0 : i32
    %c0_i32_0 = arith.constant 0 : i32
    return %arg0, %c0_i32 : i32, i32
  }
  func.func @transform_1(%arg0: i32) -> (i32, i32) {
    %c0_i32 = arith.constant 0 : i32
    %c0_i32_0 = arith.constant 0 : i32
    %c0_i32_1 = arith.constant 0 : i32
    return %c0_i32, %c0_i32_0 : i32, i32
  }
  func.func @transform_2(%arg0: i32) -> (i32, i32) {
    %c0_i32 = arith.constant 0 : i32
    %c0_i32_0 = arith.constant 0 : i32
    %c0_i32_1 = arith.constant 0 : i32
    return %c0_i32, %c0_i32_0 : i32, i32
  }
  func.func @transform_3(%arg0: i32) -> (i32, i32) {
    %c0_i32 = arith.constant 0 : i32
    %c0_i32_0 = arith.constant 0 : i32
    %c0_i32_1 = arith.constant 0 : i32
    return %c0_i32, %c0_i32_0 : i32, i32
  }
  func.func @transform_4(%arg0: i32) -> (i32, i32) {
    %c0_i32 = arith.constant 0 : i32
    %c0_i32_0 = arith.constant 0 : i32
    return %arg0, %c0_i32 : i32, i32
  }
  func.func @transform_5(%arg0: i32) -> (i32, i32) {
    %c0_i32 = arith.constant 0 : i32
    %c0_i32_0 = arith.constant 0 : i32
    return %arg0, %c0_i32 : i32, i32
  }
}

module attributes {stable_mosaic.version = 11 : i64} {
  func.func @sage_agg_silu_kernel(%arg0: i32, %arg1: i32, %arg2: memref<256x256xbf16, #tpu.memory_space<vmem>>, %arg3: memref<256x128xbf16, #tpu.memory_space<vmem>>, %arg4: memref<256x128xf32, #tpu.memory_space<vmem>>, %arg5: memref<256x128xf32, #tpu.memory_space<vmem>>, %arg6: memref<256x128xf32, #tpu.memory_space<vmem>>) attributes {dimension_semantics = [#tpu.dimension_semantics<parallel>, #tpu.dimension_semantics<arbitrary>], iteration_bounds = array<i64: 2, 2>, scalar_prefetch = 0 : i64, scratch_operands = 1 : i64, tpu.core_type = #tpu.core_type<tc>, window_params = [{transform_indices = @transform_0, window_bounds = array<i64: 256, 256>}, {transform_indices = @transform_1, window_bounds = array<i64: 256, 128>}, {transform_indices = @transform_2, window_bounds = array<i64: 256, 128>}, {transform_indices = @transform_3, window_bounds = array<i64: 256, 128>}]} {
    %c0_i32 = arith.constant 0 : i32
    %0 = arith.cmpi eq, %arg1, %c0_i32 : i32
    %1 = arith.extui %0 : i1 to i32
    %c0_i32_0 = arith.constant 0 : i32
    %2 = arith.cmpi ne, %1, %c0_i32_0 : i32
    scf.if %2 {
      %cst_9 = arith.constant 0.000000e+00 : f32
      %12 = vector.broadcast %cst_9 : f32 to vector<256x128xf32>
      %c0_10 = arith.constant 0 : index
      %c0_11 = arith.constant 0 : index
      %13 = vector.load %arg6[%c0_10, %c0_11] : memref<256x128xf32, #tpu.memory_space<vmem>>, vector<256x128xf32>
      tpu.vector_store %arg6[%c0_10, %c0_11], %12 {strides = array<i32>} : memref<256x128xf32, #tpu.memory_space<vmem>>, vector<256x128xf32>,
    } else {
    }
    %c0 = arith.constant 0 : index
    %c0_1 = arith.constant 0 : index
    %3 = vector.load %arg6[%c0, %c0_1] : memref<256x128xf32, #tpu.memory_space<vmem>>, vector<256x128xf32>
    %c0_2 = arith.constant 0 : index
    %c0_3 = arith.constant 0 : index
    %4 = vector.load %arg2[%c0_2, %c0_3] : memref<256x256xbf16, #tpu.memory_space<vmem>>, vector<256x256xbf16>
    %c0_4 = arith.constant 0 : index
    %c0_5 = arith.constant 0 : index
    %5 = vector.load %arg3[%c0_4, %c0_5] : memref<256x128xbf16, #tpu.memory_space<vmem>>, vector<256x128xbf16>
    %cst = arith.constant dense<0.000000e+00> : vector<256x128xf32>
    %6 = tpu.matmul %4, %5, %cst {dimension_numbers = #tpu.dot_dimension_numbers<[1], [0], [0], [1], [0, 0, 1, 1], [], []>} : vector<256x256xbf16>, vector<256x128xbf16>, vector<256x128xf32> -> vector<256x128xf32>
    %7 = arith.addf %3, %6 : vector<256x128xf32>
    %c0_6 = arith.constant 0 : index
    %c0_7 = arith.constant 0 : index
    %8 = vector.load %arg6[%c0_6, %c0_7] : memref<256x128xf32, #tpu.memory_space<vmem>>, vector<256x128xf32>
    tpu.vector_store %arg6[%c0_6, %c0_7], %7 {strides = array<i32>} : memref<256x128xf32, #tpu.memory_space<vmem>>, vector<256x128xf32>,
    %c1_i32 = arith.constant 1 : i32
    %9 = arith.cmpi eq, %arg1, %c1_i32 : i32
    %10 = arith.extui %9 : i1 to i32
    %c0_i32_8 = arith.constant 0 : i32
    %11 = arith.cmpi ne, %10, %c0_i32_8 : i32
    scf.if %11 {
      %c0_9 = arith.constant 0 : index
      %c0_10 = arith.constant 0 : index
      %12 = vector.load %arg6[%c0_9, %c0_10] : memref<256x128xf32, #tpu.memory_space<vmem>>, vector<256x128xf32>
      %c0_11 = arith.constant 0 : index
      %c0_12 = arith.constant 0 : index
      %13 = vector.load %arg4[%c0_11, %c0_12] : memref<256x128xf32, #tpu.memory_space<vmem>>, vector<256x128xf32>
      %14 = arith.addf %12, %13 : vector<256x128xf32>
      %cst_13 = arith.constant 0.000000e+00 : f32
      %15 = vector.broadcast %cst_13 : f32 to vector<256x128xf32>
      %16 = arith.subf %15, %14 : vector<256x128xf32>
      %17 = math.exp %16 : vector<256x128xf32>
      %cst_14 = arith.constant 1.000000e+00 : f32
      %18 = vector.broadcast %cst_14 : f32 to vector<256x128xf32>
      %19 = arith.addf %18, %17 : vector<256x128xf32>
      %20 = tpu.reciprocal %19 {approx = true} : vector<256x128xf32> -> vector<256x128xf32>
      %21 = arith.mulf %14, %20 : vector<256x128xf32>
      %c0_15 = arith.constant 0 : index
      %c0_16 = arith.constant 0 : index
      %22 = vector.load %arg5[%c0_15, %c0_16] : memref<256x128xf32, #tpu.memory_space<vmem>>, vector<256x128xf32>
      tpu.vector_store %arg5[%c0_15, %c0_16], %21 {strides = array<i32>} : memref<256x128xf32, #tpu.memory_space<vmem>>, vector<256x128xf32>,
    } else {
    }
    return
  }
  func.func @transform_0(%arg0: i32, %arg1: i32) -> (i32, i32) {
    %c0_i32 = arith.constant 0 : i32
    return %arg0, %arg1 : i32, i32
  }
  func.func @transform_1(%arg0: i32, %arg1: i32) -> (i32, i32) {
    %c0_i32 = arith.constant 0 : i32
    %c0_i32_0 = arith.constant 0 : i32
    return %arg1, %c0_i32 : i32, i32
  }
  func.func @transform_2(%arg0: i32, %arg1: i32) -> (i32, i32) {
    %c0_i32 = arith.constant 0 : i32
    %c0_i32_0 = arith.constant 0 : i32
    return %arg0, %c0_i32 : i32, i32
  }
  func.func @transform_3(%arg0: i32, %arg1: i32) -> (i32, i32) {
    %c0_i32 = arith.constant 0 : i32
    %c0_i32_0 = arith.constant 0 : i32
    return %arg0, %c0_i32 : i32, i32
  }
}

module attributes {stable_mosaic.version = 11 : i64} {
  func.func @post_mp_kernel(%arg0: i32, %arg1: memref<256x128xbf16, #tpu.memory_space<vmem>>, %arg2: memref<128x128xbf16, #tpu.memory_space<vmem>>, %arg3: memref<1x128xf32, #tpu.memory_space<vmem>>, %arg4: memref<128x128xbf16, #tpu.memory_space<vmem>>, %arg5: memref<1x128xf32, #tpu.memory_space<vmem>>, %arg6: memref<256x128xf32, #tpu.memory_space<vmem>>) attributes {dimension_semantics = [#tpu.dimension_semantics<parallel>], iteration_bounds = array<i64: 2>, scalar_prefetch = 0 : i64, scratch_operands = 0 : i64, tpu.core_type = #tpu.core_type<tc>, window_params = [{transform_indices = @transform_0, window_bounds = array<i64: 256, 128>}, {pipeline_mode = #tpu.pipeline_mode<synchronous>, transform_indices = @transform_1, window_bounds = array<i64: 128, 128>}, {pipeline_mode = #tpu.pipeline_mode<synchronous>, transform_indices = @transform_2, window_bounds = array<i64: 1, 128>}, {pipeline_mode = #tpu.pipeline_mode<synchronous>, transform_indices = @transform_3, window_bounds = array<i64: 128, 128>}, {pipeline_mode = #tpu.pipeline_mode<synchronous>, transform_indices = @transform_4, window_bounds = array<i64: 1, 128>}, {transform_indices = @transform_5, window_bounds = array<i64: 256, 128>}]} {
    %c0 = arith.constant 0 : index
    %c0_0 = arith.constant 0 : index
    %0 = vector.load %arg1[%c0, %c0_0] : memref<256x128xbf16, #tpu.memory_space<vmem>>, vector<256x128xbf16>
    %c0_1 = arith.constant 0 : index
    %c0_2 = arith.constant 0 : index
    %1 = vector.load %arg2[%c0_1, %c0_2] : memref<128x128xbf16, #tpu.memory_space<vmem>>, vector<128x128xbf16>
    %cst = arith.constant dense<0.000000e+00> : vector<256x128xf32>
    %2 = tpu.matmul %0, %1, %cst {dimension_numbers = #tpu.dot_dimension_numbers<[1], [0], [0], [1], [0, 0, 1, 1], [], []>} : vector<256x128xbf16>, vector<128x128xbf16>, vector<256x128xf32> -> vector<256x128xf32>
    %c0_3 = arith.constant 0 : index
    %c0_4 = arith.constant 0 : index
    %3 = vector.load %arg3[%c0_3, %c0_4] : memref<1x128xf32, #tpu.memory_space<vmem>>, vector<1x128xf32>
    %4 = vector.broadcast %3 : vector<1x128xf32> to vector<256x128xf32>
    %5 = arith.addf %2, %4 : vector<256x128xf32>
    %6 = arith.truncf %5 : vector<256x128xf32> to vector<256x128xbf16>
    %c0_5 = arith.constant 0 : index
    %c0_6 = arith.constant 0 : index
    %7 = vector.load %arg4[%c0_5, %c0_6] : memref<128x128xbf16, #tpu.memory_space<vmem>>, vector<128x128xbf16>
    %cst_7 = arith.constant dense<0.000000e+00> : vector<256x128xf32>
    %8 = tpu.matmul %6, %7, %cst_7 {dimension_numbers = #tpu.dot_dimension_numbers<[1], [0], [0], [1], [0, 0, 1, 1], [], []>} : vector<256x128xbf16>, vector<128x128xbf16>, vector<256x128xf32> -> vector<256x128xf32>
    %c0_8 = arith.constant 0 : index
    %c0_9 = arith.constant 0 : index
    %9 = vector.load %arg5[%c0_8, %c0_9] : memref<1x128xf32, #tpu.memory_space<vmem>>, vector<1x128xf32>
    %10 = vector.broadcast %9 : vector<1x128xf32> to vector<256x128xf32>
    %11 = arith.addf %8, %10 : vector<256x128xf32>
    %12 = tpu.iota {dimensions = array<i32: 1>} : vector<256x128xi32>
    %c8_i32 = arith.constant 8 : i32
    %13 = vector.broadcast %c8_i32 : i32 to vector<256x128xi32>
    %14 = arith.cmpi slt, %12, %13 : vector<256x128xi32>
    %cst_10 = arith.constant 0xFF800000 : f32
    %15 = vector.broadcast %cst_10 : f32 to vector<256x128xf32>
    %16 = arith.select %14, %11, %15 : vector<256x128xi1>, vector<256x128xf32>
    %cst_11 = arith.constant dense<0xFF800000> : vector<256xf32>
    %17 = vector.multi_reduction <maximumf>, %16, %cst_11 [1] : vector<256x128xf32> to vector<256xf32>
    %18 = vector.shape_cast %17 : vector<256xf32> to vector<256x1xf32>
    %19 = vector.broadcast %18 : vector<256x1xf32> to vector<256x128xf32>
    %20 = arith.subf %16, %19 : vector<256x128xf32>
    %21 = math.exp %20 : vector<256x128xf32>
    %cst_12 = arith.constant 0.000000e+00 : f32
    %22 = vector.broadcast %cst_12 : f32 to vector<256x128xf32>
    %23 = arith.select %14, %21, %22 : vector<256x128xi1>, vector<256x128xf32>
    %cst_13 = arith.constant dense<0.000000e+00> : vector<256xf32>
    %24 = vector.multi_reduction <add>, %23, %cst_13 [1] : vector<256x128xf32> to vector<256xf32>
    %25 = vector.shape_cast %24 : vector<256xf32> to vector<256x1xf32>
    %26 = math.log %25 : vector<256x1xf32>
    %27 = arith.addf %18, %26 : vector<256x1xf32>
    %28 = vector.broadcast %27 : vector<256x1xf32> to vector<256x128xf32>
    %29 = arith.subf %16, %28 : vector<256x128xf32>
    %c0_14 = arith.constant 0 : index
    %c0_15 = arith.constant 0 : index
    %30 = vector.load %arg6[%c0_14, %c0_15] : memref<256x128xf32, #tpu.memory_space<vmem>>, vector<256x128xf32>
    tpu.vector_store %arg6[%c0_14, %c0_15], %29 {strides = array<i32>} : memref<256x128xf32, #tpu.memory_space<vmem>>, vector<256x128xf32>,
    return
  }
  func.func @transform_0(%arg0: i32) -> (i32, i32) {
    %c0_i32 = arith.constant 0 : i32
    %c0_i32_0 = arith.constant 0 : i32
    return %arg0, %c0_i32 : i32, i32
  }
  func.func @transform_1(%arg0: i32) -> (i32, i32) {
    %c0_i32 = arith.constant 0 : i32
    %c0_i32_0 = arith.constant 0 : i32
    %c0_i32_1 = arith.constant 0 : i32
    return %c0_i32, %c0_i32_0 : i32, i32
  }
  func.func @transform_2(%arg0: i32) -> (i32, i32) {
    %c0_i32 = arith.constant 0 : i32
    %c0_i32_0 = arith.constant 0 : i32
    %c0_i32_1 = arith.constant 0 : i32
    return %c0_i32, %c0_i32_0 : i32, i32
  }
  func.func @transform_3(%arg0: i32) -> (i32, i32) {
    %c0_i32 = arith.constant 0 : i32
    %c0_i32_0 = arith.constant 0 : i32
    %c0_i32_1 = arith.constant 0 : i32
    return %c0_i32, %c0_i32_0 : i32, i32
  }
  func.func @transform_4(%arg0: i32) -> (i32, i32) {
    %c0_i32 = arith.constant 0 : i32
    %c0_i32_0 = arith.constant 0 : i32
    %c0_i32_1 = arith.constant 0 : i32
    return %c0_i32, %c0_i32_0 : i32, i32
  }
  func.func @transform_5(%arg0: i32) -> (i32, i32) {
    %c0_i32 = arith.constant 0 : i32
    %c0_i32_0 = arith.constant 0 : i32
    return %arg0, %c0_i32 : i32, i32
  }
}

</mosaic_0001>

<llo_original>
// kernel: gnn_stack_forward.5
$region0: #{gnn_stack_forward.5}
  #allocation0 [shape = 'u32[]', space=smem, size = 0x4, offset = 0x4, fixed_abs, tag = 'smem constant byte address 0x4 - core index']
  #allocation1 [shape = 'u32[144,128]{1,0:T(1,128)}', space=vmem, size = 0x12000, scoped, tag = 'internal scratch']
  %s0 = inlined_call_operand.vmem [shape: bf16[512,128], index: 0, kind: input, shape index: {}]
  %s1 = inlined_call_operand.vmem [shape: bf16[128,128], index: 1, kind: input, shape index: {}]
  %s2 = inlined_call_operand.vmem [shape: bf16[128,128], index: 2, kind: input, shape index: {}]
  %s3 = inlined_call_operand.vmem [shape: f32[1,128], index: 3, kind: input, shape index: {}]
  %s4 = inlined_call_operand.vmem [shape: bf16[512,128], index: 4, kind: output, shape index: {0}]
  %s5 = inlined_call_operand.vmem [shape: f32[512,128], index: 5, kind: output, shape index: {1}]
  %6 = xla_tuple %s4, %s5
  %s7 = sld [smem:[#allocation0]]
  $region57: #{gnn_stack_forward.5} parent=0
    _
  %s9 = ssub.s32 1, %s7
  %s10 = scalar_select 0, %s9, %s7
  loop: start=0, step=1, limit=4
  $region2: #{gnn_stack_forward.5} parent=0 // loop_pre_header
    _
  $region3: #{gnn_stack_forward.5} parent=0 // loop_header
    %s12 = sphi 0, %s16
    %p13 = scmp.ge.s32.totalorder %s12, 4
    %s22 = sphi 0, %s24
    %s25 = sphi 0, %s22
    %s26 = sphi 0, %s25
    %s42 = sphi 0, %s26
    %s46 = sphi 0, %s46
    %s48 = sphi 0, %s46
    %s49 = sphi 0, %s48
    %s63 = sphi 0, %s49
    %s67 = sphi 0, %s67
    %s69 = sphi 0, %s67
    %s70 = sphi 0, %s69
    %s84 = sphi 0, %s70
    %s88 = sphi 0, %s88
    %s90 = sphi 0, %s88
    %s91 = sphi 0, %s90
    %s105 = sphi 0, %s91
    %s111 = sphi 0, %s113
    %s114 = sphi 0, %s111
    %s115 = sphi 0, %s114
    %s131 = sphi 0, %s115
    %s137 = sphi 0, %s139
    %s140 = sphi 0, %s137
    %s141 = sphi 0, %s140
    %s157 = sphi 0, %s141
  $region4: #{gnn_stack_forward.5} parent=0 // loop_header_branch
    %15 = sbr.rel (%p13) target = $region8
  $region5: #{gnn_stack_forward.5} parent=0 // loop_body
    %s17 = ssub.s32 %s12, 1
    %s18 = ssub.s32 %s12, 2
    %s19 = sadd.s32 %s12, 1
    %s20 = ssub.s32 %s12, %s19
    %p21 = scmp.eq.s32.totalorder %s20, 0
    %s23 = sadd.s32 %s22, 1
    %s24 = scalar_select %p21, %s22, %s23
    %p27 = pneg %p21
    %p28 = scmp.eq.s32.totalorder %s12, 1
    %p29 = por %p27, %p28
    %p30 = scmp.ne.s32.totalorder %s22, %s25
    %p31 = scmp.eq.s32.totalorder %s12, 0
    %p32 = por %p30, %p31
    %p33 = scmp.ne.s32.totalorder %s22, %s25
    %p34 = scmp.eq.s32.totalorder %s17, 1
    %p35 = por %p33, %p34
    %p36 = scmp.ne.s32.totalorder %s25, %s26
    %p37 = scmp.eq.s32.totalorder %s17, 0
    %p38 = por %p36, %p37
    %p39 = scmp.ne.s32.totalorder %s25, %s26
    %p40 = scmp.eq.s32.totalorder %s18, 1
    %p41 = por %p39, %p40
    %p43 = scmp.ne.s32.totalorder %s26, %s42
    %p44 = scmp.eq.s32.totalorder %s18, 0
    %p45 = por %p43, %p44
    %s47 = sadd.s32 %s46, 1
    %p50 = scmp.eq.s32.totalorder %s12, 1
    %p51 = scmp.ne.s32.totalorder %s46, %s48
    %p52 = scmp.eq.s32.totalorder %s12, 0
    %p53 = por %p51, %p52
    %p54 = scmp.ne.s32.totalorder %s46, %s48
    %p55 = scmp.eq.s32.totalorder %s17, 1
    %p56 = por %p54, %p55
    %p57 = scmp.ne.s32.totalorder %s48, %s49
    %p58 = scmp.eq.s32.totalorder %s17, 0
    %p59 = por %p57, %p58
    %p60 = scmp.ne.s32.totalorder %s48, %s49
    %p61 = scmp.eq.s32.totalorder %s18, 1
    %p62 = por %p60, %p61
    %p64 = scmp.ne.s32.totalorder %s49, %s63
    %p65 = scmp.eq.s32.totalorder %s18, 0
    %p66 = por %p64, %p65
    %s68 = sadd.s32 %s67, 1
    %p71 = scmp.eq.s32.totalorder %s12, 1
    %p72 = scmp.ne.s32.totalorder %s67, %s69
    %p73 = scmp.eq.s32.totalorder %s12, 0
    %p74 = por %p72, %p73
    %p75 = scmp.ne.s32.totalorder %s67, %s69
    %p76 = scmp.eq.s32.totalorder %s17, 1
    %p77 = por %p75, %p76
    %p78 = scmp.ne.s32.totalorder %s69, %s70
    %p79 = scmp.eq.s32.totalorder %s17, 0
    %p80 = por %p78, %p79
    %p81 = scmp.ne.s32.totalorder %s69, %s70
    %p82 = scmp.eq.s32.totalorder %s18, 1
    %p83 = por %p81, %p82
    %p85 = scmp.ne.s32.totalorder %s70, %s84
    %p86 = scmp.eq.s32.totalorder %s18, 0
    %p87 = por %p85, %p86
    %s89 = sadd.s32 %s88, 1
    %p92 = scmp.eq.s32.totalorder %s12, 1
    %p93 = scmp.ne.s32.totalorder %s88, %s90
    %p94 = scmp.eq.s32.totalorder %s12, 0
    %p95 = por %p93, %p94
    %p96 = scmp.ne.s32.totalorder %s88, %s90
    %p97 = scmp.eq.s32.totalorder %s17, 1
    %p98 = por %p96, %p97
    %p99 = scmp.ne.s32.totalorder %s90, %s91
    %p100 = scmp.eq.s32.totalorder %s17, 0
    %p101 = por %p99, %p100
    %p102 = scmp.ne.s32.totalorder %s90, %s91
    %p103 = scmp.eq.s32.totalorder %s18, 1
    %p104 = por %p102, %p103
    %p106 = scmp.ne.s32.totalorder %s91, %s105
    %p107 = scmp.eq.s32.totalorder %s18, 0
    %p108 = por %p106, %p107
    %s109 = ssub.s32 %s12, %s19
    %p110 = scmp.eq.s32.totalorder %s109, 0
    %s112 = sadd.s32 %s111, 1
    %s113 = scalar_select %p110, %s111, %s112
    %p116 = pneg %p110
    %p117 = scmp.eq.s32.totalorder %s12, 1
    %p118 = por %p116, %p117
    %p119 = scmp.ne.s32.totalorder %s111, %s114
    %p120 = scmp.eq.s32.totalorder %s12, 0
    %p121 = por %p119, %p120
    %p122 = scmp.ne.s32.totalorder %s111, %s114
    %p123 = scmp.eq.s32.totalorder %s17, 1
    %p124 = por %p122, %p123
    %p125 = scmp.ne.s32.totalorder %s114, %s115
    %p126 = scmp.eq.s32.totalorder %s17, 0
    %p127 = por %p125, %p126
    %p128 = scmp.ne.s32.totalorder %s114, %s115
    %p129 = scmp.eq.s32.totalorder %s18, 1
    %p130 = por %p128, %p129
    %p132 = scmp.ne.s32.totalorder %s115, %s131
    %p133 = scmp.eq.s32.totalorder %s18, 0
    %p134 = por %p132, %p133
    %s135 = ssub.s32 %s12, %s19
    %p136 = scmp.eq.s32.totalorder %s135, 0
    %s138 = sadd.s32 %s137, 1
    %s139 = scalar_select %p136, %s137, %s138
    %p142 = pneg %p136
    %p143 = scmp.eq.s32.totalorder %s12, 1
    %p144 = por %p142, %p143
    %p145 = scmp.ne.s32.totalorder %s137, %s140
    %p146 = scmp.eq.s32.totalorder %s12, 0
    %p147 = por %p145, %p146
    %p148 = scmp.ne.s32.totalorder %s137, %s140
    %p149 = scmp.eq.s32.totalorder %s17, 1
    %p150 = por %p148, %p149
    %p151 = scmp.ne.s32.totalorder %s140, %s141
    %p152 = scmp.eq.s32.totalorder %s17, 0
    %p153 = por %p151, %p152
    %p154 = scmp.ne.s32.totalorder %s140, %s141
    %p155 = scmp.eq.s32.totalorder %s18, 1
    %p156 = por %p154, %p155
    %p158 = scmp.ne.s32.totalorder %s141, %s157
    %p159 = scmp.eq.s32.totalorder %s18, 0
    %p160 = por %p158, %p159
    %p161 = scmp.le.s32.totalorder 1, %s12
    %p162 = scmp.lt.s32.totalorder %s12, 3
    %p163 = pnand %p161, %p162
    %p164 = pneg %p163
    // Predicated region
    $region9: #{gnn_stack_forward.5} parent=5 // pred_check
      _
    $region10: #{gnn_stack_forward.5} parent=5 // pred_check_branch
      %166 = sbr.rel (%p163) target = $region12
    $region11: #{gnn_stack_forward.5} parent=5 // pred_region
      %s167 = ssub.s32 %s12, 1
      // Predicated region
      $region13: #{gnn_stack_forward.5} parent=11 // pred_check
        %p168 = pneg %p59
      $region14: #{gnn_stack_forward.5} parent=11 // pred_check_branch
        %170 = sbr.rel (%p168) target = $region16
      $region15: #{gnn_stack_forward.5} parent=11 // pred_region
        _
      $region16: #{gnn_stack_forward.5} parent=11 // pred_fallthru
        _
      // Predicated region
      $region17: #{gnn_stack_forward.5} parent=11 // pred_check
        %p171 = pneg %p80
      $region18: #{gnn_stack_forward.5} parent=11 // pred_check_branch
        %173 = sbr.rel (%p171) target = $region20
      $region19: #{gnn_stack_forward.5} parent=11 // pred_region
        _
      $region20: #{gnn_stack_forward.5} parent=11 // pred_fallthru
        _
      // Predicated region
      $region21: #{gnn_stack_forward.5} parent=11 // pred_check
        %p174 = pneg %p101
      $region22: #{gnn_stack_forward.5} parent=11 // pred_check_branch
        %176 = sbr.rel (%p174) target = $region24
      $region23: #{gnn_stack_forward.5} parent=11 // pred_region
        _
      $region24: #{gnn_stack_forward.5} parent=11 // pred_fallthru
        _
    $region12: #{gnn_stack_forward.5} parent=5 // pred_fallthru
      _
    %p177 = scmp.lt.s32.totalorder %s12, 2
    // Predicated region
    $region25: #{gnn_stack_forward.5} parent=5 // pred_check
      %p178 = pneg %p177
    $region26: #{gnn_stack_forward.5} parent=5 // pred_check_branch
      %180 = sbr.rel (%p178) target = $region28
    $region27: #{gnn_stack_forward.5} parent=5 // pred_region
      // Predicated region
      $region29: #{gnn_stack_forward.5} parent=27 // pred_check
        %p181 = pneg %p32
      $region30: #{gnn_stack_forward.5} parent=27 // pred_check_branch
        %183 = sbr.rel (%p181) target = $region32
      $region31: #{gnn_stack_forward.5} parent=27 // pred_region
        %s184 = smul.u32 32, %s12
        %p185 = scmp.lt.s32.totalorder %s184, 63
        %s186 = scalar_select %p185, %s184, 63
        %s187 = smul.addr %s186, 4
        %s188 = scalar_lea.vmem %s0, %s187
        %s189 = smul.u32 32, %s12
      $region32: #{gnn_stack_forward.5} parent=27 // pred_fallthru
        _
    $region28: #{gnn_stack_forward.5} parent=5 // pred_fallthru
      _
    %p190 = scmp.le.s32.totalorder 1, %s12
    %p191 = scmp.lt.s32.totalorder %s12, 3
    %p192 = pnand %p190, %p191
    %p193 = pneg %p192
    // Predicated region
    $region33: #{gnn_stack_forward.5} parent=5 // pred_check
      _
    $region34: #{gnn_stack_forward.5} parent=5 // pred_check_branch
      %195 = sbr.rel (%p192) target = $region36
    $region35: #{gnn_stack_forward.5} parent=5 // pred_region
      %s196 = ssub.s32 %s12, 1
      %s197 = smul.u32 32, %s17
      %p198 = scmp.lt.s32.totalorder %s197, 63
      %s199 = scalar_select %p198, %s197, 63
      %s200 = smul.addr %s199, 4
      %s201 = scalar_lea.vmem %s0, %s200
      %p202 = pneg %p38
      %p203 = pneg %p35
      %p204 = pneg %p59
      %p205 = pneg %p56
      %p206 = pneg %p80
      %p207 = pneg %p77
      %p208 = pneg %p101
      %p209 = pneg %p98
      %p210 = pneg %p127
      %p211 = pneg %p124
      %s212 = smul.u32 32, %s17
      %p213 = scmp.lt.s32.totalorder %s212, 63
      %s214 = scalar_select %p213, %s212, 63
      %s215 = smul.addr %s214, 4
      %s216 = scalar_lea.vmem %s4, %s215
      %p217 = pneg %p153
      %p218 = pneg %p150
      %s219 = smul.u32 32, %s17
      %p220 = scmp.lt.s32.totalorder %s219, 63
      %s221 = scalar_select %p220, %s219, 63
      %s222 = smul.addr %s221, 8
      %s223 = scalar_lea.vmem %s5, %s222
      %s224 = smul.u32 32, %s17
      %p225 = scmp.lt.s32.totalorder %s224, 63
      %s226 = scalar_select %p225, %s224, 63
      %s227 = smul.addr %s226, 4
      %s228 = scalar_lea.vmem %s0, %s227
      %s229 = smul.u32 32, %s17
      %s230 = smul.u32 32, %s17
      %p231 = scmp.lt.s32.totalorder %s230, 63
      %s232 = scalar_select %p231, %s230, 63
      %s233 = smul.addr %s232, 4
      %s234 = scalar_lea.vmem %s4, %s233
      %s235 = smul.u32 32, %s17
      %s236 = smul.u32 32, %s17
      %p237 = scmp.lt.s32.totalorder %s236, 63
      %s238 = scalar_select %p237, %s236, 63
      %s239 = smul.addr %s238, 8
      %s240 = scalar_lea.vmem %s5, %s239
      %s241 = smul.u32 32, %s17
      %v243 = vld [vmem:[%s228] sm:$0xf]
      %v244 = vld [vmem:[%s228 + $0x4] sm:$0xf]
      %v245 = vld [vmem:[%s228 + $0x8] sm:$0xf]
      %v246 = vld [vmem:[%s228 + $0xc] sm:$0xf]
      %v247 = vld [vmem:[%s228 + $0x10] sm:$0xf]
      %v248 = vld [vmem:[%s228 + $0x14] sm:$0xf]
      %v249 = vld [vmem:[%s228 + $0x18] sm:$0xf]
      %v250 = vld [vmem:[%s228 + $0x1c] sm:$0xf]
      %v251 = vld [vmem:[%s228 + $0x20] sm:$0xf]
      %v252 = vld [vmem:[%s228 + $0x24] sm:$0xf]
      %v253 = vld [vmem:[%s228 + $0x28] sm:$0xf]
      %v254 = vld [vmem:[%s228 + $0x2c] sm:$0xf]
      %v255 = vld [vmem:[%s228 + $0x30] sm:$0xf]
      %v256 = vld [vmem:[%s228 + $0x34] sm:$0xf]
      %v257 = vld [vmem:[%s228 + $0x38] sm:$0xf]
      %v258 = vld [vmem:[%s228 + $0x3c] sm:$0xf]
      %v259 = vld [vmem:[%s228 + $0x40] sm:$0xf]
      %v260 = vld [vmem:[%s228 + $0x44] sm:$0xf]
      %v261 = vld [vmem:[%s228 + $0x48] sm:$0xf]
      %v262 = vld [vmem:[%s228 + $0x4c] sm:$0xf]
      %v263 = vld [vmem:[%s228 + $0x50] sm:$0xf]
      %v264 = vld [vmem:[%s228 + $0x54] sm:$0xf]
      %v265 = vld [vmem:[%s228 + $0x58] sm:$0xf]
      %v266 = vld [vmem:[%s228 + $0x5c] sm:$0xf]
      %v267 = vld [vmem:[%s228 + $0x60] sm:$0xf]
      %v268 = vld [vmem:[%s228 + $0x64] sm:$0xf]
      %v269 = vld [vmem:[%s228 + $0x68] sm:$0xf]
      %v270 = vld [vmem:[%s228 + $0x6c] sm:$0xf]
      %v271 = vld [vmem:[%s228 + $0x70] sm:$0xf]
      %v272 = vld [vmem:[%s228 + $0x74] sm:$0xf]
      %v273 = vld [vmem:[%s228 + $0x78] sm:$0xf]
      %v274 = vld [vmem:[%s228 + $0x7c] sm:$0xf]
      %v275 = vld [vmem:[%s1] sm:$0xf]
      %v276 = vld [vmem:[%s1 + $0x4] sm:$0xf]
      %v277 = vld [vmem:[%s1 + $0x8] sm:$0xf]
      %v278 = vld [vmem:[%s1 + $0xc] sm:$0xf]
      %v279 = vld [vmem:[%s1 + $0x10] sm:$0xf]
      %v280 = vld [vmem:[%s1 + $0x14] sm:$0xf]
      %v281 = vld [vmem:[%s1 + $0x18] sm:$0xf]
      %v282 = vld [vmem:[%s1 + $0x1c] sm:$0xf]
      %v283 = vld [vmem:[%s1 + $0x20] sm:$0xf]
      %v284 = vld [vmem:[%s1 + $0x24] sm:$0xf]
      %v285 = vld [vmem:[%s1 + $0x28] sm:$0xf]
      %v286 = vld [vmem:[%s1 + $0x2c] sm:$0xf]
      %v287 = vld [vmem:[%s1 + $0x30] sm:$0xf]
      %v288 = vld [vmem:[%s1 + $0x34] sm:$0xf]
      %v289 = vld [vmem:[%s1 + $0x38] sm:$0xf]
      %v290 = vld [vmem:[%s1 + $0x3c] sm:$0xf]
      %v323 = vunpack.c.l.b16 %v243
      %v324 = vunpack.c.l.b16 %v244
      %v325 = vunpack.c.l.b16 %v245
      %v326 = vunpack.c.l.b16 %v246
      %v327 = vunpack.c.l.b16 %v247
      %v328 = vunpack.c.l.b16 %v248
      %v329 = vunpack.c.l.b16 %v249
      %v330 = vunpack.c.l.b16 %v250
      %v331 = vunpack.c.l.b16 %v251
      %v332 = vunpack.c.l.b16 %v252
      %v333 = vunpack.c.l.b16 %v253
      %v334 = vunpack.c.l.b16 %v254
      %v335 = vunpack.c.l.b16 %v255
      %v336 = vunpack.c.l.b16 %v256
      %v337 = vunpack.c.l.b16 %v257
      %v338 = vunpack.c.l.b16 %v258
      %v339 = vunpack.c.l.b16 %v259
      %v340 = vunpack.c.l.b16 %v260
      %v341 = vunpack.c.l.b16 %v261
      %v342 = vunpack.c.l.b16 %v262
      %v343 = vunpack.c.l.b16 %v263
      %v344 = vunpack.c.l.b16 %v264
      %v345 = vunpack.c.l.b16 %v265
      %v346 = vunpack.c.l.b16 %v266
      %v347 = vunpack.c.l.b16 %v267
      %v348 = vunpack.c.l.b16 %v268
      %v349 = vunpack.c.l.b16 %v269
      %v350 = vunpack.c.l.b16 %v270
      %v351 = vunpack.c.l.b16 %v271
      %v352 = vunpack.c.l.b16 %v272
      %v353 = vunpack.c.l.b16 %v273
      %v354 = vunpack.c.l.b16 %v274
      %v355 = vpack.c.b16 %v324, %v323
      %v356 = vpack.c.b16 %v326, %v325
      %v357 = vpack.c.b16 %v328, %v327
      %v358 = vpack.c.b16 %v330, %v329
      %v359 = vpack.c.b16 %v332, %v331
      %v360 = vpack.c.b16 %v334, %v333
      %v361 = vpack.c.b16 %v336, %v335
      %v362 = vpack.c.b16 %v338, %v337
      %v363 = vpack.c.b16 %v340, %v339
      %v364 = vpack.c.b16 %v342, %v341
      %v365 = vpack.c.b16 %v344, %v343
      %v366 = vpack.c.b16 %v346, %v345
      %v367 = vpack.c.b16 %v348, %v347
      %v368 = vpack.c.b16 %v350, %v349
      %v369 = vpack.c.b16 %v352, %v351
      %v370 = vpack.c.b16 %v354, %v353
      %v403 = vunpack.c.l.b16 %v275
      %v404 = vunpack.c.l.b16 %v276
      %v405 = vunpack.c.l.b16 %v277
      %v406 = vunpack.c.l.b16 %v278
      %v407 = vunpack.c.l.b16 %v279
      %v408 = vunpack.c.l.b16 %v280
      %v409 = vunpack.c.l.b16 %v281
      %v410 = vunpack.c.l.b16 %v282
      %v411 = vunpack.c.l.b16 %v283
      %v412 = vunpack.c.l.b16 %v284
      %v413 = vunpack.c.l.b16 %v285
      %v414 = vunpack.c.l.b16 %v286
      %v415 = vunpack.c.l.b16 %v287
      %v416 = vunpack.c.l.b16 %v288
      %v417 = vunpack.c.l.b16 %v289
      %v418 = vunpack.c.l.b16 %v290
      %v419 = vpack.c.b16 %v404, %v403
      %v420 = vpack.c.b16 %v406, %v405
      %v421 = vpack.c.b16 %v408, %v407
      %v422 = vpack.c.b16 %v410, %v409
      %v423 = vpack.c.b16 %v412, %v411
      %v424 = vpack.c.b16 %v414, %v413
      %v425 = vpack.c.b16 %v416, %v415
      %v426 = vpack.c.b16 %v418, %v417
      %435 = vmatprep.subr.bf16.mxu0 0
      %436 = vmatpush1.bf16.msra.mxu0 %v419
      %437 = vmatprep.subr.bf16.mxu0 0
      %438 = vmatpush1.bf16.msra.mxu0 %v420
      %439 = vmatprep.subr.bf16.mxu0 0
      %440 = vmatpush1.bf16.msra.mxu0 %v421
      %441 = vmatprep.subr.bf16.mxu0 0
      %442 = vmatpush1.bf16.msra.mxu0 %v422
      %443 = vmatprep.subr.bf16.mxu0 0
      %444 = vmatpush1.bf16.msra.mxu0 %v423
      %445 = vmatprep.subr.bf16.mxu0 0
      %446 = vmatpush1.bf16.msra.mxu0 %v424
      %447 = vmatprep.subr.bf16.mxu0 0
      %448 = vmatpush1.bf16.msra.mxu0 %v425
      %449 = vmatprep.subr.bf16.mxu0 0
      %450 = vmatpush1.bf16.msra.mxu0 %v426
      %451 = vmatprep.subr.bf16.mxu0 0
      %452 = vmatpush1.bf16.msra.mxu0 0
      %453 = vmatprep.subr.bf16.mxu0 0
      %454 = vmatpush1.bf16.msra.mxu0 0
      %455 = vmatprep.subr.bf16.mxu0 0
      %456 = vmatpush1.bf16.msra.mxu0 0
      %457 = vmatprep.subr.bf16.mxu0 0
      %458 = vmatpush1.bf16.msra.mxu0 0
      %459 = vmatprep.subr.bf16.mxu0 0
      %460 = vmatpush1.bf16.msra.mxu0 0
      %461 = vmatprep.subr.bf16.mxu0 0
      %462 = vmatpush1.bf16.msra.mxu0 0
      %463 = vmatprep.subr.bf16.mxu0 0
      %464 = vmatpush1.bf16.msra.mxu0 0
      %465 = vmatprep.subr.bf16.mxu0 0
      %466 = vmatpush1.bf16.msra.mxu0 0
      %467 = vmatprep.mubr.bf16.mxu0 0
      %468 = vmatmul.mubr.bf16.gmra.mrb[0].mxu0 %v355
      %v469 = vpop.f32.mrb[0].mxu0
      %v470 = vadd.f32 0.0, %v469
      %v471 = vpop.f32.mrb[0].mxu0
      %v472 = vpop.f32.mrb[0].mxu0
      %v473 = vadd.f32 0.0, %v472
      %v474 = vpop.f32.mrb[0].mxu0
      %475 = vmatprep.mubr.bf16.mxu0 0
      %476 = vmatmul.mubr.bf16.gmra.mrb[0].mxu0 %v356
      %v477 = vpop.f32.mrb[0].mxu0
      %v478 = vadd.f32 0.0, %v477
      %v479 = vpop.f32.mrb[0].mxu0
      %v480 = vpop.f32.mrb[0].mxu0
      %v481 = vadd.f32 0.0, %v480
      %v482 = vpop.f32.mrb[0].mxu0
      %483 = vmatprep.mubr.bf16.mxu0 0
      %484 = vmatmul.mubr.bf16.gmra.mrb[0].mxu0 %v357
      %v485 = vpop.f32.mrb[0].mxu0
      %v486 = vadd.f32 0.0, %v485
      %v487 = vpop.f32.mrb[0].mxu0
      %v488 = vpop.f32.mrb[0].mxu0
      %v489 = vadd.f32 0.0, %v488
      %v490 = vpop.f32.mrb[0].mxu0
      %491 = vmatprep.mubr.bf16.mxu0 0
      %492 = vmatmul.mubr.bf16.gmra.mrb[0].mxu0 %v358
      %v493 = vpop.f32.mrb[0].mxu0
      %v494 = vadd.f32 0.0, %v493
      %v495 = vpop.f32.mrb[0].mxu0
      %v496 = vpop.f32.mrb[0].mxu0
      %v497 = vadd.f32 0.0, %v496
      %v498 = vpop.f32.mrb[0].mxu0
      %499 = vmatprep.mubr.bf16.mxu0 0
      %500 = vmatmul.mubr.bf16.gmra.mrb[0].mxu0 %v359
      %v501 = vpop.f32.mrb[0].mxu0
      %v502 = vadd.f32 0.0, %v501
      %v503 = vpop.f32.mrb[0].mxu0
      %v504 = vpop.f32.mrb[0].mxu0
      %v505 = vadd.f32 0.0, %v504
      %v506 = vpop.f32.mrb[0].mxu0
      %507 = vmatprep.mubr.bf16.mxu0 0
      %508 = vmatmul.mubr.bf16.gmra.mrb[0].mxu0 %v360
      %v509 = vpop.f32.mrb[0].mxu0
      %v510 = vadd.f32 0.0, %v509
      %v511 = vpop.f32.mrb[0].mxu0
      %v512 = vpop.f32.mrb[0].mxu0
      %v513 = vadd.f32 0.0, %v512
      %v514 = vpop.f32.mrb[0].mxu0
      %515 = vmatprep.mubr.bf16.mxu0 0
      %516 = vmatmul.mubr.bf16.gmra.mrb[0].mxu0 %v361
      %v517 = vpop.f32.mrb[0].mxu0
      %v518 = vadd.f32 0.0, %v517
      %v519 = vpop.f32.mrb[0].mxu0
      %v520 = vpop.f32.mrb[0].mxu0
      %v521 = vadd.f32 0.0, %v520
      %v522 = vpop.f32.mrb[0].mxu0
      %523 = vmatprep.mubr.bf16.mxu0 0
      %524 = vmatmul.mubr.bf16.gmra.mrb[0].mxu0 %v362
      %v525 = vpop.f32.mrb[0].mxu0
      %v526 = vadd.f32 0.0, %v525
      %v527 = vpop.f32.mrb[0].mxu0
      %v528 = vpop.f32.mrb[0].mxu0
      %v529 = vadd.f32 0.0, %v528
      %v530 = vpop.f32.mrb[0].mxu0
      %531 = vmatprep.mubr.bf16.mxu0 0
      %532 = vmatmul.mubr.bf16.gmra.mrb[0].mxu0 %v363
      %v533 = vpop.f32.mrb[0].mxu0
      %v534 = vadd.f32 0.0, %v533
      %v535 = vpop.f32.mrb[0].mxu0
      %v536 = vpop.f32.mrb[0].mxu0
      %v537 = vadd.f32 0.0, %v536
      %v538 = vpop.f32.mrb[0].mxu0
      %539 = vmatprep.mubr.bf16.mxu0 0
      %540 = vmatmul.mubr.bf16.gmra.mrb[0].mxu0 %v364
      %v541 = vpop.f32.mrb[0].mxu0
      %v542 = vadd.f32 0.0, %v541
      %v543 = vpop.f32.mrb[0].mxu0
      %v544 = vpop.f32.mrb[0].mxu0
      %v545 = vadd.f32 0.0, %v544
      %v546 = vpop.f32.mrb[0].mxu0
      %547 = vmatprep.mubr.bf16.mxu0 0
      %548 = vmatmul.mubr.bf16.gmra.mrb[0].mxu0 %v365
      %v549 = vpop.f32.mrb[0].mxu0
      %v550 = vadd.f32 0.0, %v549
      %v551 = vpop.f32.mrb[0].mxu0
      %v552 = vpop.f32.mrb[0].mxu0
      %v553 = vadd.f32 0.0, %v552
      %v554 = vpop.f32.mrb[0].mxu0
      %555 = vmatprep.mubr.bf16.mxu0 0
      %556 = vmatmul.mubr.bf16.gmra.mrb[0].mxu0 %v366
      %v557 = vpop.f32.mrb[0].mxu0
      %v558 = vadd.f32 0.0, %v557
      %v559 = vpop.f32.mrb[0].mxu0
      %v560 = vpop.f32.mrb[0].mxu0
      %v561 = vadd.f32 0.0, %v560
      %v562 = vpop.f32.mrb[0].mxu0
      %563 = vmatprep.mubr.bf16.mxu0 0
      %564 = vmatmul.mubr.bf16.gmra.mrb[0].mxu0 %v367
      %v565 = vpop.f32.mrb[0].mxu0
      %v566 = vadd.f32 0.0, %v565
      %v567 = vpop.f32.mrb[0].mxu0
      %v568 = vpop.f32.mrb[0].mxu0
      %v569 = vadd.f32 0.0, %v568
      %v570 = vpop.f32.mrb[0].mxu0
      %571 = vmatprep.mubr.bf16.mxu0 0
      %572 = vmatmul.mubr.bf16.gmra.mrb[0].mxu0 %v368
      %v573 = vpop.f32.mrb[0].mxu0
      %v574 = vadd.f32 0.0, %v573
      %v575 = vpop.f32.mrb[0].mxu0
      %v576 = vpop.f32.mrb[0].mxu0
      %v577 = vadd.f32 0.0, %v576
      %v578 = vpop.f32.mrb[0].mxu0
      %579 = vmatprep.mubr.bf16.mxu0 0
      %580 = vmatmul.mubr.bf16.gmra.mrb[0].mxu0 %v369
      %v581 = vpop.f32.mrb[0].mxu0
      %v582 = vadd.f32 0.0, %v581
      %v583 = vpop.f32.mrb[0].mxu0
      %v584 = vpop.f32.mrb[0].mxu0
      %v585 = vadd.f32 0.0, %v584
      %v586 = vpop.f32.mrb[0].mxu0
      %587 = vmatprep.mubr.bf16.mxu0 0
      %588 = vmatmul.mubr.bf16.gmra.mrb[0].mxu0 %v370
      %v589 = vpop.f32.mrb[0].mxu0
      %v590 = vadd.f32 0.0, %v589
      %v591 = vpop.f32.mrb[0].mxu0
      %v592 = vpop.f32.mrb[0].mxu0
      %v593 = vadd.f32 0.0, %v592
      %v594 = vpop.f32.mrb[0].mxu0
      %595 = vdwg.mxu0
      %v596 = vpack.c.bf16 %v473, %v470
      %v597 = vpack.c.bf16 %v481, %v478
      %v598 = vpack.c.bf16 %v489, %v486
      %v599 = vpack.c.bf16 %v497, %v494
      %v600 = vpack.c.bf16 %v505, %v502
      %v601 = vpack.c.bf16 %v513, %v510
      %v602 = vpack.c.bf16 %v521, %v518
      %v603 = vpack.c.bf16 %v529, %v526
      %v604 = vpack.c.bf16 %v537, %v534
      %v605 = vpack.c.bf16 %v545, %v542
      %v606 = vpack.c.bf16 %v553, %v550
      %v607 = vpack.c.bf16 %v561, %v558
      %v608 = vpack.c.bf16 %v569, %v566
      %v609 = vpack.c.bf16 %v577, %v574
      %v610 = vpack.c.bf16 %v585, %v582
      %v611 = vpack.c.bf16 %v593, %v590
      %v628 = vunpack.c.l.b16 %v596
      %v629 = vunpack.c.h.b16 %v596
      %v630 = vunpack.c.l.b16 %v597
      %v631 = vunpack.c.h.b16 %v597
      %v632 = vunpack.c.l.b16 %v598
      %v633 = vunpack.c.h.b16 %v598
      %v634 = vunpack.c.l.b16 %v599
      %v635 = vunpack.c.h.b16 %v599
      %v636 = vunpack.c.l.b16 %v600
      %v637 = vunpack.c.h.b16 %v600
      %v638 = vunpack.c.l.b16 %v601
      %v639 = vunpack.c.h.b16 %v601
      %v640 = vunpack.c.l.b16 %v602
      %v641 = vunpack.c.h.b16 %v602
      %v642 = vunpack.c.l.b16 %v603
      %v643 = vunpack.c.h.b16 %v603
      %v644 = vunpack.c.l.b16 %v604
      %v645 = vunpack.c.h.b16 %v604
      %v646 = vunpack.c.l.b16 %v605
      %v647 = vunpack.c.h.b16 %v605
      %v648 = vunpack.c.l.b16 %v606
      %v649 = vunpack.c.h.b16 %v606
      %v650 = vunpack.c.l.b16 %v607
      %v651 = vunpack.c.h.b16 %v607
      %v652 = vunpack.c.l.b16 %v608
      %v653 = vunpack.c.h.b16 %v608
      %v654 = vunpack.c.l.b16 %v609
      %v655 = vunpack.c.h.b16 %v609
      %v656 = vunpack.c.l.b16 %v610
      %v657 = vunpack.c.h.b16 %v610
      %v658 = vunpack.c.l.b16 %v611
      %v659 = vunpack.c.h.b16 %v611
      %v660 = vpack.c.b16 %v628, %v628
      %v661 = vpack.c.b16 %v629, %v629
      %v662 = vpack.c.b16 %v630, %v630
      %v663 = vpack.c.b16 %v631, %v631
      %v664 = vpack.c.b16 %v632, %v632
      %v665 = vpack.c.b16 %v633, %v633
      %v666 = vpack.c.b16 %v634, %v634
      %v667 = vpack.c.b16 %v635, %v635
      %v668 = vpack.c.b16 %v636, %v636
      %v669 = vpack.c.b16 %v637, %v637
      %v670 = vpack.c.b16 %v638, %v638
      %v671 = vpack.c.b16 %v639, %v639
      %v672 = vpack.c.b16 %v640, %v640
      %v673 = vpack.c.b16 %v641, %v641
      %v674 = vpack.c.b16 %v642, %v642
      %v675 = vpack.c.b16 %v643, %v643
      %v676 = vpack.c.b16 %v644, %v644
      %v677 = vpack.c.b16 %v645, %v645
      %v678 = vpack.c.b16 %v646, %v646
      %v679 = vpack.c.b16 %v647, %v647
      %v680 = vpack.c.b16 %v648, %v648
      %v681 = vpack.c.b16 %v649, %v649
      %v682 = vpack.c.b16 %v650, %v650
      %v683 = vpack.c.b16 %v651, %v651
      %v684 = vpack.c.b16 %v652, %v652
      %v685 = vpack.c.b16 %v653, %v653
      %v686 = vpack.c.b16 %v654, %v654
      %v687 = vpack.c.b16 %v655, %v655
      %v688 = vpack.c.b16 %v656, %v656
      %v689 = vpack.c.b16 %v657, %v657
      %v690 = vpack.c.b16 %v658, %v658
      %v691 = vpack.c.b16 %v659, %v659
      %724 = vst [vmem:[%s234] sm:$0xf] %v660
      %725 = vst [vmem:[%s234 + $0x4] sm:$0xf] %v661
      %726 = vst [vmem:[%s234 + $0x8] sm:$0xf] %v662
      %727 = vst [vmem:[%s234 + $0xc] sm:$0xf] %v663
      %728 = vst [vmem:[%s234 + $0x10] sm:$0xf] %v664
      %729 = vst [vmem:[%s234 + $0x14] sm:$0xf] %v665
      %730 = vst [vmem:[%s234 + $0x18] sm:$0xf] %v666
      %731 = vst [vmem:[%s234 + $0x1c] sm:$0xf] %v667
      %732 = vst [vmem:[%s234 + $0x20] sm:$0xf] %v668
      %733 = vst [vmem:[%s234 + $0x24] sm:$0xf] %v669
      %734 = vst [vmem:[%s234 + $0x28] sm:$0xf] %v670
      %735 = vst [vmem:[%s234 + $0x2c] sm:$0xf] %v671
      %736 = vst [vmem:[%s234 + $0x30] sm:$0xf] %v672
      %737 = vst [vmem:[%s234 + $0x34] sm:$0xf] %v673
      %738 = vst [vmem:[%s234 + $0x38] sm:$0xf] %v674
      %739 = vst [vmem:[%s234 + $0x3c] sm:$0xf] %v675
      %740 = vst [vmem:[%s234 + $0x40] sm:$0xf] %v676
      %741 = vst [vmem:[%s234 + $0x44] sm:$0xf] %v677
      %742 = vst [vmem:[%s234 + $0x48] sm:$0xf] %v678
      %743 = vst [vmem:[%s234 + $0x4c] sm:$0xf] %v679
      %744 = vst [vmem:[%s234 + $0x50] sm:$0xf] %v680
      %745 = vst [vmem:[%s234 + $0x54] sm:$0xf] %v681
      %746 = vst [vmem:[%s234 + $0x58] sm:$0xf] %v682
      %747 = vst [vmem:[%s234 + $0x5c] sm:$0xf] %v683
      %748 = vst [vmem:[%s234 + $0x60] sm:$0xf] %v684
      %749 = vst [vmem:[%s234 + $0x64] sm:$0xf] %v685
      %750 = vst [vmem:[%s234 + $0x68] sm:$0xf] %v686
      %751 = vst [vmem:[%s234 + $0x6c] sm:$0xf] %v687
      %752 = vst [vmem:[%s234 + $0x70] sm:$0xf] %v688
      %753 = vst [vmem:[%s234 + $0x74] sm:$0xf] %v689
      %754 = vst [vmem:[%s234 + $0x78] sm:$0xf] %v690
      %755 = vst [vmem:[%s234 + $0x7c] sm:$0xf] %v691
      %v756 = vld [vmem:[%s2] sm:$0xf]
      %v757 = vld [vmem:[%s2 + $0x4] sm:$0xf]
      %v758 = vld [vmem:[%s2 + $0x8] sm:$0xf]
      %v759 = vld [vmem:[%s2 + $0xc] sm:$0xf]
      %v760 = vld [vmem:[%s2 + $0x10] sm:$0xf]
      %v761 = vld [vmem:[%s2 + $0x14] sm:$0xf]
      %v762 = vld [vmem:[%s2 + $0x18] sm:$0xf]
      %v763 = vld [vmem:[%s2 + $0x1c] sm:$0xf]
      %v764 = vld [vmem:[%s2 + $0x20] sm:$0xf]
      %v765 = vld [vmem:[%s2 + $0x24] sm:$0xf]
      %v766 = vld [vmem:[%s2 + $0x28] sm:$0xf]
      %v767 = vld [vmem:[%s2 + $0x2c] sm:$0xf]
      %v768 = vld [vmem:[%s2 + $0x30] sm:$0xf]
      %v769 = vld [vmem:[%s2 + $0x34] sm:$0xf]
      %v770 = vld [vmem:[%s2 + $0x38] sm:$0xf]
      %v771 = vld [vmem:[%s2 + $0x3c] sm:$0xf]
      %v772 = vld [vmem:[%s3] sm:$0x1]
      %v774 = vlaneseq
      %v775 = vshrl.u32 %v774, 7
      %v776 = vsub.s32 0, %v775
      %v777 = vrot.slane %v772, %v776
      %v795 = vunpack.c.l.b16 %v756
      %v796 = vunpack.c.l.b16 %v757
      %v797 = vunpack.c.l.b16 %v758
      %v798 = vunpack.c.l.b16 %v759
      %v799 = vunpack.c.l.b16 %v760
      %v800 = vunpack.c.l.b16 %v761
      %v801 = vunpack.c.l.b16 %v762
      %v802 = vunpack.c.l.b16 %v763
      %v803 = vunpack.c.l.b16 %v764
      %v804 = vunpack.c.l.b16 %v765
      %v805 = vunpack.c.l.b16 %v766
      %v806 = vunpack.c.l.b16 %v767
      %v807 = vunpack.c.l.b16 %v768
      %v808 = vunpack.c.l.b16 %v769
      %v809 = vunpack.c.l.b16 %v770
      %v810 = vunpack.c.l.b16 %v771
      %v811 = vpack.c.b16 %v796, %v795
      %v812 = vpack.c.b16 %v798, %v797
      %v813 = vpack.c.b16 %v800, %v799
      %v814 = vpack.c.b16 %v802, %v801
      %v815 = vpack.c.b16 %v804, %v803
      %v816 = vpack.c.b16 %v806, %v805
      %v817 = vpack.c.b16 %v808, %v807
      %v818 = vpack.c.b16 %v810, %v809
      %827 = vmatprep.subr.bf16.mxu0 0
      %828 = vmatpush1.bf16.msra.mxu0 %v811
      %829 = vmatprep.subr.bf16.mxu0 0
      %830 = vmatpush1.bf16.msra.mxu0 %v812
      %831 = vmatprep.subr.bf16.mxu0 0
      %832 = vmatpush1.bf16.msra.mxu0 %v813
      %833 = vmatprep.subr.bf16.mxu0 0
      %834 = vmatpush1.bf16.msra.mxu0 %v814
      %835 = vmatprep.subr.bf16.mxu0 0
      %836 = vmatpush1.bf16.msra.mxu0 %v815
      %837 = vmatprep.subr.bf16.mxu0 0
      %838 = vmatpush1.bf16.msra.mxu0 %v816
      %839 = vmatprep.subr.bf16.mxu0 0
      %840 = vmatpush1.bf16.msra.mxu0 %v817
      %841 = vmatprep.subr.bf16.mxu0 0
      %842 = vmatpush1.bf16.msra.mxu0 %v818
      %843 = vmatprep.subr.bf16.mxu0 0
      %844 = vmatpush1.bf16.msra.mxu0 0
      %845 = vmatprep.subr.bf16.mxu0 0
      %846 = vmatpush1.bf16.msra.mxu0 0
      %847 = vmatprep.subr.bf16.mxu0 0
      %848 = vmatpush1.bf16.msra.mxu0 0
      %849 = vmatprep.subr.bf16.mxu0 0
      %850 = vmatpush1.bf16.msra.mxu0 0
      %851 = vmatprep.subr.bf16.mxu0 0
      %852 = vmatpush1.bf16.msra.mxu0 0
      %853 = vmatprep.subr.bf16.mxu0 0
      %854 = vmatpush1.bf16.msra.mxu0 0
      %855 = vmatprep.subr.bf16.mxu0 0
      %856 = vmatpush1.bf16.msra.mxu0 0
      %857 = vmatprep.subr.bf16.mxu0 0
      %858 = vmatpush1.bf16.msra.mxu0 0
      %859 = vmatprep.mubr.bf16.mxu0 0
      %860 = vmatmul.mubr.bf16.gmra.mrb[0].mxu0 %v355
      %v861 = vpop.f32.mrb[0].mxu0
      %v862 = vadd.f32 %v777, %v861
      %v863 = vpop.f32.mrb[0].mxu0
      %v864 = vpop.f32.mrb[0].mxu0
      %v865 = vadd.f32 %v777, %v864
      %v866 = vpop.f32.mrb[0].mxu0
      %867 = vmatprep.mubr.bf16.mxu0 0
      %868 = vmatmul.mubr.bf16.gmra.mrb[0].mxu0 %v356
      %v869 = vpop.f32.mrb[0].mxu0
      %v870 = vadd.f32 %v777, %v869
      %v871 = vpop.f32.mrb[0].mxu0
      %v872 = vpop.f32.mrb[0].mxu0
      %v873 = vadd.f32 %v777, %v872
      %v874 = vpop.f32.mrb[0].mxu0
      %875 = vmatprep.mubr.bf16.mxu0 0
      %876 = vmatmul.mubr.bf16.gmra.mrb[0].mxu0 %v357
      %v877 = vpop.f32.mrb[0].mxu0
      %v878 = vadd.f32 %v777, %v877
      %v879 = vpop.f32.mrb[0].mxu0
      %v880 = vpop.f32.mrb[0].mxu0
      %v881 = vadd.f32 %v777, %v880
      %v882 = vpop.f32.mrb[0].mxu0
      %883 = vmatprep.mubr.bf16.mxu0 0
      %884 = vmatmul.mubr.bf16.gmra.mrb[0].mxu0 %v358
      %v885 = vpop.f32.mrb[0].mxu0
      %v886 = vadd.f32 %v777, %v885
      %v887 = vpop.f32.mrb[0].mxu0
      %v888 = vpop.f32.mrb[0].mxu0
      %v889 = vadd.f32 %v777, %v888
      %v890 = vpop.f32.mrb[0].mxu0
      %891 = vmatprep.mubr.bf16.mxu0 0
      %892 = vmatmul.mubr.bf16.gmra.mrb[0].mxu0 %v359
      %v893 = vpop.f32.mrb[0].mxu0
      %v894 = vadd.f32 %v777, %v893
      %v895 = vpop.f32.mrb[0].mxu0
      %v896 = vpop.f32.mrb[0].mxu0
      %v897 = vadd.f32 %v777, %v896
      %v898 = vpop.f32.mrb[0].mxu0
      %899 = vmatprep.mubr.bf16.mxu0 0
      %900 = vmatmul.mubr.bf16.gmra.mrb[0].mxu0 %v360
      %v901 = vpop.f32.mrb[0].mxu0
      %v902 = vadd.f32 %v777, %v901
      %v903 = vpop.f32.mrb[0].mxu0
      %v904 = vpop.f32.mrb[0].mxu0
      %v905 = vadd.f32 %v777, %v904
      %v906 = vpop.f32.mrb[0].mxu0
      %907 = vmatprep.mubr.bf16.mxu0 0
      %908 = vmatmul.mubr.bf16.gmra.mrb[0].mxu0 %v361
      %v909 = vpop.f32.mrb[0].mxu0
      %v910 = vadd.f32 %v777, %v909
      %v911 = vpop.f32.mrb[0].mxu0
      %v912 = vpop.f32.mrb[0].mxu0
      %v913 = vadd.f32 %v777, %v912
      %v914 = vpop.f32.mrb[0].mxu0
      %915 = vmatprep.mubr.bf16.mxu0 0
      %916 = vmatmul.mubr.bf16.gmra.mrb[0].mxu0 %v362
      %v917 = vpop.f32.mrb[0].mxu0
      %v918 = vadd.f32 %v777, %v917
      %v919 = vpop.f32.mrb[0].mxu0
      %v920 = vpop.f32.mrb[0].mxu0
      %v921 = vadd.f32 %v777, %v920
      %v922 = vpop.f32.mrb[0].mxu0
      %923 = vmatprep.mubr.bf16.mxu0 0
      %924 = vmatmul.mubr.bf16.gmra.mrb[0].mxu0 %v363
      %v925 = vpop.f32.mrb[0].mxu0
      %v926 = vadd.f32 %v777, %v925
      %v927 = vpop.f32.mrb[0].mxu0
      %v928 = vpop.f32.mrb[0].mxu0
      %v929 = vadd.f32 %v777, %v928
      %v930 = vpop.f32.mrb[0].mxu0
      %931 = vmatprep.mubr.bf16.mxu0 0
      %932 = vmatmul.mubr.bf16.gmra.mrb[0].mxu0 %v364
      %v933 = vpop.f32.mrb[0].mxu0
      %v934 = vadd.f32 %v777, %v933
      %v935 = vpop.f32.mrb[0].mxu0
      %v936 = vpop.f32.mrb[0].mxu0
      %v937 = vadd.f32 %v777, %v936
      %v938 = vpop.f32.mrb[0].mxu0
      %939 = vmatprep.mubr.bf16.mxu0 0
      %940 = vmatmul.mubr.bf16.gmra.mrb[0].mxu0 %v365
      %v941 = vpop.f32.mrb[0].mxu0
      %v942 = vadd.f32 %v777, %v941
      %v943 = vpop.f32.mrb[0].mxu0
      %v944 = vpop.f32.mrb[0].mxu0
      %v945 = vadd.f32 %v777, %v944
      %v946 = vpop.f32.mrb[0].mxu0
      %947 = vmatprep.mubr.bf16.mxu0 0
      %948 = vmatmul.mubr.bf16.gmra.mrb[0].mxu0 %v366
      %v949 = vpop.f32.mrb[0].mxu0
      %v950 = vadd.f32 %v777, %v949
      %v951 = vpop.f32.mrb[0].mxu0
      %v952 = vpop.f32.mrb[0].mxu0
      %v953 = vadd.f32 %v777, %v952
      %v954 = vpop.f32.mrb[0].mxu0
      %955 = vmatprep.mubr.bf16.mxu0 0
      %956 = vmatmul.mubr.bf16.gmra.mrb[0].mxu0 %v367
      %v957 = vpop.f32.mrb[0].mxu0
      %v958 = vadd.f32 %v777, %v957
      %v959 = vpop.f32.mrb[0].mxu0
      %v960 = vpop.f32.mrb[0].mxu0
      %v961 = vadd.f32 %v777, %v960
      %v962 = vpop.f32.mrb[0].mxu0
      %963 = vmatprep.mubr.bf16.mxu0 0
      %964 = vmatmul.mubr.bf16.gmra.mrb[0].mxu0 %v368
      %v965 = vpop.f32.mrb[0].mxu0
      %v966 = vadd.f32 %v777, %v965
      %v967 = vpop.f32.mrb[0].mxu0
      %v968 = vpop.f32.mrb[0].mxu0
      %v969 = vadd.f32 %v777, %v968
      %v970 = vpop.f32.mrb[0].mxu0
      %971 = vmatprep.mubr.bf16.mxu0 0
      %972 = vmatmul.mubr.bf16.gmra.mrb[0].mxu0 %v369
      %v973 = vpop.f32.mrb[0].mxu0
      %v974 = vadd.f32 %v777, %v973
      %v975 = vpop.f32.mrb[0].mxu0
      %v976 = vpop.f32.mrb[0].mxu0
      %v977 = vadd.f32 %v777, %v976
      %v978 = vpop.f32.mrb[0].mxu0
      %979 = vmatprep.mubr.bf16.mxu0 0
      %980 = vmatmul.mubr.bf16.gmra.mrb[0].mxu0 %v370
      %v981 = vpop.f32.mrb[0].mxu0
      %v982 = vadd.f32 %v777, %v981
      %v983 = vpop.f32.mrb[0].mxu0
      %v984 = vpop.f32.mrb[0].mxu0
      %v985 = vadd.f32 %v777, %v984
      %v986 = vpop.f32.mrb[0].mxu0
      %987 = vdwg.mxu0
      %988 = vst [vmem:[%s240] sm:$0xff] %v862
      %989 = vst [vmem:[%s240 + $0x8] sm:$0xff] %v865
      %990 = vst [vmem:[%s240 + $0x10] sm:$0xff] %v870
      %991 = vst [vmem:[%s240 + $0x18] sm:$0xff] %v873
      %992 = vst [vmem:[%s240 + $0x20] sm:$0xff] %v878
      %993 = vst [vmem:[%s240 + $0x28] sm:$0xff] %v881
      %994 = vst [vmem:[%s240 + $0x30] sm:$0xff] %v886
      %995 = vst [vmem:[%s240 + $0x38] sm:$0xff] %v889
      %996 = vst [vmem:[%s240 + $0x40] sm:$0xff] %v894
      %997 = vst [vmem:[%s240 + $0x48] sm:$0xff] %v897
      %998 = vst [vmem:[%s240 + $0x50] sm:$0xff] %v902
      %999 = vst [vmem:[%s240 + $0x58] sm:$0xff] %v905
      %1000 = vst [vmem:[%s240 + $0x60] sm:$0xff] %v910
      %1001 = vst [vmem:[%s240 + $0x68] sm:$0xff] %v913
      %1002 = vst [vmem:[%s240 + $0x70] sm:$0xff] %v918
      %1003 = vst [vmem:[%s240 + $0x78] sm:$0xff] %v921
      %1004 = vst [vmem:[%s240 + $0x80] sm:$0xff] %v926
      %1005 = vst [vmem:[%s240 + $0x88] sm:$0xff] %v929
      %1006 = vst [vmem:[%s240 + $0x90] sm:$0xff] %v934
      %1007 = vst [vmem:[%s240 + $0x98] sm:$0xff] %v937
      %1008 = vst [vmem:[%s240 + $0xa0] sm:$0xff] %v942
      %1009 = vst [vmem:[%s240 + $0xa8] sm:$0xff] %v945
      %1010 = vst [vmem:[%s240 + $0xb0] sm:$0xff] %v950
      %1011 = vst [vmem:[%s240 + $0xb8] sm:$0xff] %v953
      %1012 = vst [vmem:[%s240 + $0xc0] sm:$0xff] %v958
      %1013 = vst [vmem:[%s240 + $0xc8] sm:$0xff] %v961
      %1014 = vst [vmem:[%s240 + $0xd0] sm:$0xff] %v966
      %1015 = vst [vmem:[%s240 + $0xd8] sm:$0xff] %v969
      %1016 = vst [vmem:[%s240 + $0xe0] sm:$0xff] %v974
      %1017 = vst [vmem:[%s240 + $0xe8] sm:$0xff] %v977
      %1018 = vst [vmem:[%s240 + $0xf0] sm:$0xff] %v982
      %1019 = vst [vmem:[%s240 + $0xf8] sm:$0xff] %v985
      %s1020 = smul.u32 32, %s17
      %p1021 = scmp.lt.s32.totalorder %s1020, 63
      %s1022 = scalar_select %p1021, %s1020, 63
      %s1023 = smul.addr %s1022, 4
      %s1024 = scalar_lea.vmem %s4, %s1023
      %s1025 = smul.u32 32, %s17
      %p1026 = scmp.lt.s32.totalorder %s1025, 63
      %s1027 = scalar_select %p1026, %s1025, 63
      %s1028 = smul.addr %s1027, 8
      %s1029 = scalar_lea.vmem %s5, %s1028
      // Predicated region
      $region37: #{gnn_stack_forward.5} parent=35 // pred_check
        %p1030 = pneg %p124
      $region38: #{gnn_stack_forward.5} parent=35 // pred_check_branch
        %1032 = sbr.rel (%p1030) target = $region40
      $region39: #{gnn_stack_forward.5} parent=35 // pred_region
        %s1033 = smul.u32 32, %s17
      $region40: #{gnn_stack_forward.5} parent=35 // pred_fallthru
        _
      // Predicated region
      $region41: #{gnn_stack_forward.5} parent=35 // pred_check
        %p1034 = pneg %p150
      $region42: #{gnn_stack_forward.5} parent=35 // pred_check_branch
        %1036 = sbr.rel (%p1034) target = $region44
      $region43: #{gnn_stack_forward.5} parent=35 // pred_region
        %s1037 = smul.u32 32, %s17
      $region44: #{gnn_stack_forward.5} parent=35 // pred_fallthru
        _
    $region36: #{gnn_stack_forward.5} parent=5 // pred_fallthru
      _
    %p1038 = scmp.le.s32.totalorder 2, %s12
    // Predicated region
    $region45: #{gnn_stack_forward.5} parent=5 // pred_check
      %p1039 = pneg %p1038
    $region46: #{gnn_stack_forward.5} parent=5 // pred_check_branch
      %1041 = sbr.rel (%p1039) target = $region48
    $region47: #{gnn_stack_forward.5} parent=5 // pred_region
      %s1042 = ssub.s32 %s12, 2
      // Predicated region
      $region49: #{gnn_stack_forward.5} parent=47 // pred_check
        %p1043 = pneg %p130
      $region50: #{gnn_stack_forward.5} parent=47 // pred_check_branch
        %1045 = sbr.rel (%p1043) target = $region52
      $region51: #{gnn_stack_forward.5} parent=47 // pred_region
        %s1046 = smul.u32 32, %s18
        %p1047 = scmp.lt.s32.totalorder %s1046, 63
        %s1048 = scalar_select %p1047, %s1046, 63
        %s1049 = smul.addr %s1048, 4
        %s1050 = scalar_lea.vmem %s4, %s1049
      $region52: #{gnn_stack_forward.5} parent=47 // pred_fallthru
        _
      // Predicated region
      $region53: #{gnn_stack_forward.5} parent=47 // pred_check
        %p1051 = pneg %p156
      $region54: #{gnn_stack_forward.5} parent=47 // pred_check_branch
        %1053 = sbr.rel (%p1051) target = $region56
      $region55: #{gnn_stack_forward.5} parent=47 // pred_region
        %s1054 = smul.u32 32, %s18
        %p1055 = scmp.lt.s32.totalorder %s1054, 63
        %s1056 = scalar_select %p1055, %s1054, 63
        %s1057 = smul.addr %s1056, 8
        %s1058 = scalar_lea.vmem %s5, %s1057
      $region56: #{gnn_stack_forward.5} parent=47 // pred_fallthru
        _
    $region48: #{gnn_stack_forward.5} parent=5 // pred_fallthru
      _
  $region6: #{gnn_stack_forward.5} parent=0 // loop_footer
    %s16 = sadd.s32 1, %s12
  $region7: #{gnn_stack_forward.5} parent=0 // loop_footer_branch
    %11 = sbr.rel target = $region3
  $region8: #{gnn_stack_forward.5} parent=0 // loop_exit
    _

// kernel: gnn_stack_forward.6
$region0: #{gnn_stack_forward.6}
  #allocation0 [shape = 'u32[]', space=smem, size = 0x4, offset = 0x4, fixed_abs, tag = 'smem constant byte address 0x4 - core index']
  #allocation1 [shape = 'u32[144,128]{1,0:T(1,128)}', space=vmem, size = 0x12000, scoped, tag = 'internal scratch']
  #allocation2 [shape = 'f32[256,128]{1,0:T(8,128)}', space=vmem, size = 0x20000, scoped, tag = 'scratch operand']
  %s0 = inlined_call_operand.vmem [shape: bf16[512,512], index: 0, kind: input, shape index: {}]
  %s1 = inlined_call_operand.vmem [shape: bf16[512,128], index: 1, kind: input, shape index: {}]
  %s2 = inlined_call_operand.vmem [shape: f32[512,128], index: 2, kind: input, shape index: {}]
  %s3 = inlined_call_operand.vmem [shape: f32[512,128], index: 3, kind: output, shape index: {}]
  %s4 = sld [smem:[#allocation0]]
  $region91: #{gnn_stack_forward.6} parent=0
    _
  %s6 = ssub.s32 1, %s4
  %s7 = scalar_select 0, %s6, %s4
  $region1: #{gnn_stack_forward.6} parent=0
    #allocation3 [shape = 'u8[262144]{0}', space=vmem, size = 0x40000, scoped, tag = 'input window, operand 0']
    loop: start=0, step=1, limit=6
    $region2: #{gnn_stack_forward.6} parent=1 // loop_pre_header
      _
    $region3: #{gnn_stack_forward.6} parent=1 // loop_header
      %s9 = sphi 0, %s13
      %p10 = scmp.ge.s32.totalorder %s9, 6
      %s16 = sphi 0, %s28
      %s17 = sphi 0, %s24
      %s18 = sphi 0, %s16
      %s19 = sphi 0, %s17
      %s20 = sphi 0, %s18
      %s21 = sphi 0, %s19
      %s33 = sphi 0, %s35
      %s36 = sphi 0, %s33
      %s37 = sphi 0, %s36
      %s53 = sphi 0, %s37
      %s59 = sphi 0, %s61
      %s62 = sphi 0, %s59
      %s63 = sphi 0, %s62
      %s79 = sphi 0, %s63
      %s85 = sphi 0, %s87
      %s88 = sphi 0, %s85
      %s89 = sphi 0, %s88
      %s105 = sphi 0, %s89
      %s111 = sphi 0, %s113
      %s114 = sphi 0, %s111
      %s115 = sphi 0, %s114
      %s131 = sphi 0, %s115
    $region4: #{gnn_stack_forward.6} parent=1 // loop_header_branch
      %12 = sbr.rel (%p10) target = $region8
    $region5: #{gnn_stack_forward.6} parent=1 // loop_body
      %s14 = ssub.s32 %s9, 1
      %s15 = ssub.s32 %s9, 2
      %s22 = sadd.s32 1, %s17
      %p23 = scmp.ge.s32.totalorder %s22, 2
      %s24 = scalar_select %p23, 0, %s22
      %s25 = sadd.s32 1, %s16
      %s26 = scalar_select %p23, %s25, %s16
      %p27 = scmp.ge.s32.totalorder %s26, 2
      %s28 = scalar_select %p27, 0, %s26
      %s29 = ssub.s32 %s16, %s28
      %s30 = ssub.s32 %s17, %s24
      %s31 = sor.u32 %s29, %s30
      %p32 = scmp.eq.s32.totalorder %s31, 0
      %s34 = sadd.s32 %s33, 1
      %s35 = scalar_select %p32, %s33, %s34
      %p38 = pneg %p32
      %p39 = scmp.eq.s32.totalorder %s9, 3
      %p40 = por %p38, %p39
      %p41 = scmp.ne.s32.totalorder %s33, %s36
      %p42 = scmp.eq.s32.totalorder %s9, 0
      %p43 = por %p41, %p42
      %p44 = scmp.ne.s32.totalorder %s33, %s36
      %p45 = scmp.eq.s32.totalorder %s14, 3
      %p46 = por %p44, %p45
      %p47 = scmp.ne.s32.totalorder %s36, %s37
      %p48 = scmp.eq.s32.totalorder %s14, 0
      %p49 = por %p47, %p48
      %p50 = scmp.ne.s32.totalorder %s36, %s37
      %p51 = scmp.eq.s32.totalorder %s15, 3
      %p52 = por %p50, %p51
      %p54 = scmp.ne.s32.totalorder %s37, %s53
      %p55 = scmp.eq.s32.totalorder %s15, 0
      %p56 = por %p54, %p55
      %s57 = ssub.s32 %s17, %s24
      %p58 = scmp.eq.s32.totalorder %s57, 0
      %s60 = sadd.s32 %s59, 1
      %s61 = scalar_select %p58, %s59, %s60
      %p64 = pneg %p58
      %p65 = scmp.eq.s32.totalorder %s9, 3
      %p66 = por %p64, %p65
      %p67 = scmp.ne.s32.totalorder %s59, %s62
      %p68 = scmp.eq.s32.totalorder %s9, 0
      %p69 = por %p67, %p68
      %p70 = scmp.ne.s32.totalorder %s59, %s62
      %p71 = scmp.eq.s32.totalorder %s14, 3
      %p72 = por %p70, %p71
      %p73 = scmp.ne.s32.totalorder %s62, %s63
      %p74 = scmp.eq.s32.totalorder %s14, 0
      %p75 = por %p73, %p74
      %p76 = scmp.ne.s32.totalorder %s62, %s63
      %p77 = scmp.eq.s32.totalorder %s15, 3
      %p78 = por %p76, %p77
      %p80 = scmp.ne.s32.totalorder %s63, %s79
      %p81 = scmp.eq.s32.totalorder %s15, 0
      %p82 = por %p80, %p81
      %s83 = ssub.s32 %s16, %s28
      %p84 = scmp.eq.s32.totalorder %s83, 0
      %s86 = sadd.s32 %s85, 1
      %s87 = scalar_select %p84, %s85, %s86
      %p90 = pneg %p84
      %p91 = scmp.eq.s32.totalorder %s9, 3
      %p92 = por %p90, %p91
      %p93 = scmp.ne.s32.totalorder %s85, %s88
      %p94 = scmp.eq.s32.totalorder %s9, 0
      %p95 = por %p93, %p94
      %p96 = scmp.ne.s32.totalorder %s85, %s88
      %p97 = scmp.eq.s32.totalorder %s14, 3
      %p98 = por %p96, %p97
      %p99 = scmp.ne.s32.totalorder %s88, %s89
      %p100 = scmp.eq.s32.totalorder %s14, 0
      %p101 = por %p99, %p100
      %p102 = scmp.ne.s32.totalorder %s88, %s89
      %p103 = scmp.eq.s32.totalorder %s15, 3
      %p104 = por %p102, %p103
      %p106 = scmp.ne.s32.totalorder %s89, %s105
      %p107 = scmp.eq.s32.totalorder %s15, 0
      %p108 = por %p106, %p107
      %s109 = ssub.s32 %s16, %s28
      %p110 = scmp.eq.s32.totalorder %s109, 0
      %s112 = sadd.s32 %s111, 1
      %s113 = scalar_select %p110, %s111, %s112
      %p116 = pneg %p110
      %p117 = scmp.eq.s32.totalorder %s9, 3
      %p118 = por %p116, %p117
      %p119 = scmp.ne.s32.totalorder %s111, %s114
      %p120 = scmp.eq.s32.totalorder %s9, 0
      %p121 = por %p119, %p120
      %p122 = scmp.ne.s32.totalorder %s111, %s114
      %p123 = scmp.eq.s32.totalorder %s14, 3
      %p124 = por %p122, %p123
      %p125 = scmp.ne.s32.totalorder %s114, %s115
      %p126 = scmp.eq.s32.totalorder %s14, 0
      %p127 = por %p125, %p126
      %p128 = scmp.ne.s32.totalorder %s114, %s115
      %p129 = scmp.eq.s32.totalorder %s15, 3
      %p130 = por %p128, %p129
      %p132 = scmp.ne.s32.totalorder %s115, %s131
      %p133 = scmp.eq.s32.totalorder %s15, 0
      %p134 = por %p132, %p133
      %p135 = scmp.le.s32.totalorder 1, %s9
      %p136 = scmp.lt.s32.totalorder %s9, 5
      %p137 = pnand %p135, %p136
      %p138 = pneg %p137
      // Predicated region
      $region9: #{gnn_stack_forward.6} parent=5 // pred_check
        _
      $region10: #{gnn_stack_forward.6} parent=5 // pred_check_branch
        %140 = sbr.rel (%p137) target = $region12
      $region11: #{gnn_stack_forward.6} parent=5 // pred_region
        %s141 = ssub.s32 %s9, 1
      $region12: #{gnn_stack_forward.6} parent=5 // pred_fallthru
        _
      %p142 = scmp.lt.s32.totalorder %s9, 4
      // Predicated region
      $region13: #{gnn_stack_forward.6} parent=5 // pred_check
        %p143 = pneg %p142
      $region14: #{gnn_stack_forward.6} parent=5 // pred_check_branch
        %145 = sbr.rel (%p143) target = $region16
      $region15: #{gnn_stack_forward.6} parent=5 // pred_region
        // Predicated region
        $region17: #{gnn_stack_forward.6} parent=15 // pred_check
          %p146 = pneg %p43
        $region18: #{gnn_stack_forward.6} parent=15 // pred_check_branch
          %148 = sbr.rel (%p146) target = $region20
        $region19: #{gnn_stack_forward.6} parent=15 // pred_region
          %s149 = sand.u32 %s33, 1
          %s150 = sand.u32 %s33, 1
          %s151 = smul.addr %s150, 256
          %s152 = scalar_lea.vmem [#allocation3], %s151
          %s153 = smul.u32 32, %s16
          %s154 = smul.u32 2, %s17
          %s155 = smul.addr %s153, 4
          %s156 = sadd.s32 %s154, %s155
          %s157 = smul.addr %s156, 4
          %s158 = scalar_lea.vmem %s0, %s157
          // Predicated region
          $region21: #{gnn_stack_forward.6} parent=19 // pred_check
            _
          $region22: #{gnn_stack_forward.6} parent=19 // pred_check_branch
            %160 = sbr.rel (0) target = $region24
          $region23: #{gnn_stack_forward.6} parent=19 // pred_region
            // Predicated region
            $region25: #{gnn_stack_forward.6} parent=23 // pred_check
              _
            $region26: #{gnn_stack_forward.6} parent=23 // pred_check_branch
              %162 = sbr.rel (0) target = $region28
            $region27: #{gnn_stack_forward.6} parent=23 // pred_region
              // Predicated region
              $region40: #{gnn_stack_forward.6} parent=27 // pred_check
                _
              $region41: #{gnn_stack_forward.6} parent=27 // pred_check_branch
                %239 = sbr.rel (0) target = $region43
              $region42: #{gnn_stack_forward.6} parent=27 // pred_region
                loop: start=0, step=1, limit=1
                $region44: #{gnn_stack_forward.6} parent=42 // loop_pre_header
                  _
                $region45: #{gnn_stack_forward.6} parent=42 // loop_header
                  %s241 = sphi 0, %s245
                  %p242 = scmp.ge.s32.totalorder %s241, 1
                  %s246 = sphi %s158, %s158
                  %s247 = sphi %s152, %s152
                $region46: #{gnn_stack_forward.6} parent=42 // loop_header_branch
                  %244 = sbr.rel (%p242) target = $region50
                $region47: #{gnn_stack_forward.6} parent=42 // loop_body
                  %v248 = vld [vmem:[%s246] sm:$0xff]
                  %249 = vst [vmem:[%s247] sm:$0xff] %v248
                  %v250 = vld [vmem:[%s246 + $0x10] sm:$0xff]
                  %251 = vst [vmem:[%s247 + $0x8] sm:$0xff] %v250
                  %v252 = vld [vmem:[%s246 + $0x20] sm:$0xff]
                  %253 = vst [vmem:[%s247 + $0x10] sm:$0xff] %v252
                  %v254 = vld [vmem:[%s246 + $0x30] sm:$0xff]
                  %255 = vst [vmem:[%s247 + $0x18] sm:$0xff] %v254
                  %v256 = vld [vmem:[%s246 + $0x40] sm:$0xff]
                  %257 = vst [vmem:[%s247 + $0x20] sm:$0xff] %v256
                  %v258 = vld [vmem:[%s246 + $0x50] sm:$0xff]
                  %259 = vst [vmem:[%s247 + $0x28] sm:$0xff] %v258
                  %v260 = vld [vmem:[%s246 + $0x60] sm:$0xff]
                  %261 = vst [vmem:[%s247 + $0x30] sm:$0xff] %v260
                  %v262 = vld [vmem:[%s246 + $0x70] sm:$0xff]
                  %263 = vst [vmem:[%s247 + $0x38] sm:$0xff] %v262
                  %v264 = vld [vmem:[%s246 + $0x80] sm:$0xff]
                  %265 = vst [vmem:[%s247 + $0x40] sm:$0xff] %v264
                  %v266 = vld [vmem:[%s246 + $0x90] sm:$0xff]
                  %267 = vst [vmem:[%s247 + $0x48] sm:$0xff] %v266
                  %v268 = vld [vmem:[%s246 + $0xa0] sm:$0xff]
                  %269 = vst [vmem:[%s247 + $0x50] sm:$0xff] %v268
                  %v270 = vld [vmem:[%s246 + $0xb0] sm:$0xff]
                  %271 = vst [vmem:[%s247 + $0x58] sm:$0xff] %v270
                  %v272 = vld [vmem:[%s246 + $0xc0] sm:$0xff]
                  %273 = vst [vmem:[%s247 + $0x60] sm:$0xff] %v272
                  %v274 = vld [vmem:[%s246 + $0xd0] sm:$0xff]
                  %275 = vst [vmem:[%s247 + $0x68] sm:$0xff] %v274
                  %v276 = vld [vmem:[%s246 + $0xe0] sm:$0xff]
                  %277 = vst [vmem:[%s247 + $0x70] sm:$0xff] %v276
                  %v278 = vld [vmem:[%s246 + $0xf0] sm:$0xff]
                  %279 = vst [vmem:[%s247 + $0x78] sm:$0xff] %v278
                  %v280 = vld [vmem:[%s246 + $0x100] sm:$0xff]
                  %281 = vst [vmem:[%s247 + $0x80] sm:$0xff] %v280
                  %v282 = vld [vmem:[%s246 + $0x110] sm:$0xff]
                  %283 = vst [vmem:[%s247 + $0x88] sm:$0xff] %v282
                  %v284 = vld [vmem:[%s246 + $0x120] sm:$0xff]
                  %285 = vst [vmem:[%s247 + $0x90] sm:$0xff] %v284
                  %v286 = vld [vmem:[%s246 + $0x130] sm:$0xff]
                  %287 = vst [vmem:[%s247 + $0x98] sm:$0xff] %v286
                  %v288 = vld [vmem:[%s246 + $0x140] sm:$0xff]
                  %289 = vst [vmem:[%s247 + $0xa0] sm:$0xff] %v288
                  %v290 = vld [vmem:[%s246 + $0x150] sm:$0xff]
                  %291 = vst [vmem:[%s247 + $0xa8] sm:$0xff] %v290
                  %v292 = vld [vmem:[%s246 + $0x160] sm:$0xff]
                  %293 = vst [vmem:[%s247 + $0xb0] sm:$0xff] %v292
                  %v294 = vld [vmem:[%s246 + $0x170] sm:$0xff]
                  %295 = vst [vmem:[%s247 + $0xb8] sm:$0xff] %v294
                  %v296 = vld [vmem:[%s246 + $0x180] sm:$0xff]
                  %297 = vst [vmem:[%s247 + $0xc0] sm:$0xff] %v296
                  %v298 = vld [vmem:[%s246 + $0x190] sm:$0xff]
                  %299 = vst [vmem:[%s247 + $0xc8] sm:$0xff] %v298
                  %v300 = vld [vmem:[%s246 + $0x1a0] sm:$0xff]
                  %301 = vst [vmem:[%s247 + $0xd0] sm:$0xff] %v300
                  %v302 = vld [vmem:[%s246 + $0x1b0] sm:$0xff]
                  %303 = vst [vmem:[%s247 + $0xd8] sm:$0xff] %v302
                  %v304 = vld [vmem:[%s246 + $0x1c0] sm:$0xff]
                  %305 = vst [vmem:[%s247 + $0xe0] sm:$0xff] %v304
                  %v306 = vld [vmem:[%s246 + $0x1d0] sm:$0xff]
                  %307 = vst [vmem:[%s247 + $0xe8] sm:$0xff] %v306
                  %v308 = vld [vmem:[%s246 + $0x1e0] sm:$0xff]
                  %309 = vst [vmem:[%s247 + $0xf0] sm:$0xff] %v308
                  %v310 = vld [vmem:[%s246 + $0x1f0] sm:$0xff]
                  %311 = vst [vmem:[%s247 + $0xf8] sm:$0xff] %v310
                $region48: #{gnn_stack_forward.6} parent=42 // loop_footer
                  %s245 = sadd.s32 1, %s241
                $region49: #{gnn_stack_forward.6} parent=42 // loop_footer_branch
                  %240 = sbr.rel target = $region45
                $region50: #{gnn_stack_forward.6} parent=42 // loop_exit
                  _
              $region43: #{gnn_stack_forward.6} parent=27 // pred_fallthru
                _
              // Predicated region
              $region51: #{gnn_stack_forward.6} parent=27 // pred_check
                _
              $region52: #{gnn_stack_forward.6} parent=27 // pred_check_branch
                %313 = sbr.rel target = $region54
              $region53: #{gnn_stack_forward.6} parent=27 // pred_region
                _
              $region54: #{gnn_stack_forward.6} parent=27 // pred_fallthru
                _
            $region28: #{gnn_stack_forward.6} parent=23 // pred_fallthru
              _
            // Predicated region
            $region29: #{gnn_stack_forward.6} parent=23 // pred_check
              _
            $region30: #{gnn_stack_forward.6} parent=23 // pred_check_branch
              %164 = sbr.rel target = $region32
            $region31: #{gnn_stack_forward.6} parent=23 // pred_region
              loop: start=0, step=1, limit=1
              $region33: #{gnn_stack_forward.6} parent=31 // loop_pre_header
                _
              $region34: #{gnn_stack_forward.6} parent=31 // loop_header
                %s167 = sphi 0, %s171
                %p168 = scmp.ge.s32.totalorder %s167, 1
                %s172 = sphi %s158, %s158
                %s173 = sphi %s152, %s152
              $region35: #{gnn_stack_forward.6} parent=31 // loop_header_branch
                %170 = sbr.rel (%p168) target = $region39
              $region36: #{gnn_stack_forward.6} parent=31 // loop_body
                %v174 = vld [vmem:[%s172] sm:$0xff]
                %175 = vst [vmem:[%s173] sm:$0xff] %v174
                %v176 = vld [vmem:[%s172 + $0x10] sm:$0xff]
                %177 = vst [vmem:[%s173 + $0x8] sm:$0xff] %v176
                %v178 = vld [vmem:[%s172 + $0x20] sm:$0xff]
                %179 = vst [vmem:[%s173 + $0x10] sm:$0xff] %v178
                %v180 = vld [vmem:[%s172 + $0x30] sm:$0xff]
                %181 = vst [vmem:[%s173 + $0x18] sm:$0xff] %v180
                %v182 = vld [vmem:[%s172 + $0x40] sm:$0xff]
                %183 = vst [vmem:[%s173 + $0x20] sm:$0xff] %v182
                %v184 = vld [vmem:[%s172 + $0x50] sm:$0xff]
                %185 = vst [vmem:[%s173 + $0x28] sm:$0xff] %v184
                %v186 = vld [vmem:[%s172 + $0x60] sm:$0xff]
                %187 = vst [vmem:[%s173 + $0x30] sm:$0xff] %v186
                %v188 = vld [vmem:[%s172 + $0x70] sm:$0xff]
                %189 = vst [vmem:[%s173 + $0x38] sm:$0xff] %v188
                %v190 = vld [vmem:[%s172 + $0x80] sm:$0xff]
                %191 = vst [vmem:[%s173 + $0x40] sm:$0xff] %v190
                %v192 = vld [vmem:[%s172 + $0x90] sm:$0xff]
                %193 = vst [vmem:[%s173 + $0x48] sm:$0xff] %v192
                %v194 = vld [vmem:[%s172 + $0xa0] sm:$0xff]
                %195 = vst [vmem:[%s173 + $0x50] sm:$0xff] %v194
                %v196 = vld [vmem:[%s172 + $0xb0] sm:$0xff]
                %197 = vst [vmem:[%s173 + $0x58] sm:$0xff] %v196
                %v198 = vld [vmem:[%s172 + $0xc0] sm:$0xff]
                %199 = vst [vmem:[%s173 + $0x60] sm:$0xff] %v198
                %v200 = vld [vmem:[%s172 + $0xd0] sm:$0xff]
                %201 = vst [vmem:[%s173 + $0x68] sm:$0xff] %v200
                %v202 = vld [vmem:[%s172 + $0xe0] sm:$0xff]
                %203 = vst [vmem:[%s173 + $0x70] sm:$0xff] %v202
                %v204 = vld [vmem:[%s172 + $0xf0] sm:$0xff]
                %205 = vst [vmem:[%s173 + $0x78] sm:$0xff] %v204
                %v206 = vld [vmem:[%s172 + $0x100] sm:$0xff]
                %207 = vst [vmem:[%s173 + $0x80] sm:$0xff] %v206
                %v208 = vld [vmem:[%s172 + $0x110] sm:$0xff]
                %209 = vst [vmem:[%s173 + $0x88] sm:$0xff] %v208
                %v210 = vld [vmem:[%s172 + $0x120] sm:$0xff]
                %211 = vst [vmem:[%s173 + $0x90] sm:$0xff] %v210
                %v212 = vld [vmem:[%s172 + $0x130] sm:$0xff]
                %213 = vst [vmem:[%s173 + $0x98] sm:$0xff] %v212
                %v214 = vld [vmem:[%s172 + $0x140] sm:$0xff]
                %215 = vst [vmem:[%s173 + $0xa0] sm:$0xff] %v214
                %v216 = vld [vmem:[%s172 + $0x150] sm:$0xff]
                %217 = vst [vmem:[%s173 + $0xa8] sm:$0xff] %v216
                %v218 = vld [vmem:[%s172 + $0x160] sm:$0xff]
                %219 = vst [vmem:[%s173 + $0xb0] sm:$0xff] %v218
                %v220 = vld [vmem:[%s172 + $0x170] sm:$0xff]
                %221 = vst [vmem:[%s173 + $0xb8] sm:$0xff] %v220
                %v222 = vld [vmem:[%s172 + $0x180] sm:$0xff]
                %223 = vst [vmem:[%s173 + $0xc0] sm:$0xff] %v222
                %v224 = vld [vmem:[%s172 + $0x190] sm:$0xff]
                %225 = vst [vmem:[%s173 + $0xc8] sm:$0xff] %v224
                %v226 = vld [vmem:[%s172 + $0x1a0] sm:$0xff]
                %227 = vst [vmem:[%s173 + $0xd0] sm:$0xff] %v226
                %v228 = vld [vmem:[%s172 + $0x1b0] sm:$0xff]
                %229 = vst [vmem:[%s173 + $0xd8] sm:$0xff] %v228
                %v230 = vld [vmem:[%s172 + $0x1c0] sm:$0xff]
                %231 = vst [vmem:[%s173 + $0xe0] sm:$0xff] %v230
                %v232 = vld [vmem:[%s172 + $0x1d0] sm:$0xff]
                %233 = vst [vmem:[%s173 + $0xe8] sm:$0xff] %v232
                %v234 = vld [vmem:[%s172 + $0x1e0] sm:$0xff]
                %235 = vst [vmem:[%s173 + $0xf0] sm:$0xff] %v234
                %v236 = vld [vmem:[%s172 + $0x1f0] sm:$0xff]
                %237 = vst [vmem:[%s173 + $0xf8] sm:$0xff] %v236
              $region37: #{gnn_stack_forward.6} parent=31 // loop_footer
                %s171 = sadd.s32 1, %s167
              $region38: #{gnn_stack_forward.6} parent=31 // loop_footer_branch
                %166 = sbr.rel target = $region34
              $region39: #{gnn_stack_forward.6} parent=31 // loop_exit
                _
            $region32: #{gnn_stack_forward.6} parent=23 // pred_fallthru
              _
          $region24: #{gnn_stack_forward.6} parent=19 // pred_fallthru
            _
          %314 = vnop
        $region20: #{gnn_stack_forward.6} parent=15 // pred_fallthru
          _
        // Predicated region
        $region55: #{gnn_stack_forward.6} parent=15 // pred_check
          %p315 = pneg %p69
        $region56: #{gnn_stack_forward.6} parent=15 // pred_check_branch
          %317 = sbr.rel (%p315) target = $region58
        $region57: #{gnn_stack_forward.6} parent=15 // pred_region
          %s318 = smul.u32 32, %s17
          %p319 = scmp.lt.s32.totalorder %s318, 63
          %s320 = scalar_select %p319, %s318, 63
          %s321 = smul.addr %s320, 4
          %s322 = scalar_lea.vmem %s1, %s321
          %s323 = smul.u32 32, %s17
        $region58: #{gnn_stack_forward.6} parent=15 // pred_fallthru
          _
        // Predicated region
        $region59: #{gnn_stack_forward.6} parent=15 // pred_check
          %p324 = pneg %p95
        $region60: #{gnn_stack_forward.6} parent=15 // pred_check_branch
          %326 = sbr.rel (%p324) target = $region62
        $region61: #{gnn_stack_forward.6} parent=15 // pred_region
          %s327 = smul.u32 32, %s16
          %p328 = scmp.lt.s32.totalorder %s327, 63
          %s329 = scalar_select %p328, %s327, 63
          %s330 = smul.addr %s329, 8
          %s331 = scalar_lea.vmem %s2, %s330
          %s332 = smul.u32 32, %s16
        $region62: #{gnn_stack_forward.6} parent=15 // pred_fallthru
          _
      $region16: #{gnn_stack_forward.6} parent=5 // pred_fallthru
        _
      %p333 = scmp.le.s32.totalorder 1, %s9
      %p334 = scmp.lt.s32.totalorder %s9, 5
      %p335 = pnand %p333, %p334
      %p336 = pneg %p335
      // Predicated region
      $region63: #{gnn_stack_forward.6} parent=5 // pred_check
        _
      $region64: #{gnn_stack_forward.6} parent=5 // pred_check_branch
        %338 = sbr.rel (%p335) target = $region66
      $region65: #{gnn_stack_forward.6} parent=5 // pred_region
        %s339 = ssub.s32 %s9, 1
        %s340 = sand.u32 %s36, 1
        %s341 = sand.u32 %s36, 1
        %s342 = smul.addr %s341, 256
        %s343 = scalar_lea.vmem [#allocation3], %s342
        // Predicated region
        $region67: #{gnn_stack_forward.6} parent=65 // pred_check
          %p344 = pneg %p49
        $region68: #{gnn_stack_forward.6} parent=65 // pred_check_branch
          %346 = sbr.rel (%p344) target = $region70
        $region69: #{gnn_stack_forward.6} parent=65 // pred_region
          _
        $region70: #{gnn_stack_forward.6} parent=65 // pred_fallthru
          _
        %s347 = sand.u32 %s36, 1
        %s348 = sand.u32 %s36, 1
        %s349 = smul.addr %s348, 256
        %s350 = scalar_lea.vmem [#allocation3], %s349
        %p351 = pneg %p49
        %p352 = pneg %p46
        %s353 = smul.u32 32, %s19
        %p354 = scmp.lt.s32.totalorder %s353, 63
        %s355 = scalar_select %p354, %s353, 63
        %s356 = smul.addr %s355, 4
        %s357 = scalar_lea.vmem %s1, %s356
        %p358 = pneg %p75
        %p359 = pneg %p72
        %s360 = smul.u32 32, %s18
        %p361 = scmp.lt.s32.totalorder %s360, 63
        %s362 = scalar_select %p361, %s360, 63
        %s363 = smul.addr %s362, 8
        %s364 = scalar_lea.vmem %s2, %s363
        %p365 = pneg %p101
        %p366 = pneg %p98
        %p367 = pneg %p127
        %p368 = pneg %p124
        %s369 = smul.u32 32, %s18
        %p370 = scmp.lt.s32.totalorder %s369, 63
        %s371 = scalar_select %p370, %s369, 63
        %s372 = smul.addr %s371, 8
        %s373 = scalar_lea.vmem %s3, %s372
        %s374 = smul.u32 32, %s18
        %s375 = smul.u32 2, %s19
        %s376 = smul.u32 32, %s19
        %p377 = scmp.lt.s32.totalorder %s376, 63
        %s378 = scalar_select %p377, %s376, 63
        %s379 = smul.addr %s378, 4
        %s380 = scalar_lea.vmem %s1, %s379
        %s381 = smul.u32 32, %s19
        %s382 = smul.u32 32, %s18
        %p383 = scmp.lt.s32.totalorder %s382, 63
        %s384 = scalar_select %p383, %s382, 63
        %s385 = smul.addr %s384, 8
        %s386 = scalar_lea.vmem %s2, %s385
        %s387 = smul.u32 32, %s18
        %s388 = smul.u32 32, %s18
        %p389 = scmp.lt.s32.totalorder %s388, 63
        %s390 = scalar_select %p389, %s388, 63
        %s391 = smul.addr %s390, 8
        %s392 = scalar_lea.vmem %s3, %s391
        %s393 = smul.u32 32, %s18
        %p395 = scmp.eq.s32.totalorder %s19, 0
        // Predicated region
        $region71: #{gnn_stack_forward.6} parent=65 // pred_check
          %p396 = pneg %p395
        $region72: #{gnn_stack_forward.6} parent=65 // pred_check_branch
          %398 = sbr.rel (%p396) target = $region74
        $region73: #{gnn_stack_forward.6} parent=65 // pred_region
          %399 = vst [vmem:[#allocation2] sm:$0xff] 0.0
          %400 = vst [vmem:[#allocation2 + $0x8] sm:$0xff] 0.0
          %401 = vst [vmem:[#allocation2 + $0x10] sm:$0xff] 0.0
          %402 = vst [vmem:[#allocation2 + $0x18] sm:$0xff] 0.0
          %403 = vst [vmem:[#allocation2 + $0x20] sm:$0xff] 0.0
          %404 = vst [vmem:[#allocation2 + $0x28] sm:$0xff] 0.0
          %405 = vst [vmem:[#allocation2 + $0x30] sm:$0xff] 0.0
          %406 = vst [vmem:[#allocation2 + $0x38] sm:$0xff] 0.0
          %407 = vst [vmem:[#allocation2 + $0x40] sm:$0xff] 0.0
          %408 = vst [vmem:[#allocation2 + $0x48] sm:$0xff] 0.0
          %409 = vst [vmem:[#allocation2 + $0x50] sm:$0xff] 0.0
          %410 = vst [vmem:[#allocation2 + $0x58] sm:$0xff] 0.0
          %411 = vst [vmem:[#allocation2 + $0x60] sm:$0xff] 0.0
          %412 = vst [vmem:[#allocation2 + $0x68] sm:$0xff] 0.0
          %413 = vst [vmem:[#allocation2 + $0x70] sm:$0xff] 0.0
          %414 = vst [vmem:[#allocation2 + $0x78] sm:$0xff] 0.0
          %415 = vst [vmem:[#allocation2 + $0x80] sm:$0xff] 0.0
          %416 = vst [vmem:[#allocation2 + $0x88] sm:$0xff] 0.0
          %417 = vst [vmem:[#allocation2 + $0x90] sm:$0xff] 0.0
          %418 = vst [vmem:[#allocation2 + $0x98] sm:$0xff] 0.0
          %419 = vst [vmem:[#allocation2 + $0xa0] sm:$0xff] 0.0
          %420 = vst [vmem:[#allocation2 + $0xa8] sm:$0xff] 0.0
          %421 = vst [vmem:[#allocation2 + $0xb0] sm:$0xff] 0.0
          %422 = vst [vmem:[#allocation2 + $0xb8] sm:$0xff] 0.0
          %423 = vst [vmem:[#allocation2 + $0xc0] sm:$0xff] 0.0
          %424 = vst [vmem:[#allocation2 + $0xc8] sm:$0xff] 0.0
          %425 = vst [vmem:[#allocation2 + $0xd0] sm:$0xff] 0.0
          %426 = vst [vmem:[#allocation2 + $0xd8] sm:$0xff] 0.0
          %427 = vst [vmem:[#allocation2 + $0xe0] sm:$0xff] 0.0
          %428 = vst [vmem:[#allocation2 + $0xe8] sm:$0xff] 0.0
          %429 = vst [vmem:[#allocation2 + $0xf0] sm:$0xff] 0.0
          %430 = vst [vmem:[#allocation2 + $0xf8] sm:$0xff] 0.0
        $region74: #{gnn_stack_forward.6} parent=65 // pred_fallthru
          _
        %v431 = vld [vmem:[#allocation2] sm:$0xff]
        %v432 = vld [vmem:[#allocation2 + $0x8] sm:$0xff]
        %v433 = vld [vmem:[#allocation2 + $0x10] sm:$0xff]
        %v434 = vld [vmem:[#allocation2 + $0x18] sm:$0xff]
        %v435 = vld [vmem:[#allocation2 + $0x20] sm:$0xff]
        %v436 = vld [vmem:[#allocation2 + $0x28] sm:$0xff]
        %v437 = vld [vmem:[#allocation2 + $0x30] sm:$0xff]
        %v438 = vld [vmem:[#allocation2 + $0x38] sm:$0xff]
        %v439 = vld [vmem:[#allocation2 + $0x40] sm:$0xff]
        %v440 = vld [vmem:[#allocation2 + $0x48] sm:$0xff]
        %v441 = vld [vmem:[#allocation2 + $0x50] sm:$0xff]
        %v442 = vld [vmem:[#allocation2 + $0x58] sm:$0xff]
        %v443 = vld [vmem:[#allocation2 + $0x60] sm:$0xff]
        %v444 = vld [vmem:[#allocation2 + $0x68] sm:$0xff]
        %v445 = vld [vmem:[#allocation2 + $0x70] sm:$0xff]
        %v446 = vld [vmem:[#allocation2 + $0x78] sm:$0xff]
        %v447 = vld [vmem:[#allocation2 + $0x80] sm:$0xff]
        %v448 = vld [vmem:[#allocation2 + $0x88] sm:$0xff]
        %v449 = vld [vmem:[#allocation2 + $0x90] sm:$0xff]
        %v450 = vld [vmem:[#allocation2 + $0x98] sm:$0xff]
        %v451 = vld [vmem:[#allocation2 + $0xa0] sm:$0xff]
        %v452 = vld [vmem:[#allocation2 + $0xa8] sm:$0xff]
        %v453 = vld [vmem:[#allocation2 + $0xb0] sm:$0xff]
        %v454 = vld [vmem:[#allocation2 + $0xb8] sm:$0xff]
        %v455 = vld [vmem:[#allocation2 + $0xc0] sm:$0xff]
        %v456 = vld [vmem:[#allocation2 + $0xc8] sm:$0xff]
        %v457 = vld [vmem:[#allocation2 + $0xd0] sm:$0xff]
        %v458 = vld [vmem:[#allocation2 + $0xd8] sm:$0xff]
        %v459 = vld [vmem:[#allocation2 + $0xe0] sm:$0xff]
        %v460 = vld [vmem:[#allocation2 + $0xe8] sm:$0xff]
        %v461 = vld [vmem:[#allocation2 + $0xf0] sm:$0xff]
        %v462 = vld [vmem:[#allocation2 + $0xf8] sm:$0xff]
        %v463 = vld [vmem:[%s343] sm:$0xff]
        %v464 = vld [vmem:[%s343 + $0x8] sm:$0xff]
        %v465 = vld [vmem:[%s343 + $0x10] sm:$0xff]
        %v466 = vld [vmem:[%s343 + $0x18] sm:$0xff]
        %v467 = vld [vmem:[%s343 + $0x20] sm:$0xff]
        %v468 = vld [vmem:[%s343 + $0x28] sm:$0xff]
        %v469 = vld [vmem:[%s343 + $0x30] sm:$0xff]
        %v470 = vld [vmem:[%s343 + $0x38] sm:$0xff]
        %v471 = vld [vmem:[%s343 + $0x40] sm:$0xff]
        %v472 = vld [vmem:[%s343 + $0x48] sm:$0xff]
        %v473 = vld [vmem:[%s343 + $0x50] sm:$0xff]
        %v474 = vld [vmem:[%s343 + $0x58] sm:$0xff]
        %v475 = vld [vmem:[%s343 + $0x60] sm:$0xff]
        %v476 = vld [vmem:[%s343 + $0x68] sm:$0xff]
        %v477 = vld [vmem:[%s343 + $0x70] sm:$0xff]
        %v478 = vld [vmem:[%s343 + $0x78] sm:$0xff]
        %v479 = vld [vmem:[%s343 + $0x80] sm:$0xff]
        %v480 = vld [vmem:[%s343 + $0x88] sm:$0xff]
        %v481 = vld [vmem:[%s343 + $0x90] sm:$0xff]
        %v482 = vld [vmem:[%s343 + $0x98] sm:$0xff]
        %v483 = vld [vmem:[%s343 + $0xa0] sm:$0xff]
        %v484 = vld [vmem:[%s343 + $0xa8] sm:$0xff]
        %v485 = vld [vmem:[%s343 + $0xb0] sm:$0xff]
        %v486 = vld [vmem:[%s343 + $0xb8] sm:$0xff]
        %v487 = vld [vmem:[%s343 + $0xc0] sm:$0xff]
        %v488 = vld [vmem:[%s343 + $0xc8] sm:$0xff]
        %v489 = vld [vmem:[%s343 + $0xd0] sm:$0xff]
        %v490 = vld [vmem:[%s343 + $0xd8] sm:$0xff]
        %v491 = vld [vmem:[%s343 + $0xe0] sm:$0xff]
        %v492 = vld [vmem:[%s343 + $0xe8] sm:$0xff]
        %v493 = vld [vmem:[%s343 + $0xf0] sm:$0xff]
        %v494 = vld [vmem:[%s343 + $0xf8] sm:$0xff]
        %v495 = vld [vmem:[%s380] sm:$0xf]
        %v496 = vld [vmem:[%s380 + $0x4] sm:$0xf]
        %v497 = vld [vmem:[%s380 + $0x8] sm:$0xf]
        %v498 = vld [vmem:[%s380 + $0xc] sm:$0xf]
        %v499 = vld [vmem:[%s380 + $0x10] sm:$0xf]
        %v500 = vld [vmem:[%s380 + $0x14] sm:$0xf]
        %v501 = vld [vmem:[%s380 + $0x18] sm:$0xf]
        %v502 = vld [vmem:[%s380 + $0x1c] sm:$0xf]
        %v503 = vld [vmem:[%s380 + $0x20] sm:$0xf]
        %v504 = vld [vmem:[%s380 + $0x24] sm:$0xf]
        %v505 = vld [vmem:[%s380 + $0x28] sm:$0xf]
        %v506 = vld [vmem:[%s380 + $0x2c] sm:$0xf]
        %v507 = vld [vmem:[%s380 + $0x30] sm:$0xf]
        %v508 = vld [vmem:[%s380 + $0x34] sm:$0xf]
        %v509 = vld [vmem:[%s380 + $0x38] sm:$0xf]
        %v510 = vld [vmem:[%s380 + $0x3c] sm:$0xf]
        %v511 = vld [vmem:[%s380 + $0x40] sm:$0xf]
        %v512 = vld [vmem:[%s380 + $0x44] sm:$0xf]
        %v513 = vld [vmem:[%s380 + $0x48] sm:$0xf]
        %v514 = vld [vmem:[%s380 + $0x4c] sm:$0xf]
        %v515 = vld [vmem:[%s380 + $0x50] sm:$0xf]
        %v516 = vld [vmem:[%s380 + $0x54] sm:$0xf]
        %v517 = vld [vmem:[%s380 + $0x58] sm:$0xf]
        %v518 = vld [vmem:[%s380 + $0x5c] sm:$0xf]
        %v519 = vld [vmem:[%s380 + $0x60] sm:$0xf]
        %v520 = vld [vmem:[%s380 + $0x64] sm:$0xf]
        %v521 = vld [vmem:[%s380 + $0x68] sm:$0xf]
        %v522 = vld [vmem:[%s380 + $0x6c] sm:$0xf]
        %v523 = vld [vmem:[%s380 + $0x70] sm:$0xf]
        %v524 = vld [vmem:[%s380 + $0x74] sm:$0xf]
        %v525 = vld [vmem:[%s380 + $0x78] sm:$0xf]
        %v526 = vld [vmem:[%s380 + $0x7c] sm:$0xf]
        %v559 = vunpack.c.l.b16 %v463
        %v560 = vunpack.c.h.b16 %v463
        %v561 = vunpack.c.l.b16 %v464
        %v562 = vunpack.c.h.b16 %v464
        %v563 = vunpack.c.l.b16 %v465
        %v564 = vunpack.c.h.b16 %v465
        %v565 = vunpack.c.l.b16 %v466
        %v566 = vunpack.c.h.b16 %v466
        %v567 = vunpack.c.l.b16 %v467
        %v568 = vunpack.c.h.b16 %v467
        %v569 = vunpack.c.l.b16 %v468
        %v570 = vunpack.c.h.b16 %v468
        %v571 = vunpack.c.l.b16 %v469
        %v572 = vunpack.c.h.b16 %v469
        %v573 = vunpack.c.l.b16 %v470
        %v574 = vunpack.c.h.b16 %v470
        %v575 = vunpack.c.l.b16 %v471
        %v576 = vunpack.c.h.b16 %v471
        %v577 = vunpack.c.l.b16 %v472
        %v578 = vunpack.c.h.b16 %v472
        %v579 = vunpack.c.l.b16 %v473
        %v580 = vunpack.c.h.b16 %v473
        %v581 = vunpack.c.l.b16 %v474
        %v582 = vunpack.c.h.b16 %v474
        %v583 = vunpack.c.l.b16 %v475
        %v584 = vunpack.c.h.b16 %v475
        %v585 = vunpack.c.l.b16 %v476
        %v586 = vunpack.c.h.b16 %v476
        %v587 = vunpack.c.l.b16 %v477
        %v588 = vunpack.c.h.b16 %v477
        %v589 = vunpack.c.l.b16 %v478
        %v590 = vunpack.c.h.b16 %v478
        %v591 = vunpack.c.l.b16 %v479
        %v592 = vunpack.c.h.b16 %v479
        %v593 = vunpack.c.l.b16 %v480
        %v594 = vunpack.c.h.b16 %v480
        %v595 = vunpack.c.l.b16 %v481
        %v596 = vunpack.c.h.b16 %v481
        %v597 = vunpack.c.l.b16 %v482
        %v598 = vunpack.c.h.b16 %v482
        %v599 = vunpack.c.l.b16 %v483
        %v600 = vunpack.c.h.b16 %v483
        %v601 = vunpack.c.l.b16 %v484
        %v602 = vunpack.c.h.b16 %v484
        %v603 = vunpack.c.l.b16 %v485
        %v604 = vunpack.c.h.b16 %v485
        %v605 = vunpack.c.l.b16 %v486
        %v606 = vunpack.c.h.b16 %v486
        %v607 = vunpack.c.l.b16 %v487
        %v608 = vunpack.c.h.b16 %v487
        %v609 = vunpack.c.l.b16 %v488
        %v610 = vunpack.c.h.b16 %v488
        %v611 = vunpack.c.l.b16 %v489
        %v612 = vunpack.c.h.b16 %v489
        %v613 = vunpack.c.l.b16 %v490
        %v614 = vunpack.c.h.b16 %v490
        %v615 = vunpack.c.l.b16 %v491
        %v616 = vunpack.c.h.b16 %v491
        %v617 = vunpack.c.l.b16 %v492
        %v618 = vunpack.c.h.b16 %v492
        %v619 = vunpack.c.l.b16 %v493
        %v620 = vunpack.c.h.b16 %v493
        %v621 = vunpack.c.l.b16 %v494
        %v622 = vunpack.c.h.b16 %v494
        %v623 = vpack.c.b16 %v561, %v559
        %v624 = vpack.c.b16 %v562, %v560
        %v625 = vpack.c.b16 %v565, %v563
        %v626 = vpack.c.b16 %v566, %v564
        %v627 = vpack.c.b16 %v569, %v567
        %v628 = vpack.c.b16 %v570, %v568
        %v629 = vpack.c.b16 %v573, %v571
        %v630 = vpack.c.b16 %v574, %v572
        %v631 = vpack.c.b16 %v577, %v575
        %v632 = vpack.c.b16 %v578, %v576
        %v633 = vpack.c.b16 %v581, %v579
        %v634 = vpack.c.b16 %v582, %v580
        %v635 = vpack.c.b16 %v585, %v583
        %v636 = vpack.c.b16 %v586, %v584
        %v637 = vpack.c.b16 %v589, %v587
        %v638 = vpack.c.b16 %v590, %v588
        %v639 = vpack.c.b16 %v593, %v591
        %v640 = vpack.c.b16 %v594, %v592
        %v641 = vpack.c.b16 %v597, %v595
        %v642 = vpack.c.b16 %v598, %v596
        %v643 = vpack.c.b16 %v601, %v599
        %v644 = vpack.c.b16 %v602, %v600
        %v645 = vpack.c.b16 %v605, %v603
        %v646 = vpack.c.b16 %v606, %v604
        %v647 = vpack.c.b16 %v609, %v607
        %v648 = vpack.c.b16 %v610, %v608
        %v649 = vpack.c.b16 %v613, %v611
        %v650 = vpack.c.b16 %v614, %v612
        %v651 = vpack.c.b16 %v617, %v615
        %v652 = vpack.c.b16 %v618, %v616
        %v653 = vpack.c.b16 %v621, %v619
        %v654 = vpack.c.b16 %v622, %v620
        %v719 = vunpack.c.l.b16 %v495
        %v720 = vunpack.c.l.b16 %v496
        %v721 = vunpack.c.l.b16 %v497
        %v722 = vunpack.c.l.b16 %v498
        %v723 = vunpack.c.l.b16 %v499
        %v724 = vunpack.c.l.b16 %v500
        %v725 = vunpack.c.l.b16 %v501
        %v726 = vunpack.c.l.b16 %v502
        %v727 = vunpack.c.l.b16 %v503
        %v728 = vunpack.c.l.b16 %v504
        %v729 = vunpack.c.l.b16 %v505
        %v730 = vunpack.c.l.b16 %v506
        %v731 = vunpack.c.l.b16 %v507
        %v732 = vunpack.c.l.b16 %v508
        %v733 = vunpack.c.l.b16 %v509
        %v734 = vunpack.c.l.b16 %v510
        %v735 = vunpack.c.l.b16 %v511
        %v736 = vunpack.c.l.b16 %v512
        %v737 = vunpack.c.l.b16 %v513
        %v738 = vunpack.c.l.b16 %v514
        %v739 = vunpack.c.l.b16 %v515
        %v740 = vunpack.c.l.b16 %v516
        %v741 = vunpack.c.l.b16 %v517
        %v742 = vunpack.c.l.b16 %v518
        %v743 = vunpack.c.l.b16 %v519
        %v744 = vunpack.c.l.b16 %v520
        %v745 = vunpack.c.l.b16 %v521
        %v746 = vunpack.c.l.b16 %v522
        %v747 = vunpack.c.l.b16 %v523
        %v748 = vunpack.c.l.b16 %v524
        %v749 = vunpack.c.l.b16 %v525
        %v750 = vunpack.c.l.b16 %v526
        %v751 = vpack.c.b16 %v720, %v719
        %v752 = vpack.c.b16 %v722, %v721
        %v753 = vpack.c.b16 %v724, %v723
        %v754 = vpack.c.b16 %v726, %v725
        %v755 = vpack.c.b16 %v728, %v727
        %v756 = vpack.c.b16 %v730, %v729
        %v757 = vpack.c.b16 %v732, %v731
        %v758 = vpack.c.b16 %v734, %v733
        %v759 = vpack.c.b16 %v736, %v735
        %v760 = vpack.c.b16 %v738, %v737
        %v761 = vpack.c.b16 %v740, %v739
        %v762 = vpack.c.b16 %v742, %v741
        %v763 = vpack.c.b16 %v744, %v743
        %v764 = vpack.c.b16 %v746, %v745
        %v765 = vpack.c.b16 %v748, %v747
        %v766 = vpack.c.b16 %v750, %v749
        %783 = vmatprep.subr.bf16.mxu0 0
        %784 = vmatpush1.bf16.msra.mxu0 %v751
        %785 = vmatprep.subr.bf16.mxu0 0
        %786 = vmatpush1.bf16.msra.mxu0 %v752
        %787 = vmatprep.subr.bf16.mxu0 0
        %788 = vmatpush1.bf16.msra.mxu0 %v753
        %789 = vmatprep.subr.bf16.mxu0 0
        %790 = vmatpush1.bf16.msra.mxu0 %v754
        %791 = vmatprep.subr.bf16.mxu0 0
        %792 = vmatpush1.bf16.msra.mxu0 %v755
        %793 = vmatprep.subr.bf16.mxu0 0
        %794 = vmatpush1.bf16.msra.mxu0 %v756
        %795 = vmatprep.subr.bf16.mxu0 0
        %796 = vmatpush1.bf16.msra.mxu0 %v757
        %797 = vmatprep.subr.bf16.mxu0 0
        %798 = vmatpush1.bf16.msra.mxu0 %v758
        %799 = vmatprep.subr.bf16.mxu0 0
        %800 = vmatpush1.bf16.msra.mxu0 %v759
        %801 = vmatprep.subr.bf16.mxu0 0
        %802 = vmatpush1.bf16.msra.mxu0 %v760
        %803 = vmatprep.subr.bf16.mxu0 0
        %804 = vmatpush1.bf16.msra.mxu0 %v761
        %805 = vmatprep.subr.bf16.mxu0 0
        %806 = vmatpush1.bf16.msra.mxu0 %v762
        %807 = vmatprep.subr.bf16.mxu0 0
        %808 = vmatpush1.bf16.msra.mxu0 %v763
        %809 = vmatprep.subr.bf16.mxu0 0
        %810 = vmatpush1.bf16.msra.mxu0 %v764
        %811 = vmatprep.subr.bf16.mxu0 0
        %812 = vmatpush1.bf16.msra.mxu0 %v765
        %813 = vmatprep.subr.bf16.mxu0 0
        %814 = vmatpush1.bf16.msra.mxu0 %v766
        %815 = vmatprep.mubr.bf16.mxu0 %v624
        %816 = vmatmul.mubr.bf16.gmra.mrb[0].mxu0 %v623
        %v817 = vpop.f32.mrb[0].mxu0
        %v818 = vadd.f32 0.0, %v817
        %v819 = vpop.f32.mrb[0].mxu0
        %v820 = vpop.f32.mrb[0].mxu0
        %v821 = vadd.f32 0.0, %v820
        %v822 = vpop.f32.mrb[0].mxu0
        %823 = vmatprep.mubr.bf16.mxu0 %v626
        %824 = vmatmul.mubr.bf16.gmra.mrb[0].mxu0 %v625
        %v825 = vpop.f32.mrb[0].mxu0
        %v826 = vadd.f32 0.0, %v825
        %v827 = vpop.f32.mrb[0].mxu0
        %v828 = vpop.f32.mrb[0].mxu0
        %v829 = vadd.f32 0.0, %v828
        %v830 = vpop.f32.mrb[0].mxu0
        %831 = vmatprep.mubr.bf16.mxu0 %v628
        %832 = vmatmul.mubr.bf16.gmra.mrb[0].mxu0 %v627
        %v833 = vpop.f32.mrb[0].mxu0
        %v834 = vadd.f32 0.0, %v833
        %v835 = vpop.f32.mrb[0].mxu0
        %v836 = vpop.f32.mrb[0].mxu0
        %v837 = vadd.f32 0.0, %v836
        %v838 = vpop.f32.mrb[0].mxu0
        %839 = vmatprep.mubr.bf16.mxu0 %v630
        %840 = vmatmul.mubr.bf16.gmra.mrb[0].mxu0 %v629
        %v841 = vpop.f32.mrb[0].mxu0
        %v842 = vadd.f32 0.0, %v841
        %v843 = vpop.f32.mrb[0].mxu0
        %v844 = vpop.f32.mrb[0].mxu0
        %v845 = vadd.f32 0.0, %v844
        %v846 = vpop.f32.mrb[0].mxu0
        %847 = vmatprep.mubr.bf16.mxu0 %v632
        %848 = vmatmul.mubr.bf16.gmra.mrb[0].mxu0 %v631
        %v849 = vpop.f32.mrb[0].mxu0
        %v850 = vadd.f32 0.0, %v849
        %v851 = vpop.f32.mrb[0].mxu0
        %v852 = vpop.f32.mrb[0].mxu0
        %v853 = vadd.f32 0.0, %v852
        %v854 = vpop.f32.mrb[0].mxu0
        %855 = vmatprep.mubr.bf16.mxu0 %v634
        %856 = vmatmul.mubr.bf16.gmra.mrb[0].mxu0 %v633
        %v857 = vpop.f32.mrb[0].mxu0
        %v858 = vadd.f32 0.0, %v857
        %v859 = vpop.f32.mrb[0].mxu0
        %v860 = vpop.f32.mrb[0].mxu0
        %v861 = vadd.f32 0.0, %v860
        %v862 = vpop.f32.mrb[0].mxu0
        %863 = vmatprep.mubr.bf16.mxu0 %v636
        %864 = vmatmul.mubr.bf16.gmra.mrb[0].mxu0 %v635
        %v865 = vpop.f32.mrb[0].mxu0
        %v866 = vadd.f32 0.0, %v865
        %v867 = vpop.f32.mrb[0].mxu0
        %v868 = vpop.f32.mrb[0].mxu0
        %v869 = vadd.f32 0.0, %v868
        %v870 = vpop.f32.mrb[0].mxu0
        %871 = vmatprep.mubr.bf16.mxu0 %v638
        %872 = vmatmul.mubr.bf16.gmra.mrb[0].mxu0 %v637
        %v873 = vpop.f32.mrb[0].mxu0
        %v874 = vadd.f32 0.0, %v873
        %v875 = vpop.f32.mrb[0].mxu0
        %v876 = vpop.f32.mrb[0].mxu0
        %v877 = vadd.f32 0.0, %v876
        %v878 = vpop.f32.mrb[0].mxu0
        %879 = vmatprep.mubr.bf16.mxu0 %v640
        %880 = vmatmul.mubr.bf16.gmra.mrb[0].mxu0 %v639
        %v881 = vpop.f32.mrb[0].mxu0
        %v882 = vadd.f32 0.0, %v881
        %v883 = vpop.f32.mrb[0].mxu0
        %v884 = vpop.f32.mrb[0].mxu0
        %v885 = vadd.f32 0.0, %v884
        %v886 = vpop.f32.mrb[0].mxu0
        %887 = vmatprep.mubr.bf16.mxu0 %v642
        %888 = vmatmul.mubr.bf16.gmra.mrb[0].mxu0 %v641
        %v889 = vpop.f32.mrb[0].mxu0
        %v890 = vadd.f32 0.0, %v889
        %v891 = vpop.f32.mrb[0].mxu0
        %v892 = vpop.f32.mrb[0].mxu0
        %v893 = vadd.f32 0.0, %v892
        %v894 = vpop.f32.mrb[0].mxu0
        %895 = vmatprep.mubr.bf16.mxu0 %v644
        %896 = vmatmul.mubr.bf16.gmra.mrb[0].mxu0 %v643
        %v897 = vpop.f32.mrb[0].mxu0
        %v898 = vadd.f32 0.0, %v897
        %v899 = vpop.f32.mrb[0].mxu0
        %v900 = vpop.f32.mrb[0].mxu0
        %v901 = vadd.f32 0.0, %v900
        %v902 = vpop.f32.mrb[0].mxu0
        %903 = vmatprep.mubr.bf16.mxu0 %v646
        %904 = vmatmul.mubr.bf16.gmra.mrb[0].mxu0 %v645
        %v905 = vpop.f32.mrb[0].mxu0
        %v906 = vadd.f32 0.0, %v905
        %v907 = vpop.f32.mrb[0].mxu0
        %v908 = vpop.f32.mrb[0].mxu0
        %v909 = vadd.f32 0.0, %v908
        %v910 = vpop.f32.mrb[0].mxu0
        %911 = vmatprep.mubr.bf16.mxu0 %v648
        %912 = vmatmul.mubr.bf16.gmra.mrb[0].mxu0 %v647
        %v913 = vpop.f32.mrb[0].mxu0
        %v914 = vadd.f32 0.0, %v913
        %v915 = vpop.f32.mrb[0].mxu0
        %v916 = vpop.f32.mrb[0].mxu0
        %v917 = vadd.f32 0.0, %v916
        %v918 = vpop.f32.mrb[0].mxu0
        %919 = vmatprep.mubr.bf16.mxu0 %v650
        %920 = vmatmul.mubr.bf16.gmra.mrb[0].mxu0 %v649
        %v921 = vpop.f32.mrb[0].mxu0
        %v922 = vadd.f32 0.0, %v921
        %v923 = vpop.f32.mrb[0].mxu0
        %v924 = vpop.f32.mrb[0].mxu0
        %v925 = vadd.f32 0.0, %v924
        %v926 = vpop.f32.mrb[0].mxu0
        %927 = vmatprep.mubr.bf16.mxu0 %v652
        %928 = vmatmul.mubr.bf16.gmra.mrb[0].mxu0 %v651
        %v929 = vpop.f32.mrb[0].mxu0
        %v930 = vadd.f32 0.0, %v929
        %v931 = vpop.f32.mrb[0].mxu0
        %v932 = vpop.f32.mrb[0].mxu0
        %v933 = vadd.f32 0.0, %v932
        %v934 = vpop.f32.mrb[0].mxu0
        %935 = vmatprep.mubr.bf16.mxu0 %v654
        %936 = vmatmul.mubr.bf16.gmra.mrb[0].mxu0 %v653
        %v937 = vpop.f32.mrb[0].mxu0
        %v938 = vadd.f32 0.0, %v937
        %v939 = vpop.f32.mrb[0].mxu0
        %v940 = vpop.f32.mrb[0].mxu0
        %v941 = vadd.f32 0.0, %v940
        %v942 = vpop.f32.mrb[0].mxu0
        %943 = vdwg.mxu0
        %v944 = vadd.f32 %v431, %v818
        %v945 = vadd.f32 %v432, %v821
        %v946 = vadd.f32 %v433, %v826
        %v947 = vadd.f32 %v434, %v829
        %v948 = vadd.f32 %v435, %v834
        %v949 = vadd.f32 %v436, %v837
        %v950 = vadd.f32 %v437, %v842
        %v951 = vadd.f32 %v438, %v845
        %v952 = vadd.f32 %v439, %v850
        %v953 = vadd.f32 %v440, %v853
        %v954 = vadd.f32 %v441, %v858
        %v955 = vadd.f32 %v442, %v861
        %v956 = vadd.f32 %v443, %v866
        %v957 = vadd.f32 %v444, %v869
        %v958 = vadd.f32 %v445, %v874
        %v959 = vadd.f32 %v446, %v877
        %v960 = vadd.f32 %v447, %v882
        %v961 = vadd.f32 %v448, %v885
        %v962 = vadd.f32 %v449, %v890
        %v963 = vadd.f32 %v450, %v893
        %v964 = vadd.f32 %v451, %v898
        %v965 = vadd.f32 %v452, %v901
        %v966 = vadd.f32 %v453, %v906
        %v967 = vadd.f32 %v454, %v909
        %v968 = vadd.f32 %v455, %v914
        %v969 = vadd.f32 %v456, %v917
        %v970 = vadd.f32 %v457, %v922
        %v971 = vadd.f32 %v458, %v925
        %v972 = vadd.f32 %v459, %v930
        %v973 = vadd.f32 %v460, %v933
        %v974 = vadd.f32 %v461, %v938
        %v975 = vadd.f32 %v462, %v941
        %976 = vst [vmem:[#allocation2] sm:$0xff] %v944
        %977 = vst [vmem:[#allocation2 + $0x8] sm:$0xff] %v945
        %978 = vst [vmem:[#allocation2 + $0x10] sm:$0xff] %v946
        %979 = vst [vmem:[#allocation2 + $0x18] sm:$0xff] %v947
        %980 = vst [vmem:[#allocation2 + $0x20] sm:$0xff] %v948
        %981 = vst [vmem:[#allocation2 + $0x28] sm:$0xff] %v949
        %982 = vst [vmem:[#allocation2 + $0x30] sm:$0xff] %v950
        %983 = vst [vmem:[#allocation2 + $0x38] sm:$0xff] %v951
        %984 = vst [vmem:[#allocation2 + $0x40] sm:$0xff] %v952
        %985 = vst [vmem:[#allocation2 + $0x48] sm:$0xff] %v953
        %986 = vst [vmem:[#allocation2 + $0x50] sm:$0xff] %v954
        %987 = vst [vmem:[#allocation2 + $0x58] sm:$0xff] %v955
        %988 = vst [vmem:[#allocation2 + $0x60] sm:$0xff] %v956
        %989 = vst [vmem:[#allocation2 + $0x68] sm:$0xff] %v957
        %990 = vst [vmem:[#allocation2 + $0x70] sm:$0xff] %v958
        %991 = vst [vmem:[#allocation2 + $0x78] sm:$0xff] %v959
        %992 = vst [vmem:[#allocation2 + $0x80] sm:$0xff] %v960
        %993 = vst [vmem:[#allocation2 + $0x88] sm:$0xff] %v961
        %994 = vst [vmem:[#allocation2 + $0x90] sm:$0xff] %v962
        %995 = vst [vmem:[#allocation2 + $0x98] sm:$0xff] %v963
        %996 = vst [vmem:[#allocation2 + $0xa0] sm:$0xff] %v964
        %997 = vst [vmem:[#allocation2 + $0xa8] sm:$0xff] %v965
        %998 = vst [vmem:[#allocation2 + $0xb0] sm:$0xff] %v966
        %999 = vst [vmem:[#allocation2 + $0xb8] sm:$0xff] %v967
        %1000 = vst [vmem:[#allocation2 + $0xc0] sm:$0xff] %v968
        %1001 = vst [vmem:[#allocation2 + $0xc8] sm:$0xff] %v969
        %1002 = vst [vmem:[#allocation2 + $0xd0] sm:$0xff] %v970
        %1003 = vst [vmem:[#allocation2 + $0xd8] sm:$0xff] %v971
        %1004 = vst [vmem:[#allocation2 + $0xe0] sm:$0xff] %v972
        %1005 = vst [vmem:[#allocation2 + $0xe8] sm:$0xff] %v973
        %1006 = vst [vmem:[#allocation2 + $0xf0] sm:$0xff] %v974
        %1007 = vst [vmem:[#allocation2 + $0xf8] sm:$0xff] %v975
        %p1008 = scmp.eq.s32.totalorder %s19, 1
        // Predicated region
        $region75: #{gnn_stack_forward.6} parent=65 // pred_check
          %p1009 = pneg %p1008
        $region76: #{gnn_stack_forward.6} parent=65 // pred_check_branch
          %1011 = sbr.rel (%p1009) target = $region78
        $region77: #{gnn_stack_forward.6} parent=65 // pred_region
          %v1012 = vld [vmem:[#allocation2] sm:$0xff]
          %v1013 = vld [vmem:[#allocation2 + $0x8] sm:$0xff]
          %v1014 = vld [vmem:[#allocation2 + $0x10] sm:$0xff]
          %v1015 = vld [vmem:[#allocation2 + $0x18] sm:$0xff]
          %v1016 = vld [vmem:[#allocation2 + $0x20] sm:$0xff]
          %v1017 = vld [vmem:[#allocation2 + $0x28] sm:$0xff]
          %v1018 = vld [vmem:[#allocation2 + $0x30] sm:$0xff]
          %v1019 = vld [vmem:[#allocation2 + $0x38] sm:$0xff]
          %v1020 = vld [vmem:[#allocation2 + $0x40] sm:$0xff]
          %v1021 = vld [vmem:[#allocation2 + $0x48] sm:$0xff]
          %v1022 = vld [vmem:[#allocation2 + $0x50] sm:$0xff]
          %v1023 = vld [vmem:[#allocation2 + $0x58] sm:$0xff]
          %v1024 = vld [vmem:[#allocation2 + $0x60] sm:$0xff]
          %v1025 = vld [vmem:[#allocation2 + $0x68] sm:$0xff]
          %v1026 = vld [vmem:[#allocation2 + $0x70] sm:$0xff]
          %v1027 = vld [vmem:[#allocation2 + $0x78] sm:$0xff]
          %v1028 = vld [vmem:[#allocation2 + $0x80] sm:$0xff]
          %v1029 = vld [vmem:[#allocation2 + $0x88] sm:$0xff]
          %v1030 = vld [vmem:[#allocation2 + $0x90] sm:$0xff]
          %v1031 = vld [vmem:[#allocation2 + $0x98] sm:$0xff]
          %v1032 = vld [vmem:[#allocation2 + $0xa0] sm:$0xff]
          %v1033 = vld [vmem:[#allocation2 + $0xa8] sm:$0xff]
          %v1034 = vld [vmem:[#allocation2 + $0xb0] sm:$0xff]
          %v1035 = vld [vmem:[#allocation2 + $0xb8] sm:$0xff]
          %v1036 = vld [vmem:[#allocation2 + $0xc0] sm:$0xff]
          %v1037 = vld [vmem:[#allocation2 + $0xc8] sm:$0xff]
          %v1038 = vld [vmem:[#allocation2 + $0xd0] sm:$0xff]
          %v1039 = vld [vmem:[#allocation2 + $0xd8] sm:$0xff]
          %v1040 = vld [vmem:[#allocation2 + $0xe0] sm:$0xff]
          %v1041 = vld [vmem:[#allocation2 + $0xe8] sm:$0xff]
          %v1042 = vld [vmem:[#allocation2 + $0xf0] sm:$0xff]
          %v1043 = vld [vmem:[#allocation2 + $0xf8] sm:$0xff]
          %v1044 = vld [vmem:[%s386] sm:$0xff]
          %v1045 = vld [vmem:[%s386 + $0x8] sm:$0xff]
          %v1046 = vld [vmem:[%s386 + $0x10] sm:$0xff]
          %v1047 = vld [vmem:[%s386 + $0x18] sm:$0xff]
          %v1048 = vld [vmem:[%s386 + $0x20] sm:$0xff]
          %v1049 = vld [vmem:[%s386 + $0x28] sm:$0xff]
          %v1050 = vld [vmem:[%s386 + $0x30] sm:$0xff]
          %v1051 = vld [vmem:[%s386 + $0x38] sm:$0xff]
          %v1052 = vld [vmem:[%s386 + $0x40] sm:$0xff]
          %v1053 = vld [vmem:[%s386 + $0x48] sm:$0xff]
          %v1054 = vld [vmem:[%s386 + $0x50] sm:$0xff]
          %v1055 = vld [vmem:[%s386 + $0x58] sm:$0xff]
          %v1056 = vld [vmem:[%s386 + $0x60] sm:$0xff]
          %v1057 = vld [vmem:[%s386 + $0x68] sm:$0xff]
          %v1058 = vld [vmem:[%s386 + $0x70] sm:$0xff]
          %v1059 = vld [vmem:[%s386 + $0x78] sm:$0xff]
          %v1060 = vld [vmem:[%s386 + $0x80] sm:$0xff]
          %v1061 = vld [vmem:[%s386 + $0x88] sm:$0xff]
          %v1062 = vld [vmem:[%s386 + $0x90] sm:$0xff]
          %v1063 = vld [vmem:[%s386 + $0x98] sm:$0xff]
          %v1064 = vld [vmem:[%s386 + $0xa0] sm:$0xff]
          %v1065 = vld [vmem:[%s386 + $0xa8] sm:$0xff]
          %v1066 = vld [vmem:[%s386 + $0xb0] sm:$0xff]
          %v1067 = vld [vmem:[%s386 + $0xb8] sm:$0xff]
          %v1068 = vld [vmem:[%s386 + $0xc0] sm:$0xff]
          %v1069 = vld [vmem:[%s386 + $0xc8] sm:$0xff]
          %v1070 = vld [vmem:[%s386 + $0xd0] sm:$0xff]
          %v1071 = vld [vmem:[%s386 + $0xd8] sm:$0xff]
          %v1072 = vld [vmem:[%s386 + $0xe0] sm:$0xff]
          %v1073 = vld [vmem:[%s386 + $0xe8] sm:$0xff]
          %v1074 = vld [vmem:[%s386 + $0xf0] sm:$0xff]
          %v1075 = vld [vmem:[%s386 + $0xf8] sm:$0xff]
          %v1076 = vadd.f32 %v1012, %v1044
          %v1077 = vadd.f32 %v1013, %v1045
          %v1078 = vadd.f32 %v1014, %v1046
          %v1079 = vadd.f32 %v1015, %v1047
          %v1080 = vadd.f32 %v1016, %v1048
          %v1081 = vadd.f32 %v1017, %v1049
          %v1082 = vadd.f32 %v1018, %v1050
          %v1083 = vadd.f32 %v1019, %v1051
          %v1084 = vadd.f32 %v1020, %v1052
          %v1085 = vadd.f32 %v1021, %v1053
          %v1086 = vadd.f32 %v1022, %v1054
          %v1087 = vadd.f32 %v1023, %v1055
          %v1088 = vadd.f32 %v1024, %v1056
          %v1089 = vadd.f32 %v1025, %v1057
          %v1090 = vadd.f32 %v1026, %v1058
          %v1091 = vadd.f32 %v1027, %v1059
          %v1092 = vadd.f32 %v1028, %v1060
          %v1093 = vadd.f32 %v1029, %v1061
          %v1094 = vadd.f32 %v1030, %v1062
          %v1095 = vadd.f32 %v1031, %v1063
          %v1096 = vadd.f32 %v1032, %v1064
          %v1097 = vadd.f32 %v1033, %v1065
          %v1098 = vadd.f32 %v1034, %v1066
          %v1099 = vadd.f32 %v1035, %v1067
          %v1100 = vadd.f32 %v1036, %v1068
          %v1101 = vadd.f32 %v1037, %v1069
          %v1102 = vadd.f32 %v1038, %v1070
          %v1103 = vadd.f32 %v1039, %v1071
          %v1104 = vadd.f32 %v1040, %v1072
          %v1105 = vadd.f32 %v1041, %v1073
          %v1106 = vadd.f32 %v1042, %v1074
          %v1107 = vadd.f32 %v1043, %v1075
          %v1108 = vsub.f32 0.0, %v1076
          %v1109 = vsub.f32 0.0, %v1077
          %v1110 = vsub.f32 0.0, %v1078
          %v1111 = vsub.f32 0.0, %v1079
          %v1112 = vsub.f32 0.0, %v1080
          %v1113 = vsub.f32 0.0, %v1081
          %v1114 = vsub.f32 0.0, %v1082
          %v1115 = vsub.f32 0.0, %v1083
          %v1116 = vsub.f32 0.0, %v1084
          %v1117 = vsub.f32 0.0, %v1085
          %v1118 = vsub.f32 0.0, %v1086
          %v1119 = vsub.f32 0.0, %v1087
          %v1120 = vsub.f32 0.0, %v1088
          %v1121 = vsub.f32 0.0, %v1089
          %v1122 = vsub.f32 0.0, %v1090
          %v1123 = vsub.f32 0.0, %v1091
          %v1124 = vsub.f32 0.0, %v1092
          %v1125 = vsub.f32 0.0, %v1093
          %v1126 = vsub.f32 0.0, %v1094
          %v1127 = vsub.f32 0.0, %v1095
          %v1128 = vsub.f32 0.0, %v1096
          %v1129 = vsub.f32 0.0, %v1097
          %v1130 = vsub.f32 0.0, %v1098
          %v1131 = vsub.f32 0.0, %v1099
          %v1132 = vsub.f32 0.0, %v1100
          %v1133 = vsub.f32 0.0, %v1101
          %v1134 = vsub.f32 0.0, %v1102
          %v1135 = vsub.f32 0.0, %v1103
          %v1136 = vsub.f32 0.0, %v1104
          %v1137 = vsub.f32 0.0, %v1105
          %v1138 = vsub.f32 0.0, %v1106
          %v1139 = vsub.f32 0.0, %v1107
          %v1140 = vmul.f32 %v1108, 1.442695
          %v1141 = vpow.pop %v1140
          %v1142 = vmul.f32 %v1109, 1.442695
          %v1143 = vpow.pop %v1142
          %v1144 = vmul.f32 %v1110, 1.442695
          %v1145 = vpow.pop %v1144
          %v1146 = vmul.f32 %v1111, 1.442695
          %v1147 = vpow.pop %v1146
          %v1148 = vmul.f32 %v1112, 1.442695
          %v1149 = vpow.pop %v1148
          %v1150 = vmul.f32 %v1113, 1.442695
          %v1151 = vpow.pop %v1150
          %v1152 = vmul.f32 %v1114, 1.442695
          %v1153 = vpow.pop %v1152
          %v1154 = vmul.f32 %v1115, 1.442695
          %v1155 = vpow.pop %v1154
          %v1156 = vmul.f32 %v1116, 1.442695
          %v1157 = vpow.pop %v1156
          %v1158 = vmul.f32 %v1117, 1.442695
          %v1159 = vpow.pop %v1158
          %v1160 = vmul.f32 %v1118, 1.442695
          %v1161 = vpow.pop %v1160
          %v1162 = vmul.f32 %v1119, 1.442695
          %v1163 = vpow.pop %v1162
          %v1164 = vmul.f32 %v1120, 1.442695
          %v1165 = vpow.pop %v1164
          %v1166 = vmul.f32 %v1121, 1.442695
          %v1167 = vpow.pop %v1166
          %v1168 = vmul.f32 %v1122, 1.442695
          %v1169 = vpow.pop %v1168
          %v1170 = vmul.f32 %v1123, 1.442695
          %v1171 = vpow.pop %v1170
          %v1172 = vmul.f32 %v1124, 1.442695
          %v1173 = vpow.pop %v1172
          %v1174 = vmul.f32 %v1125, 1.442695
          %v1175 = vpow.pop %v1174
          %v1176 = vmul.f32 %v1126, 1.442695
          %v1177 = vpow.pop %v1176
          %v1178 = vmul.f32 %v1127, 1.442695
          %v1179 = vpow.pop %v1178
          %v1180 = vmul.f32 %v1128, 1.442695
          %v1181 = vpow.pop %v1180
          %v1182 = vmul.f32 %v1129, 1.442695
          %v1183 = vpow.pop %v1182
          %v1184 = vmul.f32 %v1130, 1.442695
          %v1185 = vpow.pop %v1184
          %v1186 = vmul.f32 %v1131, 1.442695
          %v1187 = vpow.pop %v1186
          %v1188 = vmul.f32 %v1132, 1.442695
          %v1189 = vpow.pop %v1188
          %v1190 = vmul.f32 %v1133, 1.442695
          %v1191 = vpow.pop %v1190
          %v1192 = vmul.f32 %v1134, 1.442695
          %v1193 = vpow.pop %v1192
          %v1194 = vmul.f32 %v1135, 1.442695
          %v1195 = vpow.pop %v1194
          %v1196 = vmul.f32 %v1136, 1.442695
          %v1197 = vpow.pop %v1196
          %v1198 = vmul.f32 %v1137, 1.442695
          %v1199 = vpow.pop %v1198
          %v1200 = vmul.f32 %v1138, 1.442695
          %v1201 = vpow.pop %v1200
          %v1202 = vmul.f32 %v1139, 1.442695
          %v1203 = vpow.pop %v1202
          %v1204 = vadd.f32 %v1141, 1.0
          %v1205 = vadd.f32 %v1143, 1.0
          %v1206 = vadd.f32 %v1145, 1.0
          %v1207 = vadd.f32 %v1147, 1.0
          %v1208 = vadd.f32 %v1149, 1.0
          %v1209 = vadd.f32 %v1151, 1.0
          %v1210 = vadd.f32 %v1153, 1.0
          %v1211 = vadd.f32 %v1155, 1.0
          %v1212 = vadd.f32 %v1157, 1.0
          %v1213 = vadd.f32 %v1159, 1.0
          %v1214 = vadd.f32 %v1161, 1.0
          %v1215 = vadd.f32 %v1163, 1.0
          %v1216 = vadd.f32 %v1165, 1.0
          %v1217 = vadd.f32 %v1167, 1.0
          %v1218 = vadd.f32 %v1169, 1.0
          %v1219 = vadd.f32 %v1171, 1.0
          %v1220 = vadd.f32 %v1173, 1.0
          %v1221 = vadd.f32 %v1175, 1.0
          %v1222 = vadd.f32 %v1177, 1.0
          %v1223 = vadd.f32 %v1179, 1.0
          %v1224 = vadd.f32 %v1181, 1.0
          %v1225 = vadd.f32 %v1183, 1.0
          %v1226 = vadd.f32 %v1185, 1.0
          %v1227 = vadd.f32 %v1187, 1.0
          %v1228 = vadd.f32 %v1189, 1.0
          %v1229 = vadd.f32 %v1191, 1.0
          %v1230 = vadd.f32 %v1193, 1.0
          %v1231 = vadd.f32 %v1195, 1.0
          %v1232 = vadd.f32 %v1197, 1.0
          %v1233 = vadd.f32 %v1199, 1.0
          %v1234 = vadd.f32 %v1201, 1.0
          %v1235 = vadd.f32 %v1203, 1.0
          %v1236 = vrcp.pop %v1204
          %v1237 = vrcp.pop %v1205
          %v1238 = vrcp.pop %v1206
          %v1239 = vrcp.pop %v1207
          %v1240 = vrcp.pop %v1208
          %v1241 = vrcp.pop %v1209
          %v1242 = vrcp.pop %v1210
          %v1243 = vrcp.pop %v1211
          %v1244 = vrcp.pop %v1212
          %v1245 = vrcp.pop %v1213
          %v1246 = vrcp.pop %v1214
          %v1247 = vrcp.pop %v1215
          %v1248 = vrcp.pop %v1216
          %v1249 = vrcp.pop %v1217
          %v1250 = vrcp.pop %v1218
          %v1251 = vrcp.pop %v1219
          %v1252 = vrcp.pop %v1220
          %v1253 = vrcp.pop %v1221
          %v1254 = vrcp.pop %v1222
          %v1255 = vrcp.pop %v1223
          %v1256 = vrcp.pop %v1224
          %v1257 = vrcp.pop %v1225
          %v1258 = vrcp.pop %v1226
          %v1259 = vrcp.pop %v1227
          %v1260 = vrcp.pop %v1228
          %v1261 = vrcp.pop %v1229
          %v1262 = vrcp.pop %v1230
          %v1263 = vrcp.pop %v1231
          %v1264 = vrcp.pop %v1232
          %v1265 = vrcp.pop %v1233
          %v1266 = vrcp.pop %v1234
          %v1267 = vrcp.pop %v1235
          %v1268 = vmul.f32 %v1076, %v1236
          %v1269 = vmul.f32 %v1077, %v1237
          %v1270 = vmul.f32 %v1078, %v1238
          %v1271 = vmul.f32 %v1079, %v1239
          %v1272 = vmul.f32 %v1080, %v1240
          %v1273 = vmul.f32 %v1081, %v1241
          %v1274 = vmul.f32 %v1082, %v1242
          %v1275 = vmul.f32 %v1083, %v1243
          %v1276 = vmul.f32 %v1084, %v1244
          %v1277 = vmul.f32 %v1085, %v1245
          %v1278 = vmul.f32 %v1086, %v1246
          %v1279 = vmul.f32 %v1087, %v1247
          %v1280 = vmul.f32 %v1088, %v1248
          %v1281 = vmul.f32 %v1089, %v1249
          %v1282 = vmul.f32 %v1090, %v1250
          %v1283 = vmul.f32 %v1091, %v1251
          %v1284 = vmul.f32 %v1092, %v1252
          %v1285 = vmul.f32 %v1093, %v1253
          %v1286 = vmul.f32 %v1094, %v1254
          %v1287 = vmul.f32 %v1095, %v1255
          %v1288 = vmul.f32 %v1096, %v1256
          %v1289 = vmul.f32 %v1097, %v1257
          %v1290 = vmul.f32 %v1098, %v1258
          %v1291 = vmul.f32 %v1099, %v1259
          %v1292 = vmul.f32 %v1100, %v1260
          %v1293 = vmul.f32 %v1101, %v1261
          %v1294 = vmul.f32 %v1102, %v1262
          %v1295 = vmul.f32 %v1103, %v1263
          %v1296 = vmul.f32 %v1104, %v1264
          %v1297 = vmul.f32 %v1105, %v1265
          %v1298 = vmul.f32 %v1106, %v1266
          %v1299 = vmul.f32 %v1107, %v1267
          %1300 = vst [vmem:[%s392] sm:$0xff] %v1268
          %1301 = vst [vmem:[%s392 + $0x8] sm:$0xff] %v1269
          %1302 = vst [vmem:[%s392 + $0x10] sm:$0xff] %v1270
          %1303 = vst [vmem:[%s392 + $0x18] sm:$0xff] %v1271
          %1304 = vst [vmem:[%s392 + $0x20] sm:$0xff] %v1272
          %1305 = vst [vmem:[%s392 + $0x28] sm:$0xff] %v1273
          %1306 = vst [vmem:[%s392 + $0x30] sm:$0xff] %v1274
          %1307 = vst [vmem:[%s392 + $0x38] sm:$0xff] %v1275
          %1308 = vst [vmem:[%s392 + $0x40] sm:$0xff] %v1276
          %1309 = vst [vmem:[%s392 + $0x48] sm:$0xff] %v1277
          %1310 = vst [vmem:[%s392 + $0x50] sm:$0xff] %v1278
          %1311 = vst [vmem:[%s392 + $0x58] sm:$0xff] %v1279
          %1312 = vst [vmem:[%s392 + $0x60] sm:$0xff] %v1280
          %1313 = vst [vmem:[%s392 + $0x68] sm:$0xff] %v1281
          %1314 = vst [vmem:[%s392 + $0x70] sm:$0xff] %v1282
          %1315 = vst [vmem:[%s392 + $0x78] sm:$0xff] %v1283
          %1316 = vst [vmem:[%s392 + $0x80] sm:$0xff] %v1284
          %1317 = vst [vmem:[%s392 + $0x88] sm:$0xff] %v1285
          %1318 = vst [vmem:[%s392 + $0x90] sm:$0xff] %v1286
          %1319 = vst [vmem:[%s392 + $0x98] sm:$0xff] %v1287
          %1320 = vst [vmem:[%s392 + $0xa0] sm:$0xff] %v1288
          %1321 = vst [vmem:[%s392 + $0xa8] sm:$0xff] %v1289
          %1322 = vst [vmem:[%s392 + $0xb0] sm:$0xff] %v1290
          %1323 = vst [vmem:[%s392 + $0xb8] sm:$0xff] %v1291
          %1324 = vst [vmem:[%s392 + $0xc0] sm:$0xff] %v1292
          %1325 = vst [vmem:[%s392 + $0xc8] sm:$0xff] %v1293
          %1326 = vst [vmem:[%s392 + $0xd0] sm:$0xff] %v1294
          %1327 = vst [vmem:[%s392 + $0xd8] sm:$0xff] %v1295
          %1328 = vst [vmem:[%s392 + $0xe0] sm:$0xff] %v1296
          %1329 = vst [vmem:[%s392 + $0xe8] sm:$0xff] %v1297
          %1330 = vst [vmem:[%s392 + $0xf0] sm:$0xff] %v1298
          %1331 = vst [vmem:[%s392 + $0xf8] sm:$0xff] %v1299
        $region78: #{gnn_stack_forward.6} parent=65 // pred_fallthru
          _
        %s1332 = smul.u32 32, %s18
        %p1333 = scmp.lt.s32.totalorder %s1332, 63
        %s1334 = scalar_select %p1333, %s1332, 63
        %s1335 = smul.addr %s1334, 8
        %s1336 = scalar_lea.vmem %s3, %s1335
        // Predicated region
        $region79: #{gnn_stack_forward.6} parent=65 // pred_check
          %p1337 = pneg %p124
        $region80: #{gnn_stack_forward.6} parent=65 // pred_check_branch
          %1339 = sbr.rel (%p1337) target = $region82
        $region81: #{gnn_stack_forward.6} parent=65 // pred_region
          %s1340 = smul.u32 32, %s18
        $region82: #{gnn_stack_forward.6} parent=65 // pred_fallthru
          _
      $region66: #{gnn_stack_forward.6} parent=5 // pred_fallthru
        _
      %p1341 = scmp.le.s32.totalorder 2, %s9
      // Predicated region
      $region83: #{gnn_stack_forward.6} parent=5 // pred_check
        %p1342 = pneg %p1341
      $region84: #{gnn_stack_forward.6} parent=5 // pred_check_branch
        %1344 = sbr.rel (%p1342) target = $region86
      $region85: #{gnn_stack_forward.6} parent=5 // pred_region
        %s1345 = ssub.s32 %s9, 2
        // Predicated region
        $region87: #{gnn_stack_forward.6} parent=85 // pred_check
          %p1346 = pneg %p130
        $region88: #{gnn_stack_forward.6} parent=85 // pred_check_branch
          %1348 = sbr.rel (%p1346) target = $region90
        $region89: #{gnn_stack_forward.6} parent=85 // pred_region
          %s1349 = smul.u32 32, %s20
          %p1350 = scmp.lt.s32.totalorder %s1349, 63
          %s1351 = scalar_select %p1350, %s1349, 63
          %s1352 = smul.addr %s1351, 8
          %s1353 = scalar_lea.vmem %s3, %s1352
        $region90: #{gnn_stack_forward.6} parent=85 // pred_fallthru
          _
      $region86: #{gnn_stack_forward.6} parent=5 // pred_fallthru
        _
    $region6: #{gnn_stack_forward.6} parent=1 // loop_footer
      %s13 = sadd.s32 1, %s9
    $region7: #{gnn_stack_forward.6} parent=1 // loop_footer_branch
      %8 = sbr.rel target = $region3
    $region8: #{gnn_stack_forward.6} parent=1 // loop_exit
      _

// kernel: gnn_stack_forward.9
$region0: #{gnn_stack_forward.9}
  #allocation0 [shape = 'u32[]', space=smem, size = 0x4, offset = 0x4, fixed_abs, tag = 'smem constant byte address 0x4 - core index']
  #allocation1 [shape = 'u32[144,128]{1,0:T(1,128)}', space=vmem, size = 0x12000, scoped, tag = 'internal scratch']
  %s0 = inlined_call_operand.vmem [shape: bf16[512,128], index: 0, kind: input, shape index: {}]
  %s1 = inlined_call_operand.vmem [shape: bf16[128,128], index: 1, kind: input, shape index: {}]
  %s2 = inlined_call_operand.vmem [shape: f32[1,128], index: 2, kind: input, shape index: {}]
  %s3 = inlined_call_operand.vmem [shape: bf16[128,128], index: 3, kind: input, shape index: {}]
  %s4 = inlined_call_operand.vmem [shape: f32[1,128], index: 4, kind: input, shape index: {}]
  %s5 = inlined_call_operand.vmem [shape: f32[512,128], index: 5, kind: output, shape index: {}]
  %s6 = sld [smem:[#allocation0]]
  $region53: #{gnn_stack_forward.9} parent=0
    _
  %s8 = ssub.s32 1, %s6
  %s9 = scalar_select 0, %s8, %s6
  loop: start=0, step=1, limit=4
  $region2: #{gnn_stack_forward.9} parent=0 // loop_pre_header
    _
  $region3: #{gnn_stack_forward.9} parent=0 // loop_header
    %s11 = sphi 0, %s15
    %p12 = scmp.ge.s32.totalorder %s11, 4
    %s21 = sphi 0, %s23
    %s24 = sphi 0, %s21
    %s25 = sphi 0, %s24
    %s41 = sphi 0, %s25
    %s45 = sphi 0, %s45
    %s47 = sphi 0, %s45
    %s48 = sphi 0, %s47
    %s62 = sphi 0, %s48
    %s66 = sphi 0, %s66
    %s68 = sphi 0, %s66
    %s69 = sphi 0, %s68
    %s83 = sphi 0, %s69
    %s87 = sphi 0, %s87
    %s89 = sphi 0, %s87
    %s90 = sphi 0, %s89
    %s104 = sphi 0, %s90
    %s108 = sphi 0, %s108
    %s110 = sphi 0, %s108
    %s111 = sphi 0, %s110
    %s125 = sphi 0, %s111
    %s131 = sphi 0, %s133
    %s134 = sphi 0, %s131
    %s135 = sphi 0, %s134
    %s151 = sphi 0, %s135
  $region4: #{gnn_stack_forward.9} parent=0 // loop_header_branch
    %14 = sbr.rel (%p12) target = $region8
  $region5: #{gnn_stack_forward.9} parent=0 // loop_body
    %s16 = ssub.s32 %s11, 1
    %s17 = ssub.s32 %s11, 2
    %s18 = sadd.s32 %s11, 1
    %s19 = ssub.s32 %s11, %s18
    %p20 = scmp.eq.s32.totalorder %s19, 0
    %s22 = sadd.s32 %s21, 1
    %s23 = scalar_select %p20, %s21, %s22
    %p26 = pneg %p20
    %p27 = scmp.eq.s32.totalorder %s11, 1
    %p28 = por %p26, %p27
    %p29 = scmp.ne.s32.totalorder %s21, %s24
    %p30 = scmp.eq.s32.totalorder %s11, 0
    %p31 = por %p29, %p30
    %p32 = scmp.ne.s32.totalorder %s21, %s24
    %p33 = scmp.eq.s32.totalorder %s16, 1
    %p34 = por %p32, %p33
    %p35 = scmp.ne.s32.totalorder %s24, %s25
    %p36 = scmp.eq.s32.totalorder %s16, 0
    %p37 = por %p35, %p36
    %p38 = scmp.ne.s32.totalorder %s24, %s25
    %p39 = scmp.eq.s32.totalorder %s17, 1
    %p40 = por %p38, %p39
    %p42 = scmp.ne.s32.totalorder %s25, %s41
    %p43 = scmp.eq.s32.totalorder %s17, 0
    %p44 = por %p42, %p43
    %s46 = sadd.s32 %s45, 1
    %p49 = scmp.eq.s32.totalorder %s11, 1
    %p50 = scmp.ne.s32.totalorder %s45, %s47
    %p51 = scmp.eq.s32.totalorder %s11, 0
    %p52 = por %p50, %p51
    %p53 = scmp.ne.s32.totalorder %s45, %s47
    %p54 = scmp.eq.s32.totalorder %s16, 1
    %p55 = por %p53, %p54
    %p56 = scmp.ne.s32.totalorder %s47, %s48
    %p57 = scmp.eq.s32.totalorder %s16, 0
    %p58 = por %p56, %p57
    %p59 = scmp.ne.s32.totalorder %s47, %s48
    %p60 = scmp.eq.s32.totalorder %s17, 1
    %p61 = por %p59, %p60
    %p63 = scmp.ne.s32.totalorder %s48, %s62
    %p64 = scmp.eq.s32.totalorder %s17, 0
    %p65 = por %p63, %p64
    %s67 = sadd.s32 %s66, 1
    %p70 = scmp.eq.s32.totalorder %s11, 1
    %p71 = scmp.ne.s32.totalorder %s66, %s68
    %p72 = scmp.eq.s32.totalorder %s11, 0
    %p73 = por %p71, %p72
    %p74 = scmp.ne.s32.totalorder %s66, %s68
    %p75 = scmp.eq.s32.totalorder %s16, 1
    %p76 = por %p74, %p75
    %p77 = scmp.ne.s32.totalorder %s68, %s69
    %p78 = scmp.eq.s32.totalorder %s16, 0
    %p79 = por %p77, %p78
    %p80 = scmp.ne.s32.totalorder %s68, %s69
    %p81 = scmp.eq.s32.totalorder %s17, 1
    %p82 = por %p80, %p81
    %p84 = scmp.ne.s32.totalorder %s69, %s83
    %p85 = scmp.eq.s32.totalorder %s17, 0
    %p86 = por %p84, %p85
    %s88 = sadd.s32 %s87, 1
    %p91 = scmp.eq.s32.totalorder %s11, 1
    %p92 = scmp.ne.s32.totalorder %s87, %s89
    %p93 = scmp.eq.s32.totalorder %s11, 0
    %p94 = por %p92, %p93
    %p95 = scmp.ne.s32.totalorder %s87, %s89
    %p96 = scmp.eq.s32.totalorder %s16, 1
    %p97 = por %p95, %p96
    %p98 = scmp.ne.s32.totalorder %s89, %s90
    %p99 = scmp.eq.s32.totalorder %s16, 0
    %p100 = por %p98, %p99
    %p101 = scmp.ne.s32.totalorder %s89, %s90
    %p102 = scmp.eq.s32.totalorder %s17, 1
    %p103 = por %p101, %p102
    %p105 = scmp.ne.s32.totalorder %s90, %s104
    %p106 = scmp.eq.s32.totalorder %s17, 0
    %p107 = por %p105, %p106
    %s109 = sadd.s32 %s108, 1
    %p112 = scmp.eq.s32.totalorder %s11, 1
    %p113 = scmp.ne.s32.totalorder %s108, %s110
    %p114 = scmp.eq.s32.totalorder %s11, 0
    %p115 = por %p113, %p114
    %p116 = scmp.ne.s32.totalorder %s108, %s110
    %p117 = scmp.eq.s32.totalorder %s16, 1
    %p118 = por %p116, %p117
    %p119 = scmp.ne.s32.totalorder %s110, %s111
    %p120 = scmp.eq.s32.totalorder %s16, 0
    %p121 = por %p119, %p120
    %p122 = scmp.ne.s32.totalorder %s110, %s111
    %p123 = scmp.eq.s32.totalorder %s17, 1
    %p124 = por %p122, %p123
    %p126 = scmp.ne.s32.totalorder %s111, %s125
    %p127 = scmp.eq.s32.totalorder %s17, 0
    %p128 = por %p126, %p127
    %s129 = ssub.s32 %s11, %s18
    %p130 = scmp.eq.s32.totalorder %s129, 0
    %s132 = sadd.s32 %s131, 1
    %s133 = scalar_select %p130, %s131, %s132
    %p136 = pneg %p130
    %p137 = scmp.eq.s32.totalorder %s11, 1
    %p138 = por %p136, %p137
    %p139 = scmp.ne.s32.totalorder %s131, %s134
    %p140 = scmp.eq.s32.totalorder %s11, 0
    %p141 = por %p139, %p140
    %p142 = scmp.ne.s32.totalorder %s131, %s134
    %p143 = scmp.eq.s32.totalorder %s16, 1
    %p144 = por %p142, %p143
    %p145 = scmp.ne.s32.totalorder %s134, %s135
    %p146 = scmp.eq.s32.totalorder %s16, 0
    %p147 = por %p145, %p146
    %p148 = scmp.ne.s32.totalorder %s134, %s135
    %p149 = scmp.eq.s32.totalorder %s17, 1
    %p150 = por %p148, %p149
    %p152 = scmp.ne.s32.totalorder %s135, %s151
    %p153 = scmp.eq.s32.totalorder %s17, 0
    %p154 = por %p152, %p153
    %p155 = scmp.le.s32.totalorder 1, %s11
    %p156 = scmp.lt.s32.totalorder %s11, 3
    %p157 = pnand %p155, %p156
    %p158 = pneg %p157
    // Predicated region
    $region9: #{gnn_stack_forward.9} parent=5 // pred_check
      _
    $region10: #{gnn_stack_forward.9} parent=5 // pred_check_branch
      %160 = sbr.rel (%p157) target = $region12
    $region11: #{gnn_stack_forward.9} parent=5 // pred_region
      %s161 = ssub.s32 %s11, 1
      // Predicated region
      $region13: #{gnn_stack_forward.9} parent=11 // pred_check
        %p162 = pneg %p58
      $region14: #{gnn_stack_forward.9} parent=11 // pred_check_branch
        %164 = sbr.rel (%p162) target = $region16
      $region15: #{gnn_stack_forward.9} parent=11 // pred_region
        _
      $region16: #{gnn_stack_forward.9} parent=11 // pred_fallthru
        _
      // Predicated region
      $region17: #{gnn_stack_forward.9} parent=11 // pred_check
        %p165 = pneg %p79
      $region18: #{gnn_stack_forward.9} parent=11 // pred_check_branch
        %167 = sbr.rel (%p165) target = $region20
      $region19: #{gnn_stack_forward.9} parent=11 // pred_region
        _
      $region20: #{gnn_stack_forward.9} parent=11 // pred_fallthru
        _
      // Predicated region
      $region21: #{gnn_stack_forward.9} parent=11 // pred_check
        %p168 = pneg %p100
      $region22: #{gnn_stack_forward.9} parent=11 // pred_check_branch
        %170 = sbr.rel (%p168) target = $region24
      $region23: #{gnn_stack_forward.9} parent=11 // pred_region
        _
      $region24: #{gnn_stack_forward.9} parent=11 // pred_fallthru
        _
      // Predicated region
      $region25: #{gnn_stack_forward.9} parent=11 // pred_check
        %p171 = pneg %p121
      $region26: #{gnn_stack_forward.9} parent=11 // pred_check_branch
        %173 = sbr.rel (%p171) target = $region28
      $region27: #{gnn_stack_forward.9} parent=11 // pred_region
        _
      $region28: #{gnn_stack_forward.9} parent=11 // pred_fallthru
        _
    $region12: #{gnn_stack_forward.9} parent=5 // pred_fallthru
      _
    %p174 = scmp.lt.s32.totalorder %s11, 2
    // Predicated region
    $region29: #{gnn_stack_forward.9} parent=5 // pred_check
      %p175 = pneg %p174
    $region30: #{gnn_stack_forward.9} parent=5 // pred_check_branch
      %177 = sbr.rel (%p175) target = $region32
    $region31: #{gnn_stack_forward.9} parent=5 // pred_region
      // Predicated region
      $region33: #{gnn_stack_forward.9} parent=31 // pred_check
        %p178 = pneg %p31
      $region34: #{gnn_stack_forward.9} parent=31 // pred_check_branch
        %180 = sbr.rel (%p178) target = $region36
      $region35: #{gnn_stack_forward.9} parent=31 // pred_region
        %s181 = smul.u32 32, %s11
        %p182 = scmp.lt.s32.totalorder %s181, 63
        %s183 = scalar_select %p182, %s181, 63
        %s184 = smul.addr %s183, 4
        %s185 = scalar_lea.vmem %s0, %s184
        %s186 = smul.u32 32, %s11
      $region36: #{gnn_stack_forward.9} parent=31 // pred_fallthru
        _
    $region32: #{gnn_stack_forward.9} parent=5 // pred_fallthru
      _
    %p187 = scmp.le.s32.totalorder 1, %s11
    %p188 = scmp.lt.s32.totalorder %s11, 3
    %p189 = pnand %p187, %p188
    %p190 = pneg %p189
    // Predicated region
    $region37: #{gnn_stack_forward.9} parent=5 // pred_check
      _
    $region38: #{gnn_stack_forward.9} parent=5 // pred_check_branch
      %192 = sbr.rel (%p189) target = $region40
    $region39: #{gnn_stack_forward.9} parent=5 // pred_region
      %s193 = ssub.s32 %s11, 1
      %s194 = smul.u32 32, %s16
      %p195 = scmp.lt.s32.totalorder %s194, 63
      %s196 = scalar_select %p195, %s194, 63
      %s197 = smul.addr %s196, 4
      %s198 = scalar_lea.vmem %s0, %s197
      %p199 = pneg %p37
      %p200 = pneg %p34
      %p201 = pneg %p58
      %p202 = pneg %p55
      %p203 = pneg %p79
      %p204 = pneg %p76
      %p205 = pneg %p100
      %p206 = pneg %p97
      %p207 = pneg %p121
      %p208 = pneg %p118
      %p209 = pneg %p147
      %p210 = pneg %p144
      %s211 = smul.u32 32, %s16
      %p212 = scmp.lt.s32.totalorder %s211, 63
      %s213 = scalar_select %p212, %s211, 63
      %s214 = smul.addr %s213, 8
      %s215 = scalar_lea.vmem %s5, %s214
      %s216 = smul.u32 32, %s16
      %p217 = scmp.lt.s32.totalorder %s216, 63
      %s218 = scalar_select %p217, %s216, 63
      %s219 = smul.addr %s218, 4
      %s220 = scalar_lea.vmem %s0, %s219
      %s221 = smul.u32 32, %s16
      %s222 = smul.u32 32, %s16
      %p223 = scmp.lt.s32.totalorder %s222, 63
      %s224 = scalar_select %p223, %s222, 63
      %s225 = smul.addr %s224, 8
      %s226 = scalar_lea.vmem %s5, %s225
      %s227 = smul.u32 32, %s16
      %v229 = vld [vmem:[%s220] sm:$0xf]
      %v230 = vld [vmem:[%s220 + $0x4] sm:$0xf]
      %v231 = vld [vmem:[%s220 + $0x8] sm:$0xf]
      %v232 = vld [vmem:[%s220 + $0xc] sm:$0xf]
      %v233 = vld [vmem:[%s220 + $0x10] sm:$0xf]
      %v234 = vld [vmem:[%s220 + $0x14] sm:$0xf]
      %v235 = vld [vmem:[%s220 + $0x18] sm:$0xf]
      %v236 = vld [vmem:[%s220 + $0x1c] sm:$0xf]
      %v237 = vld [vmem:[%s220 + $0x20] sm:$0xf]
      %v238 = vld [vmem:[%s220 + $0x24] sm:$0xf]
      %v239 = vld [vmem:[%s220 + $0x28] sm:$0xf]
      %v240 = vld [vmem:[%s220 + $0x2c] sm:$0xf]
      %v241 = vld [vmem:[%s220 + $0x30] sm:$0xf]
      %v242 = vld [vmem:[%s220 + $0x34] sm:$0xf]
      %v243 = vld [vmem:[%s220 + $0x38] sm:$0xf]
      %v244 = vld [vmem:[%s220 + $0x3c] sm:$0xf]
      %v245 = vld [vmem:[%s220 + $0x40] sm:$0xf]
      %v246 = vld [vmem:[%s220 + $0x44] sm:$0xf]
      %v247 = vld [vmem:[%s220 + $0x48] sm:$0xf]
      %v248 = vld [vmem:[%s220 + $0x4c] sm:$0xf]
      %v249 = vld [vmem:[%s220 + $0x50] sm:$0xf]
      %v250 = vld [vmem:[%s220 + $0x54] sm:$0xf]
      %v251 = vld [vmem:[%s220 + $0x58] sm:$0xf]
      %v252 = vld [vmem:[%s220 + $0x5c] sm:$0xf]
      %v253 = vld [vmem:[%s220 + $0x60] sm:$0xf]
      %v254 = vld [vmem:[%s220 + $0x64] sm:$0xf]
      %v255 = vld [vmem:[%s220 + $0x68] sm:$0xf]
      %v256 = vld [vmem:[%s220 + $0x6c] sm:$0xf]
      %v257 = vld [vmem:[%s220 + $0x70] sm:$0xf]
      %v258 = vld [vmem:[%s220 + $0x74] sm:$0xf]
      %v259 = vld [vmem:[%s220 + $0x78] sm:$0xf]
      %v260 = vld [vmem:[%s220 + $0x7c] sm:$0xf]
      %v261 = vld [vmem:[%s1] sm:$0xf]
      %v262 = vld [vmem:[%s1 + $0x4] sm:$0xf]
      %v263 = vld [vmem:[%s1 + $0x8] sm:$0xf]
      %v264 = vld [vmem:[%s1 + $0xc] sm:$0xf]
      %v265 = vld [vmem:[%s1 + $0x10] sm:$0xf]
      %v266 = vld [vmem:[%s1 + $0x14] sm:$0xf]
      %v267 = vld [vmem:[%s1 + $0x18] sm:$0xf]
      %v268 = vld [vmem:[%s1 + $0x1c] sm:$0xf]
      %v269 = vld [vmem:[%s1 + $0x20] sm:$0xf]
      %v270 = vld [vmem:[%s1 + $0x24] sm:$0xf]
      %v271 = vld [vmem:[%s1 + $0x28] sm:$0xf]
      %v272 = vld [vmem:[%s1 + $0x2c] sm:$0xf]
      %v273 = vld [vmem:[%s1 + $0x30] sm:$0xf]
      %v274 = vld [vmem:[%s1 + $0x34] sm:$0xf]
      %v275 = vld [vmem:[%s1 + $0x38] sm:$0xf]
      %v276 = vld [vmem:[%s1 + $0x3c] sm:$0xf]
      %v277 = vld [vmem:[%s2] sm:$0x1]
      %v279 = vlaneseq
      %v280 = vshrl.u32 %v279, 7
      %v281 = vsub.s32 0, %v280
      %v282 = vrot.slane %v277, %v281
      %v316 = vunpack.c.l.b16 %v229
      %v317 = vunpack.c.l.b16 %v230
      %v318 = vunpack.c.l.b16 %v231
      %v319 = vunpack.c.l.b16 %v232
      %v320 = vunpack.c.l.b16 %v233
      %v321 = vunpack.c.l.b16 %v234
      %v322 = vunpack.c.l.b16 %v235
      %v323 = vunpack.c.l.b16 %v236
      %v324 = vunpack.c.l.b16 %v237
      %v325 = vunpack.c.l.b16 %v238
      %v326 = vunpack.c.l.b16 %v239
      %v327 = vunpack.c.l.b16 %v240
      %v328 = vunpack.c.l.b16 %v241
      %v329 = vunpack.c.l.b16 %v242
      %v330 = vunpack.c.l.b16 %v243
      %v331 = vunpack.c.l.b16 %v244
      %v332 = vunpack.c.l.b16 %v245
      %v333 = vunpack.c.l.b16 %v246
      %v334 = vunpack.c.l.b16 %v247
      %v335 = vunpack.c.l.b16 %v248
      %v336 = vunpack.c.l.b16 %v249
      %v337 = vunpack.c.l.b16 %v250
      %v338 = vunpack.c.l.b16 %v251
      %v339 = vunpack.c.l.b16 %v252
      %v340 = vunpack.c.l.b16 %v253
      %v341 = vunpack.c.l.b16 %v254
      %v342 = vunpack.c.l.b16 %v255
      %v343 = vunpack.c.l.b16 %v256
      %v344 = vunpack.c.l.b16 %v257
      %v345 = vunpack.c.l.b16 %v258
      %v346 = vunpack.c.l.b16 %v259
      %v347 = vunpack.c.l.b16 %v260
      %v348 = vpack.c.b16 %v317, %v316
      %v349 = vpack.c.b16 %v319, %v318
      %v350 = vpack.c.b16 %v321, %v320
      %v351 = vpack.c.b16 %v323, %v322
      %v352 = vpack.c.b16 %v325, %v324
      %v353 = vpack.c.b16 %v327, %v326
      %v354 = vpack.c.b16 %v329, %v328
      %v355 = vpack.c.b16 %v331, %v330
      %v356 = vpack.c.b16 %v333, %v332
      %v357 = vpack.c.b16 %v335, %v334
      %v358 = vpack.c.b16 %v337, %v336
      %v359 = vpack.c.b16 %v339, %v338
      %v360 = vpack.c.b16 %v341, %v340
      %v361 = vpack.c.b16 %v343, %v342
      %v362 = vpack.c.b16 %v345, %v344
      %v363 = vpack.c.b16 %v347, %v346
      %v396 = vunpack.c.l.b16 %v261
      %v397 = vunpack.c.l.b16 %v262
      %v398 = vunpack.c.l.b16 %v263
      %v399 = vunpack.c.l.b16 %v264
      %v400 = vunpack.c.l.b16 %v265
      %v401 = vunpack.c.l.b16 %v266
      %v402 = vunpack.c.l.b16 %v267
      %v403 = vunpack.c.l.b16 %v268
      %v404 = vunpack.c.l.b16 %v269
      %v405 = vunpack.c.l.b16 %v270
      %v406 = vunpack.c.l.b16 %v271
      %v407 = vunpack.c.l.b16 %v272
      %v408 = vunpack.c.l.b16 %v273
      %v409 = vunpack.c.l.b16 %v274
      %v410 = vunpack.c.l.b16 %v275
      %v411 = vunpack.c.l.b16 %v276
      %v412 = vpack.c.b16 %v397, %v396
      %v413 = vpack.c.b16 %v399, %v398
      %v414 = vpack.c.b16 %v401, %v400
      %v415 = vpack.c.b16 %v403, %v402
      %v416 = vpack.c.b16 %v405, %v404
      %v417 = vpack.c.b16 %v407, %v406
      %v418 = vpack.c.b16 %v409, %v408
      %v419 = vpack.c.b16 %v411, %v410
      %428 = vmatprep.subr.bf16.mxu0 0
      %429 = vmatpush1.bf16.msra.mxu0 %v412
      %430 = vmatprep.subr.bf16.mxu0 0
      %431 = vmatpush1.bf16.msra.mxu0 %v413
      %432 = vmatprep.subr.bf16.mxu0 0
      %433 = vmatpush1.bf16.msra.mxu0 %v414
      %434 = vmatprep.subr.bf16.mxu0 0
      %435 = vmatpush1.bf16.msra.mxu0 %v415
      %436 = vmatprep.subr.bf16.mxu0 0
      %437 = vmatpush1.bf16.msra.mxu0 %v416
      %438 = vmatprep.subr.bf16.mxu0 0
      %439 = vmatpush1.bf16.msra.mxu0 %v417
      %440 = vmatprep.subr.bf16.mxu0 0
      %441 = vmatpush1.bf16.msra.mxu0 %v418
      %442 = vmatprep.subr.bf16.mxu0 0
      %443 = vmatpush1.bf16.msra.mxu0 %v419
      %444 = vmatprep.subr.bf16.mxu0 0
      %445 = vmatpush1.bf16.msra.mxu0 0
      %446 = vmatprep.subr.bf16.mxu0 0
      %447 = vmatpush1.bf16.msra.mxu0 0
      %448 = vmatprep.subr.bf16.mxu0 0
      %449 = vmatpush1.bf16.msra.mxu0 0
      %450 = vmatprep.subr.bf16.mxu0 0
      %451 = vmatpush1.bf16.msra.mxu0 0
      %452 = vmatprep.subr.bf16.mxu0 0
      %453 = vmatpush1.bf16.msra.mxu0 0
      %454 = vmatprep.subr.bf16.mxu0 0
      %455 = vmatpush1.bf16.msra.mxu0 0
      %456 = vmatprep.subr.bf16.mxu0 0
      %457 = vmatpush1.bf16.msra.mxu0 0
      %458 = vmatprep.subr.bf16.mxu0 0
      %459 = vmatpush1.bf16.msra.mxu0 0
      %460 = vmatprep.mubr.bf16.mxu0 0
      %461 = vmatmul.mubr.bf16.gmra.mrb[0].mxu0 %v348
      %v462 = vpop.f32.mrb[0].mxu0
      %v463 = vadd.f32 %v282, %v462
      %v464 = vpop.f32.mrb[0].mxu0
      %v465 = vpop.f32.mrb[0].mxu0
      %v466 = vadd.f32 %v282, %v465
      %v467 = vpop.f32.mrb[0].mxu0
      %468 = vmatprep.mubr.bf16.mxu0 0
      %469 = vmatmul.mubr.bf16.gmra.mrb[0].mxu0 %v349
      %v470 = vpop.f32.mrb[0].mxu0
      %v471 = vadd.f32 %v282, %v470
      %v472 = vpop.f32.mrb[0].mxu0
      %v473 = vpop.f32.mrb[0].mxu0
      %v474 = vadd.f32 %v282, %v473
      %v475 = vpop.f32.mrb[0].mxu0
      %476 = vmatprep.mubr.bf16.mxu0 0
      %477 = vmatmul.mubr.bf16.gmra.mrb[0].mxu0 %v350
      %v478 = vpop.f32.mrb[0].mxu0
      %v479 = vadd.f32 %v282, %v478
      %v480 = vpop.f32.mrb[0].mxu0
      %v481 = vpop.f32.mrb[0].mxu0
      %v482 = vadd.f32 %v282, %v481
      %v483 = vpop.f32.mrb[0].mxu0
      %484 = vmatprep.mubr.bf16.mxu0 0
      %485 = vmatmul.mubr.bf16.gmra.mrb[0].mxu0 %v351
      %v486 = vpop.f32.mrb[0].mxu0
      %v487 = vadd.f32 %v282, %v486
      %v488 = vpop.f32.mrb[0].mxu0
      %v489 = vpop.f32.mrb[0].mxu0
      %v490 = vadd.f32 %v282, %v489
      %v491 = vpop.f32.mrb[0].mxu0
      %492 = vmatprep.mubr.bf16.mxu0 0
      %493 = vmatmul.mubr.bf16.gmra.mrb[0].mxu0 %v352
      %v494 = vpop.f32.mrb[0].mxu0
      %v495 = vadd.f32 %v282, %v494
      %v496 = vpop.f32.mrb[0].mxu0
      %v497 = vpop.f32.mrb[0].mxu0
      %v498 = vadd.f32 %v282, %v497
      %v499 = vpop.f32.mrb[0].mxu0
      %500 = vmatprep.mubr.bf16.mxu0 0
      %501 = vmatmul.mubr.bf16.gmra.mrb[0].mxu0 %v353
      %v502 = vpop.f32.mrb[0].mxu0
      %v503 = vadd.f32 %v282, %v502
      %v504 = vpop.f32.mrb[0].mxu0
      %v505 = vpop.f32.mrb[0].mxu0
      %v506 = vadd.f32 %v282, %v505
      %v507 = vpop.f32.mrb[0].mxu0
      %508 = vmatprep.mubr.bf16.mxu0 0
      %509 = vmatmul.mubr.bf16.gmra.mrb[0].mxu0 %v354
      %v510 = vpop.f32.mrb[0].mxu0
      %v511 = vadd.f32 %v282, %v510
      %v512 = vpop.f32.mrb[0].mxu0
      %v513 = vpop.f32.mrb[0].mxu0
      %v514 = vadd.f32 %v282, %v513
      %v515 = vpop.f32.mrb[0].mxu0
      %516 = vmatprep.mubr.bf16.mxu0 0
      %517 = vmatmul.mubr.bf16.gmra.mrb[0].mxu0 %v355
      %v518 = vpop.f32.mrb[0].mxu0
      %v519 = vadd.f32 %v282, %v518
      %v520 = vpop.f32.mrb[0].mxu0
      %v521 = vpop.f32.mrb[0].mxu0
      %v522 = vadd.f32 %v282, %v521
      %v523 = vpop.f32.mrb[0].mxu0
      %524 = vmatprep.mubr.bf16.mxu0 0
      %525 = vmatmul.mubr.bf16.gmra.mrb[0].mxu0 %v356
      %v526 = vpop.f32.mrb[0].mxu0
      %v527 = vadd.f32 %v282, %v526
      %v528 = vpop.f32.mrb[0].mxu0
      %v529 = vpop.f32.mrb[0].mxu0
      %v530 = vadd.f32 %v282, %v529
      %v531 = vpop.f32.mrb[0].mxu0
      %532 = vmatprep.mubr.bf16.mxu0 0
      %533 = vmatmul.mubr.bf16.gmra.mrb[0].mxu0 %v357
      %v534 = vpop.f32.mrb[0].mxu0
      %v535 = vadd.f32 %v282, %v534
      %v536 = vpop.f32.mrb[0].mxu0
      %v537 = vpop.f32.mrb[0].mxu0
      %v538 = vadd.f32 %v282, %v537
      %v539 = vpop.f32.mrb[0].mxu0
      %540 = vmatprep.mubr.bf16.mxu0 0
      %541 = vmatmul.mubr.bf16.gmra.mrb[0].mxu0 %v358
      %v542 = vpop.f32.mrb[0].mxu0
      %v543 = vadd.f32 %v282, %v542
      %v544 = vpop.f32.mrb[0].mxu0
      %v545 = vpop.f32.mrb[0].mxu0
      %v546 = vadd.f32 %v282, %v545
      %v547 = vpop.f32.mrb[0].mxu0
      %548 = vmatprep.mubr.bf16.mxu0 0
      %549 = vmatmul.mubr.bf16.gmra.mrb[0].mxu0 %v359
      %v550 = vpop.f32.mrb[0].mxu0
      %v551 = vadd.f32 %v282, %v550
      %v552 = vpop.f32.mrb[0].mxu0
      %v553 = vpop.f32.mrb[0].mxu0
      %v554 = vadd.f32 %v282, %v553
      %v555 = vpop.f32.mrb[0].mxu0
      %556 = vmatprep.mubr.bf16.mxu0 0
      %557 = vmatmul.mubr.bf16.gmra.mrb[0].mxu0 %v360
      %v558 = vpop.f32.mrb[0].mxu0
      %v559 = vadd.f32 %v282, %v558
      %v560 = vpop.f32.mrb[0].mxu0
      %v561 = vpop.f32.mrb[0].mxu0
      %v562 = vadd.f32 %v282, %v561
      %v563 = vpop.f32.mrb[0].mxu0
      %564 = vmatprep.mubr.bf16.mxu0 0
      %565 = vmatmul.mubr.bf16.gmra.mrb[0].mxu0 %v361
      %v566 = vpop.f32.mrb[0].mxu0
      %v567 = vadd.f32 %v282, %v566
      %v568 = vpop.f32.mrb[0].mxu0
      %v569 = vpop.f32.mrb[0].mxu0
      %v570 = vadd.f32 %v282, %v569
      %v571 = vpop.f32.mrb[0].mxu0
      %572 = vmatprep.mubr.bf16.mxu0 0
      %573 = vmatmul.mubr.bf16.gmra.mrb[0].mxu0 %v362
      %v574 = vpop.f32.mrb[0].mxu0
      %v575 = vadd.f32 %v282, %v574
      %v576 = vpop.f32.mrb[0].mxu0
      %v577 = vpop.f32.mrb[0].mxu0
      %v578 = vadd.f32 %v282, %v577
      %v579 = vpop.f32.mrb[0].mxu0
      %580 = vmatprep.mubr.bf16.mxu0 0
      %581 = vmatmul.mubr.bf16.gmra.mrb[0].mxu0 %v363
      %v582 = vpop.f32.mrb[0].mxu0
      %v583 = vadd.f32 %v282, %v582
      %v584 = vpop.f32.mrb[0].mxu0
      %v585 = vpop.f32.mrb[0].mxu0
      %v586 = vadd.f32 %v282, %v585
      %v587 = vpop.f32.mrb[0].mxu0
      %588 = vdwg.mxu0
      %v589 = vpack.c.bf16 %v466, %v463
      %v590 = vpack.c.bf16 %v474, %v471
      %v591 = vpack.c.bf16 %v482, %v479
      %v592 = vpack.c.bf16 %v490, %v487
      %v593 = vpack.c.bf16 %v498, %v495
      %v594 = vpack.c.bf16 %v506, %v503
      %v595 = vpack.c.bf16 %v514, %v511
      %v596 = vpack.c.bf16 %v522, %v519
      %v597 = vpack.c.bf16 %v530, %v527
      %v598 = vpack.c.bf16 %v538, %v535
      %v599 = vpack.c.bf16 %v546, %v543
      %v600 = vpack.c.bf16 %v554, %v551
      %v601 = vpack.c.bf16 %v562, %v559
      %v602 = vpack.c.bf16 %v570, %v567
      %v603 = vpack.c.bf16 %v578, %v575
      %v604 = vpack.c.bf16 %v586, %v583
      %v605 = vld [vmem:[%s3] sm:$0xf]
      %v606 = vld [vmem:[%s3 + $0x4] sm:$0xf]
      %v607 = vld [vmem:[%s3 + $0x8] sm:$0xf]
      %v608 = vld [vmem:[%s3 + $0xc] sm:$0xf]
      %v609 = vld [vmem:[%s3 + $0x10] sm:$0xf]
      %v610 = vld [vmem:[%s3 + $0x14] sm:$0xf]
      %v611 = vld [vmem:[%s3 + $0x18] sm:$0xf]
      %v612 = vld [vmem:[%s3 + $0x1c] sm:$0xf]
      %v613 = vld [vmem:[%s3 + $0x20] sm:$0xf]
      %v614 = vld [vmem:[%s3 + $0x24] sm:$0xf]
      %v615 = vld [vmem:[%s3 + $0x28] sm:$0xf]
      %v616 = vld [vmem:[%s3 + $0x2c] sm:$0xf]
      %v617 = vld [vmem:[%s3 + $0x30] sm:$0xf]
      %v618 = vld [vmem:[%s3 + $0x34] sm:$0xf]
      %v619 = vld [vmem:[%s3 + $0x38] sm:$0xf]
      %v620 = vld [vmem:[%s3 + $0x3c] sm:$0xf]
      %v621 = vld [vmem:[%s4] sm:$0x1]
      %v623 = vlaneseq
      %v624 = vshrl.u32 %v623, 7
      %v625 = vsub.s32 0, %v624
      %v626 = vrot.slane %v621, %v625
      %v644 = vunpack.c.l.b16 %v605
      %v645 = vunpack.c.l.b16 %v606
      %v646 = vunpack.c.l.b16 %v607
      %v647 = vunpack.c.l.b16 %v608
      %v648 = vunpack.c.l.b16 %v609
      %v649 = vunpack.c.l.b16 %v610
      %v650 = vunpack.c.l.b16 %v611
      %v651 = vunpack.c.l.b16 %v612
      %v652 = vunpack.c.l.b16 %v613
      %v653 = vunpack.c.l.b16 %v614
      %v654 = vunpack.c.l.b16 %v615
      %v655 = vunpack.c.l.b16 %v616
      %v656 = vunpack.c.l.b16 %v617
      %v657 = vunpack.c.l.b16 %v618
      %v658 = vunpack.c.l.b16 %v619
      %v659 = vunpack.c.l.b16 %v620
      %v660 = vpack.c.b16 %v645, %v644
      %v661 = vpack.c.b16 %v647, %v646
      %v662 = vpack.c.b16 %v649, %v648
      %v663 = vpack.c.b16 %v651, %v650
      %v664 = vpack.c.b16 %v653, %v652
      %v665 = vpack.c.b16 %v655, %v654
      %v666 = vpack.c.b16 %v657, %v656
      %v667 = vpack.c.b16 %v659, %v658
      %676 = vmatprep.subr.bf16.mxu0 0
      %677 = vmatpush1.bf16.msra.mxu0 %v660
      %678 = vmatprep.subr.bf16.mxu0 0
      %679 = vmatpush1.bf16.msra.mxu0 %v661
      %680 = vmatprep.subr.bf16.mxu0 0
      %681 = vmatpush1.bf16.msra.mxu0 %v662
      %682 = vmatprep.subr.bf16.mxu0 0
      %683 = vmatpush1.bf16.msra.mxu0 %v663
      %684 = vmatprep.subr.bf16.mxu0 0
      %685 = vmatpush1.bf16.msra.mxu0 %v664
      %686 = vmatprep.subr.bf16.mxu0 0
      %687 = vmatpush1.bf16.msra.mxu0 %v665
      %688 = vmatprep.subr.bf16.mxu0 0
      %689 = vmatpush1.bf16.msra.mxu0 %v666
      %690 = vmatprep.subr.bf16.mxu0 0
      %691 = vmatpush1.bf16.msra.mxu0 %v667
      %692 = vmatprep.subr.bf16.mxu0 0
      %693 = vmatpush1.bf16.msra.mxu0 0
      %694 = vmatprep.subr.bf16.mxu0 0
      %695 = vmatpush1.bf16.msra.mxu0 0
      %696 = vmatprep.subr.bf16.mxu0 0
      %697 = vmatpush1.bf16.msra.mxu0 0
      %698 = vmatprep.subr.bf16.mxu0 0
      %699 = vmatpush1.bf16.msra.mxu0 0
      %700 = vmatprep.subr.bf16.mxu0 0
      %701 = vmatpush1.bf16.msra.mxu0 0
      %702 = vmatprep.subr.bf16.mxu0 0
      %703 = vmatpush1.bf16.msra.mxu0 0
      %704 = vmatprep.subr.bf16.mxu0 0
      %705 = vmatpush1.bf16.msra.mxu0 0
      %706 = vmatprep.subr.bf16.mxu0 0
      %707 = vmatpush1.bf16.msra.mxu0 0
      %708 = vmatprep.mubr.bf16.mxu0 0
      %709 = vmatmul.mubr.bf16.gmra.mrb[0].mxu0 %v589
      %v710 = vpop.f32.mrb[0].mxu0
      %v711 = vadd.f32 %v626, %v710
      %v712 = vpop.f32.mrb[0].mxu0
      %v713 = vpop.f32.mrb[0].mxu0
      %v714 = vadd.f32 %v626, %v713
      %v715 = vpop.f32.mrb[0].mxu0
      %716 = vmatprep.mubr.bf16.mxu0 0
      %717 = vmatmul.mubr.bf16.gmra.mrb[0].mxu0 %v590
      %v718 = vpop.f32.mrb[0].mxu0
      %v719 = vadd.f32 %v626, %v718
      %v720 = vpop.f32.mrb[0].mxu0
      %v721 = vpop.f32.mrb[0].mxu0
      %v722 = vadd.f32 %v626, %v721
      %v723 = vpop.f32.mrb[0].mxu0
      %724 = vmatprep.mubr.bf16.mxu0 0
      %725 = vmatmul.mubr.bf16.gmra.mrb[0].mxu0 %v591
      %v726 = vpop.f32.mrb[0].mxu0
      %v727 = vadd.f32 %v626, %v726
      %v728 = vpop.f32.mrb[0].mxu0
      %v729 = vpop.f32.mrb[0].mxu0
      %v730 = vadd.f32 %v626, %v729
      %v731 = vpop.f32.mrb[0].mxu0
      %732 = vmatprep.mubr.bf16.mxu0 0
      %733 = vmatmul.mubr.bf16.gmra.mrb[0].mxu0 %v592
      %v734 = vpop.f32.mrb[0].mxu0
      %v735 = vadd.f32 %v626, %v734
      %v736 = vpop.f32.mrb[0].mxu0
      %v737 = vpop.f32.mrb[0].mxu0
      %v738 = vadd.f32 %v626, %v737
      %v739 = vpop.f32.mrb[0].mxu0
      %740 = vmatprep.mubr.bf16.mxu0 0
      %741 = vmatmul.mubr.bf16.gmra.mrb[0].mxu0 %v593
      %v742 = vpop.f32.mrb[0].mxu0
      %v743 = vadd.f32 %v626, %v742
      %v744 = vpop.f32.mrb[0].mxu0
      %v745 = vpop.f32.mrb[0].mxu0
      %v746 = vadd.f32 %v626, %v745
      %v747 = vpop.f32.mrb[0].mxu0
      %748 = vmatprep.mubr.bf16.mxu0 0
      %749 = vmatmul.mubr.bf16.gmra.mrb[0].mxu0 %v594
      %v750 = vpop.f32.mrb[0].mxu0
      %v751 = vadd.f32 %v626, %v750
      %v752 = vpop.f32.mrb[0].mxu0
      %v753 = vpop.f32.mrb[0].mxu0
      %v754 = vadd.f32 %v626, %v753
      %v755 = vpop.f32.mrb[0].mxu0
      %756 = vmatprep.mubr.bf16.mxu0 0
      %757 = vmatmul.mubr.bf16.gmra.mrb[0].mxu0 %v595
      %v758 = vpop.f32.mrb[0].mxu0
      %v759 = vadd.f32 %v626, %v758
      %v760 = vpop.f32.mrb[0].mxu0
      %v761 = vpop.f32.mrb[0].mxu0
      %v762 = vadd.f32 %v626, %v761
      %v763 = vpop.f32.mrb[0].mxu0
      %764 = vmatprep.mubr.bf16.mxu0 0
      %765 = vmatmul.mubr.bf16.gmra.mrb[0].mxu0 %v596
      %v766 = vpop.f32.mrb[0].mxu0
      %v767 = vadd.f32 %v626, %v766
      %v768 = vpop.f32.mrb[0].mxu0
      %v769 = vpop.f32.mrb[0].mxu0
      %v770 = vadd.f32 %v626, %v769
      %v771 = vpop.f32.mrb[0].mxu0
      %772 = vmatprep.mubr.bf16.mxu0 0
      %773 = vmatmul.mubr.bf16.gmra.mrb[0].mxu0 %v597
      %v774 = vpop.f32.mrb[0].mxu0
      %v775 = vadd.f32 %v626, %v774
      %v776 = vpop.f32.mrb[0].mxu0
      %v777 = vpop.f32.mrb[0].mxu0
      %v778 = vadd.f32 %v626, %v777
      %v779 = vpop.f32.mrb[0].mxu0
      %780 = vmatprep.mubr.bf16.mxu0 0
      %781 = vmatmul.mubr.bf16.gmra.mrb[0].mxu0 %v598
      %v782 = vpop.f32.mrb[0].mxu0
      %v783 = vadd.f32 %v626, %v782
      %v784 = vpop.f32.mrb[0].mxu0
      %v785 = vpop.f32.mrb[0].mxu0
      %v786 = vadd.f32 %v626, %v785
      %v787 = vpop.f32.mrb[0].mxu0
      %788 = vmatprep.mubr.bf16.mxu0 0
      %789 = vmatmul.mubr.bf16.gmra.mrb[0].mxu0 %v599
      %v790 = vpop.f32.mrb[0].mxu0
      %v791 = vadd.f32 %v626, %v790
      %v792 = vpop.f32.mrb[0].mxu0
      %v793 = vpop.f32.mrb[0].mxu0
      %v794 = vadd.f32 %v626, %v793
      %v795 = vpop.f32.mrb[0].mxu0
      %796 = vmatprep.mubr.bf16.mxu0 0
      %797 = vmatmul.mubr.bf16.gmra.mrb[0].mxu0 %v600
      %v798 = vpop.f32.mrb[0].mxu0
      %v799 = vadd.f32 %v626, %v798
      %v800 = vpop.f32.mrb[0].mxu0
      %v801 = vpop.f32.mrb[0].mxu0
      %v802 = vadd.f32 %v626, %v801
      %v803 = vpop.f32.mrb[0].mxu0
      %804 = vmatprep.mubr.bf16.mxu0 0
      %805 = vmatmul.mubr.bf16.gmra.mrb[0].mxu0 %v601
      %v806 = vpop.f32.mrb[0].mxu0
      %v807 = vadd.f32 %v626, %v806
      %v808 = vpop.f32.mrb[0].mxu0
      %v809 = vpop.f32.mrb[0].mxu0
      %v810 = vadd.f32 %v626, %v809
      %v811 = vpop.f32.mrb[0].mxu0
      %812 = vmatprep.mubr.bf16.mxu0 0
      %813 = vmatmul.mubr.bf16.gmra.mrb[0].mxu0 %v602
      %v814 = vpop.f32.mrb[0].mxu0
      %v815 = vadd.f32 %v626, %v814
      %v816 = vpop.f32.mrb[0].mxu0
      %v817 = vpop.f32.mrb[0].mxu0
      %v818 = vadd.f32 %v626, %v817
      %v819 = vpop.f32.mrb[0].mxu0
      %820 = vmatprep.mubr.bf16.mxu0 0
      %821 = vmatmul.mubr.bf16.gmra.mrb[0].mxu0 %v603
      %v822 = vpop.f32.mrb[0].mxu0
      %v823 = vadd.f32 %v626, %v822
      %v824 = vpop.f32.mrb[0].mxu0
      %v825 = vpop.f32.mrb[0].mxu0
      %v826 = vadd.f32 %v626, %v825
      %v827 = vpop.f32.mrb[0].mxu0
      %828 = vmatprep.mubr.bf16.mxu0 0
      %829 = vmatmul.mubr.bf16.gmra.mrb[0].mxu0 %v604
      %v830 = vpop.f32.mrb[0].mxu0
      %v831 = vadd.f32 %v626, %v830
      %v832 = vpop.f32.mrb[0].mxu0
      %v833 = vpop.f32.mrb[0].mxu0
      %v834 = vadd.f32 %v626, %v833
      %v835 = vpop.f32.mrb[0].mxu0
      %836 = vdwg.mxu0
      %v837 = vlaneseq
      %v838 = vand.u32 %v837, 127
      %vm839 = vcmp.lt.s32.totalorder %v838, 8
      %v840 = vsel %vm839, %v711, -inf
      %v841 = vsel %vm839, %v714, -inf
      %v842 = vsel %vm839, %v719, -inf
      %v843 = vsel %vm839, %v722, -inf
      %v844 = vsel %vm839, %v727, -inf
      %v845 = vsel %vm839, %v730, -inf
      %v846 = vsel %vm839, %v735, -inf
      %v847 = vsel %vm839, %v738, -inf
      %v848 = vsel %vm839, %v743, -inf
      %v849 = vsel %vm839, %v746, -inf
      %v850 = vsel %vm839, %v751, -inf
      %v851 = vsel %vm839, %v754, -inf
      %v852 = vsel %vm839, %v759, -inf
      %v853 = vsel %vm839, %v762, -inf
      %v854 = vsel %vm839, %v767, -inf
      %v855 = vsel %vm839, %v770, -inf
      %v856 = vsel %vm839, %v775, -inf
      %v857 = vsel %vm839, %v778, -inf
      %v858 = vsel %vm839, %v783, -inf
      %v859 = vsel %vm839, %v786, -inf
      %v860 = vsel %vm839, %v791, -inf
      %v861 = vsel %vm839, %v794, -inf
      %v862 = vsel %vm839, %v799, -inf
      %v863 = vsel %vm839, %v802, -inf
      %v864 = vsel %vm839, %v807, -inf
      %v865 = vsel %vm839, %v810, -inf
      %v866 = vsel %vm839, %v815, -inf
      %v867 = vsel %vm839, %v818, -inf
      %v868 = vsel %vm839, %v823, -inf
      %v869 = vsel %vm839, %v826, -inf
      %v870 = vsel %vm839, %v831, -inf
      %v871 = vsel %vm839, %v834, -inf
      %872 = vmax.xlane.f32.xlu0 %v840
      %v873 = vpop.xlane.xlu0 %872
      %874 = vmax.xlane.f32.xlu0 %v841
      %v875 = vpop.xlane.xlu0 %874
      %876 = vmax.xlane.f32.xlu0 %v842
      %v877 = vpop.xlane.xlu0 %876
      %878 = vmax.xlane.f32.xlu0 %v843
      %v879 = vpop.xlane.xlu0 %878
      %880 = vmax.xlane.f32.xlu0 %v844
      %v881 = vpop.xlane.xlu0 %880
      %882 = vmax.xlane.f32.xlu0 %v845
      %v883 = vpop.xlane.xlu0 %882
      %884 = vmax.xlane.f32.xlu0 %v846
      %v885 = vpop.xlane.xlu0 %884
      %886 = vmax.xlane.f32.xlu0 %v847
      %v887 = vpop.xlane.xlu0 %886
      %888 = vmax.xlane.f32.xlu0 %v848
      %v889 = vpop.xlane.xlu0 %888
      %890 = vmax.xlane.f32.xlu0 %v849
      %v891 = vpop.xlane.xlu0 %890
      %892 = vmax.xlane.f32.xlu0 %v850
      %v893 = vpop.xlane.xlu0 %892
      %894 = vmax.xlane.f32.xlu0 %v851
      %v895 = vpop.xlane.xlu0 %894
      %896 = vmax.xlane.f32.xlu0 %v852
      %v897 = vpop.xlane.xlu0 %896
      %898 = vmax.xlane.f32.xlu0 %v853
      %v899 = vpop.xlane.xlu0 %898
      %900 = vmax.xlane.f32.xlu0 %v854
      %v901 = vpop.xlane.xlu0 %900
      %902 = vmax.xlane.f32.xlu0 %v855
      %v903 = vpop.xlane.xlu0 %902
      %904 = vmax.xlane.f32.xlu0 %v856
      %v905 = vpop.xlane.xlu0 %904
      %906 = vmax.xlane.f32.xlu0 %v857
      %v907 = vpop.xlane.xlu0 %906
      %908 = vmax.xlane.f32.xlu0 %v858
      %v909 = vpop.xlane.xlu0 %908
      %910 = vmax.xlane.f32.xlu0 %v859
      %v911 = vpop.xlane.xlu0 %910
      %912 = vmax.xlane.f32.xlu0 %v860
      %v913 = vpop.xlane.xlu0 %912
      %914 = vmax.xlane.f32.xlu0 %v861
      %v915 = vpop.xlane.xlu0 %914
      %916 = vmax.xlane.f32.xlu0 %v862
      %v917 = vpop.xlane.xlu0 %916
      %918 = vmax.xlane.f32.xlu0 %v863
      %v919 = vpop.xlane.xlu0 %918
      %920 = vmax.xlane.f32.xlu0 %v864
      %v921 = vpop.xlane.xlu0 %920
      %922 = vmax.xlane.f32.xlu0 %v865
      %v923 = vpop.xlane.xlu0 %922
      %924 = vmax.xlane.f32.xlu0 %v866
      %v925 = vpop.xlane.xlu0 %924
      %926 = vmax.xlane.f32.xlu0 %v867
      %v927 = vpop.xlane.xlu0 %926
      %928 = vmax.xlane.f32.xlu0 %v868
      %v929 = vpop.xlane.xlu0 %928
      %930 = vmax.xlane.f32.xlu0 %v869
      %v931 = vpop.xlane.xlu0 %930
      %932 = vmax.xlane.f32.xlu0 %v870
      %v933 = vpop.xlane.xlu0 %932
      %934 = vmax.xlane.f32.xlu0 %v871
      %v935 = vpop.xlane.xlu0 %934
      %v936 = vsub.f32 %v840, %v873
      %v937 = vsub.f32 %v841, %v875
      %v938 = vsub.f32 %v842, %v877
      %v939 = vsub.f32 %v843, %v879
      %v940 = vsub.f32 %v844, %v881
      %v941 = vsub.f32 %v845, %v883
      %v942 = vsub.f32 %v846, %v885
      %v943 = vsub.f32 %v847, %v887
      %v944 = vsub.f32 %v848, %v889
      %v945 = vsub.f32 %v849, %v891
      %v946 = vsub.f32 %v850, %v893
      %v947 = vsub.f32 %v851, %v895
      %v948 = vsub.f32 %v852, %v897
      %v949 = vsub.f32 %v853, %v899
      %v950 = vsub.f32 %v854, %v901
      %v951 = vsub.f32 %v855, %v903
      %v952 = vsub.f32 %v856, %v905
      %v953 = vsub.f32 %v857, %v907
      %v954 = vsub.f32 %v858, %v909
      %v955 = vsub.f32 %v859, %v911
      %v956 = vsub.f32 %v860, %v913
      %v957 = vsub.f32 %v861, %v915
      %v958 = vsub.f32 %v862, %v917
      %v959 = vsub.f32 %v863, %v919
      %v960 = vsub.f32 %v864, %v921
      %v961 = vsub.f32 %v865, %v923
      %v962 = vsub.f32 %v866, %v925
      %v963 = vsub.f32 %v867, %v927
      %v964 = vsub.f32 %v868, %v929
      %v965 = vsub.f32 %v869, %v931
      %v966 = vsub.f32 %v870, %v933
      %v967 = vsub.f32 %v871, %v935
      %v968 = vmul.f32 %v936, 1.442695
      %v969 = vpow.pop %v968
      %v970 = vmul.f32 %v937, 1.442695
      %v971 = vpow.pop %v970
      %v972 = vmul.f32 %v938, 1.442695
      %v973 = vpow.pop %v972
      %v974 = vmul.f32 %v939, 1.442695
      %v975 = vpow.pop %v974
      %v976 = vmul.f32 %v940, 1.442695
      %v977 = vpow.pop %v976
      %v978 = vmul.f32 %v941, 1.442695
      %v979 = vpow.pop %v978
      %v980 = vmul.f32 %v942, 1.442695
      %v981 = vpow.pop %v980
      %v982 = vmul.f32 %v943, 1.442695
      %v983 = vpow.pop %v982
      %v984 = vmul.f32 %v944, 1.442695
      %v985 = vpow.pop %v984
      %v986 = vmul.f32 %v945, 1.442695
      %v987 = vpow.pop %v986
      %v988 = vmul.f32 %v946, 1.442695
      %v989 = vpow.pop %v988
      %v990 = vmul.f32 %v947, 1.442695
      %v991 = vpow.pop %v990
      %v992 = vmul.f32 %v948, 1.442695
      %v993 = vpow.pop %v992
      %v994 = vmul.f32 %v949, 1.442695
      %v995 = vpow.pop %v994
      %v996 = vmul.f32 %v950, 1.442695
      %v997 = vpow.pop %v996
      %v998 = vmul.f32 %v951, 1.442695
      %v999 = vpow.pop %v998
      %v1000 = vmul.f32 %v952, 1.442695
      %v1001 = vpow.pop %v1000
      %v1002 = vmul.f32 %v953, 1.442695
      %v1003 = vpow.pop %v1002
      %v1004 = vmul.f32 %v954, 1.442695
      %v1005 = vpow.pop %v1004
      %v1006 = vmul.f32 %v955, 1.442695
      %v1007 = vpow.pop %v1006
      %v1008 = vmul.f32 %v956, 1.442695
      %v1009 = vpow.pop %v1008
      %v1010 = vmul.f32 %v957, 1.442695
      %v1011 = vpow.pop %v1010
      %v1012 = vmul.f32 %v958, 1.442695
      %v1013 = vpow.pop %v1012
      %v1014 = vmul.f32 %v959, 1.442695
      %v1015 = vpow.pop %v1014
      %v1016 = vmul.f32 %v960, 1.442695
      %v1017 = vpow.pop %v1016
      %v1018 = vmul.f32 %v961, 1.442695
      %v1019 = vpow.pop %v1018
      %v1020 = vmul.f32 %v962, 1.442695
      %v1021 = vpow.pop %v1020
      %v1022 = vmul.f32 %v963, 1.442695
      %v1023 = vpow.pop %v1022
      %v1024 = vmul.f32 %v964, 1.442695
      %v1025 = vpow.pop %v1024
      %v1026 = vmul.f32 %v965, 1.442695
      %v1027 = vpow.pop %v1026
      %v1028 = vmul.f32 %v966, 1.442695
      %v1029 = vpow.pop %v1028
      %v1030 = vmul.f32 %v967, 1.442695
      %v1031 = vpow.pop %v1030
      %v1032 = vsel %vm839, %v969, 0.0
      %v1033 = vsel %vm839, %v971, 0.0
      %v1034 = vsel %vm839, %v973, 0.0
      %v1035 = vsel %vm839, %v975, 0.0
      %v1036 = vsel %vm839, %v977, 0.0
      %v1037 = vsel %vm839, %v979, 0.0
      %v1038 = vsel %vm839, %v981, 0.0
      %v1039 = vsel %vm839, %v983, 0.0
      %v1040 = vsel %vm839, %v985, 0.0
      %v1041 = vsel %vm839, %v987, 0.0
      %v1042 = vsel %vm839, %v989, 0.0
      %v1043 = vsel %vm839, %v991, 0.0
      %v1044 = vsel %vm839, %v993, 0.0
      %v1045 = vsel %vm839, %v995, 0.0
      %v1046 = vsel %vm839, %v997, 0.0
      %v1047 = vsel %vm839, %v999, 0.0
      %v1048 = vsel %vm839, %v1001, 0.0
      %v1049 = vsel %vm839, %v1003, 0.0
      %v1050 = vsel %vm839, %v1005, 0.0
      %v1051 = vsel %vm839, %v1007, 0.0
      %v1052 = vsel %vm839, %v1009, 0.0
      %v1053 = vsel %vm839, %v1011, 0.0
      %v1054 = vsel %vm839, %v1013, 0.0
      %v1055 = vsel %vm839, %v1015, 0.0
      %v1056 = vsel %vm839, %v1017, 0.0
      %v1057 = vsel %vm839, %v1019, 0.0
      %v1058 = vsel %vm839, %v1021, 0.0
      %v1059 = vsel %vm839, %v1023, 0.0
      %v1060 = vsel %vm839, %v1025, 0.0
      %v1061 = vsel %vm839, %v1027, 0.0
      %v1062 = vsel %vm839, %v1029, 0.0
      %v1063 = vsel %vm839, %v1031, 0.0
      %1064 = vadd.xlane.f32.xlu0 %v1032
      %v1065 = vpop.xlane.xlu0 %1064
      %1066 = vadd.xlane.f32.xlu0 %v1033
      %v1067 = vpop.xlane.xlu0 %1066
      %1068 = vadd.xlane.f32.xlu0 %v1034
      %v1069 = vpop.xlane.xlu0 %1068
      %1070 = vadd.xlane.f32.xlu0 %v1035
      %v1071 = vpop.xlane.xlu0 %1070
      %1072 = vadd.xlane.f32.xlu0 %v1036
      %v1073 = vpop.xlane.xlu0 %1072
      %1074 = vadd.xlane.f32.xlu0 %v1037
      %v1075 = vpop.xlane.xlu0 %1074
      %1076 = vadd.xlane.f32.xlu0 %v1038
      %v1077 = vpop.xlane.xlu0 %1076
      %1078 = vadd.xlane.f32.xlu0 %v1039
      %v1079 = vpop.xlane.xlu0 %1078
      %1080 = vadd.xlane.f32.xlu0 %v1040
      %v1081 = vpop.xlane.xlu0 %1080
      %1082 = vadd.xlane.f32.xlu0 %v1041
      %v1083 = vpop.xlane.xlu0 %1082
      %1084 = vadd.xlane.f32.xlu0 %v1042
      %v1085 = vpop.xlane.xlu0 %1084
      %1086 = vadd.xlane.f32.xlu0 %v1043
      %v1087 = vpop.xlane.xlu0 %1086
      %1088 = vadd.xlane.f32.xlu0 %v1044
      %v1089 = vpop.xlane.xlu0 %1088
      %1090 = vadd.xlane.f32.xlu0 %v1045
      %v1091 = vpop.xlane.xlu0 %1090
      %1092 = vadd.xlane.f32.xlu0 %v1046
      %v1093 = vpop.xlane.xlu0 %1092
      %1094 = vadd.xlane.f32.xlu0 %v1047
      %v1095 = vpop.xlane.xlu0 %1094
      %1096 = vadd.xlane.f32.xlu0 %v1048
      %v1097 = vpop.xlane.xlu0 %1096
      %1098 = vadd.xlane.f32.xlu0 %v1049
      %v1099 = vpop.xlane.xlu0 %1098
      %1100 = vadd.xlane.f32.xlu0 %v1050
      %v1101 = vpop.xlane.xlu0 %1100
      %1102 = vadd.xlane.f32.xlu0 %v1051
      %v1103 = vpop.xlane.xlu0 %1102
      %1104 = vadd.xlane.f32.xlu0 %v1052
      %v1105 = vpop.xlane.xlu0 %1104
      %1106 = vadd.xlane.f32.xlu0 %v1053
      %v1107 = vpop.xlane.xlu0 %1106
      %1108 = vadd.xlane.f32.xlu0 %v1054
      %v1109 = vpop.xlane.xlu0 %1108
      %1110 = vadd.xlane.f32.xlu0 %v1055
      %v1111 = vpop.xlane.xlu0 %1110
      %1112 = vadd.xlane.f32.xlu0 %v1056
      %v1113 = vpop.xlane.xlu0 %1112
      %1114 = vadd.xlane.f32.xlu0 %v1057
      %v1115 = vpop.xlane.xlu0 %1114
      %1116 = vadd.xlane.f32.xlu0 %v1058
      %v1117 = vpop.xlane.xlu0 %1116
      %1118 = vadd.xlane.f32.xlu0 %v1059
      %v1119 = vpop.xlane.xlu0 %1118
      %1120 = vadd.xlane.f32.xlu0 %v1060
      %v1121 = vpop.xlane.xlu0 %1120
      %1122 = vadd.xlane.f32.xlu0 %v1061
      %v1123 = vpop.xlane.xlu0 %1122
      %1124 = vadd.xlane.f32.xlu0 %v1062
      %v1125 = vpop.xlane.xlu0 %1124
      %1126 = vadd.xlane.f32.xlu0 %v1063
      %v1127 = vpop.xlane.xlu0 %1126
      %v1128 = vlog2.pop %v1065
      %v1129 = vmul.f32 %v1128, 0.6931472
      %v1130 = vlog2.pop %v1067
      %v1131 = vmul.f32 %v1130, 0.6931472
      %v1132 = vlog2.pop %v1069
      %v1133 = vmul.f32 %v1132, 0.6931472
      %v1134 = vlog2.pop %v1071
      %v1135 = vmul.f32 %v1134, 0.6931472
      %v1136 = vlog2.pop %v1073
      %v1137 = vmul.f32 %v1136, 0.6931472
      %v1138 = vlog2.pop %v1075
      %v1139 = vmul.f32 %v1138, 0.6931472
      %v1140 = vlog2.pop %v1077
      %v1141 = vmul.f32 %v1140, 0.6931472
      %v1142 = vlog2.pop %v1079
      %v1143 = vmul.f32 %v1142, 0.6931472
      %v1144 = vlog2.pop %v1081
      %v1145 = vmul.f32 %v1144, 0.6931472
      %v1146 = vlog2.pop %v1083
      %v1147 = vmul.f32 %v1146, 0.6931472
      %v1148 = vlog2.pop %v1085
      %v1149 = vmul.f32 %v1148, 0.6931472
      %v1150 = vlog2.pop %v1087
      %v1151 = vmul.f32 %v1150, 0.6931472
      %v1152 = vlog2.pop %v1089
      %v1153 = vmul.f32 %v1152, 0.6931472
      %v1154 = vlog2.pop %v1091
      %v1155 = vmul.f32 %v1154, 0.6931472
      %v1156 = vlog2.pop %v1093
      %v1157 = vmul.f32 %v1156, 0.6931472
      %v1158 = vlog2.pop %v1095
      %v1159 = vmul.f32 %v1158, 0.6931472
      %v1160 = vlog2.pop %v1097
      %v1161 = vmul.f32 %v1160, 0.6931472
      %v1162 = vlog2.pop %v1099
      %v1163 = vmul.f32 %v1162, 0.6931472
      %v1164 = vlog2.pop %v1101
      %v1165 = vmul.f32 %v1164, 0.6931472
      %v1166 = vlog2.pop %v1103
      %v1167 = vmul.f32 %v1166, 0.6931472
      %v1168 = vlog2.pop %v1105
      %v1169 = vmul.f32 %v1168, 0.6931472
      %v1170 = vlog2.pop %v1107
      %v1171 = vmul.f32 %v1170, 0.6931472
      %v1172 = vlog2.pop %v1109
      %v1173 = vmul.f32 %v1172, 0.6931472
      %v1174 = vlog2.pop %v1111
      %v1175 = vmul.f32 %v1174, 0.6931472
      %v1176 = vlog2.pop %v1113
      %v1177 = vmul.f32 %v1176, 0.6931472
      %v1178 = vlog2.pop %v1115
      %v1179 = vmul.f32 %v1178, 0.6931472
      %v1180 = vlog2.pop %v1117
      %v1181 = vmul.f32 %v1180, 0.6931472
      %v1182 = vlog2.pop %v1119
      %v1183 = vmul.f32 %v1182, 0.6931472
      %v1184 = vlog2.pop %v1121
      %v1185 = vmul.f32 %v1184, 0.6931472
      %v1186 = vlog2.pop %v1123
      %v1187 = vmul.f32 %v1186, 0.6931472
      %v1188 = vlog2.pop %v1125
      %v1189 = vmul.f32 %v1188, 0.6931472
      %v1190 = vlog2.pop %v1127
      %v1191 = vmul.f32 %v1190, 0.6931472
      %v1192 = vadd.f32 %v873, %v1129
      %v1193 = vadd.f32 %v875, %v1131
      %v1194 = vadd.f32 %v877, %v1133
      %v1195 = vadd.f32 %v879, %v1135
      %v1196 = vadd.f32 %v881, %v1137
      %v1197 = vadd.f32 %v883, %v1139
      %v1198 = vadd.f32 %v885, %v1141
      %v1199 = vadd.f32 %v887, %v1143
      %v1200 = vadd.f32 %v889, %v1145
      %v1201 = vadd.f32 %v891, %v1147
      %v1202 = vadd.f32 %v893, %v1149
      %v1203 = vadd.f32 %v895, %v1151
      %v1204 = vadd.f32 %v897, %v1153
      %v1205 = vadd.f32 %v899, %v1155
      %v1206 = vadd.f32 %v901, %v1157
      %v1207 = vadd.f32 %v903, %v1159
      %v1208 = vadd.f32 %v905, %v1161
      %v1209 = vadd.f32 %v907, %v1163
      %v1210 = vadd.f32 %v909, %v1165
      %v1211 = vadd.f32 %v911, %v1167
      %v1212 = vadd.f32 %v913, %v1169
      %v1213 = vadd.f32 %v915, %v1171
      %v1214 = vadd.f32 %v917, %v1173
      %v1215 = vadd.f32 %v919, %v1175
      %v1216 = vadd.f32 %v921, %v1177
      %v1217 = vadd.f32 %v923, %v1179
      %v1218 = vadd.f32 %v925, %v1181
      %v1219 = vadd.f32 %v927, %v1183
      %v1220 = vadd.f32 %v929, %v1185
      %v1221 = vadd.f32 %v931, %v1187
      %v1222 = vadd.f32 %v933, %v1189
      %v1223 = vadd.f32 %v935, %v1191
      %v1224 = vsub.f32 %v840, %v1192
      %v1225 = vsub.f32 %v841, %v1193
      %v1226 = vsub.f32 %v842, %v1194
      %v1227 = vsub.f32 %v843, %v1195
      %v1228 = vsub.f32 %v844, %v1196
      %v1229 = vsub.f32 %v845, %v1197
      %v1230 = vsub.f32 %v846, %v1198
      %v1231 = vsub.f32 %v847, %v1199
      %v1232 = vsub.f32 %v848, %v1200
      %v1233 = vsub.f32 %v849, %v1201
      %v1234 = vsub.f32 %v850, %v1202
      %v1235 = vsub.f32 %v851, %v1203
      %v1236 = vsub.f32 %v852, %v1204
      %v1237 = vsub.f32 %v853, %v1205
      %v1238 = vsub.f32 %v854, %v1206
      %v1239 = vsub.f32 %v855, %v1207
      %v1240 = vsub.f32 %v856, %v1208
      %v1241 = vsub.f32 %v857, %v1209
      %v1242 = vsub.f32 %v858, %v1210
      %v1243 = vsub.f32 %v859, %v1211
      %v1244 = vsub.f32 %v860, %v1212
      %v1245 = vsub.f32 %v861, %v1213
      %v1246 = vsub.f32 %v862, %v1214
      %v1247 = vsub.f32 %v863, %v1215
      %v1248 = vsub.f32 %v864, %v1216
      %v1249 = vsub.f32 %v865, %v1217
      %v1250 = vsub.f32 %v866, %v1218
      %v1251 = vsub.f32 %v867, %v1219
      %v1252 = vsub.f32 %v868, %v1220
      %v1253 = vsub.f32 %v869, %v1221
      %v1254 = vsub.f32 %v870, %v1222
      %v1255 = vsub.f32 %v871, %v1223
      %1256 = vst [vmem:[%s226] sm:$0xff] %v1224
      %1257 = vst [vmem:[%s226 + $0x8] sm:$0xff] %v1225
      %1258 = vst [vmem:[%s226 + $0x10] sm:$0xff] %v1226
      %1259 = vst [vmem:[%s226 + $0x18] sm:$0xff] %v1227
      %1260 = vst [vmem:[%s226 + $0x20] sm:$0xff] %v1228
      %1261 = vst [vmem:[%s226 + $0x28] sm:$0xff] %v1229
      %1262 = vst [vmem:[%s226 + $0x30] sm:$0xff] %v1230
      %1263 = vst [vmem:[%s226 + $0x38] sm:$0xff] %v1231
      %1264 = vst [vmem:[%s226 + $0x40] sm:$0xff] %v1232
      %1265 = vst [vmem:[%s226 + $0x48] sm:$0xff] %v1233
      %1266 = vst [vmem:[%s226 + $0x50] sm:$0xff] %v1234
      %1267 = vst [vmem:[%s226 + $0x58] sm:$0xff] %v1235
      %1268 = vst [vmem:[%s226 + $0x60] sm:$0xff] %v1236
      %1269 = vst [vmem:[%s226 + $0x68] sm:$0xff] %v1237
      %1270 = vst [vmem:[%s226 + $0x70] sm:$0xff] %v1238
      %1271 = vst [vmem:[%s226 + $0x78] sm:$0xff] %v1239
      %1272 = vst [vmem:[%s226 + $0x80] sm:$0xff] %v1240
      %1273 = vst [vmem:[%s226 + $0x88] sm:$0xff] %v1241
      %1274 = vst [vmem:[%s226 + $0x90] sm:$0xff] %v1242
      %1275 = vst [vmem:[%s226 + $0x98] sm:$0xff] %v1243
      %1276 = vst [vmem:[%s226 + $0xa0] sm:$0xff] %v1244
      %1277 = vst [vmem:[%s226 + $0xa8] sm:$0xff] %v1245
      %1278 = vst [vmem:[%s226 + $0xb0] sm:$0xff] %v1246
      %1279 = vst [vmem:[%s226 + $0xb8] sm:$0xff] %v1247
      %1280 = vst [vmem:[%s226 + $0xc0] sm:$0xff] %v1248
      %1281 = vst [vmem:[%s226 + $0xc8] sm:$0xff] %v1249
      %1282 = vst [vmem:[%s226 + $0xd0] sm:$0xff] %v1250
      %1283 = vst [vmem:[%s226 + $0xd8] sm:$0xff] %v1251
      %1284 = vst [vmem:[%s226 + $0xe0] sm:$0xff] %v1252
      %1285 = vst [vmem:[%s226 + $0xe8] sm:$0xff] %v1253
      %1286 = vst [vmem:[%s226 + $0xf0] sm:$0xff] %v1254
      %1287 = vst [vmem:[%s226 + $0xf8] sm:$0xff] %v1255
      %s1288 = smul.u32 32, %s16
      %p1289 = scmp.lt.s32.totalorder %s1288, 63
      %s1290 = scalar_select %p1289, %s1288, 63
      %s1291 = smul.addr %s1290, 8
      %s1292 = scalar_lea.vmem %s5, %s1291
      // Predicated region
      $region41: #{gnn_stack_forward.9} parent=39 // pred_check
        %p1293 = pneg %p144
      $region42: #{gnn_stack_forward.9} parent=39 // pred_check_branch
        %1295 = sbr.rel (%p1293) target = $region44
      $region43: #{gnn_stack_forward.9} parent=39 // pred_region
        %s1296 = smul.u32 32, %s16
      $region44: #{gnn_stack_forward.9} parent=39 // pred_fallthru
        _
    $region40: #{gnn_stack_forward.9} parent=5 // pred_fallthru
      _
    %p1297 = scmp.le.s32.totalorder 2, %s11
    // Predicated region
    $region45: #{gnn_stack_forward.9} parent=5 // pred_check
      %p1298 = pneg %p1297
    $region46: #{gnn_stack_forward.9} parent=5 // pred_check_branch
      %1300 = sbr.rel (%p1298) target = $region48
    $region47: #{gnn_stack_forward.9} parent=5 // pred_region
      %s1301 = ssub.s32 %s11, 2
      // Predicated region
      $region49: #{gnn_stack_forward.9} parent=47 // pred_check
        %p1302 = pneg %p150
      $region50: #{gnn_stack_forward.9} parent=47 // pred_check_branch
        %1304 = sbr.rel (%p1302) target = $region52
      $region51: #{gnn_stack_forward.9} parent=47 // pred_region
        %s1305 = smul.u32 32, %s17
        %p1306 = scmp.lt.s32.totalorder %s1305, 63
        %s1307 = scalar_select %p1306, %s1305, 63
        %s1308 = smul.addr %s1307, 8
        %s1309 = scalar_lea.vmem %s5, %s1308
      $region52: #{gnn_stack_forward.9} parent=47 // pred_fallthru
        _
    $region48: #{gnn_stack_forward.9} parent=5 // pred_fallthru
      _
  $region6: #{gnn_stack_forward.9} parent=0 // loop_footer
    %s15 = sadd.s32 1, %s11
  $region7: #{gnn_stack_forward.9} parent=0 // loop_footer_branch
    %10 = sbr.rel target = $region3
  $region8: #{gnn_stack_forward.9} parent=0 // loop_exit
    _

</llo_original>
